<compile_context>
chip_gen: v6e
topology: v6e:2x2x1
jax: 0.10.0
libtpu: 0.0.40
codegen_flags: <defaults>
</compile_context>

<pallas_src>
import functools

import jax
import jax.numpy as jnp
from jax.experimental import pallas as pl
from jax.experimental.pallas import tpu as pltpu

F_IN = 66          # raw node-feature width
F_PAD = 128        # features zero-padded to a lane-dense 128
H1 = 256
H2 = 64
F_OUT = 1


def _round_up(a, b):
    return ((a + b - 1) // b) * b


def _device_kind():
    try:
        return jax.devices()[0].device_kind.lower()
    except Exception:
        return ""


def _default_core_splits():
    # The 2-way node split only pays off with 2 TensorCores per chip (v7x).
    kind = _device_kind()
    return 2 if ("v7" in kind or "7x" in kind) else 1


def _default_bf16_act():
    # v6e/v7x have bf16 VALUs; v5e (and older) would unpack/op/pack, keep f32.
    kind = _device_kind()
    return ("v6" in kind) or ("v7" in kind) or ("7x" in kind)


def _classifier_kernel(x_ref, batch_ref, w1_ref, b1_ref, w2_ref, b2_ref,
                       w3_ref, out_ref, *, bf16_act):
    """grid = (core_split, node_tiles).

    out_ref is this core's (1, G, 2) accumulator:
      column 0 = segment sum of per-node scores (h2 @ w3)
      column 1 = per-graph node count
    accumulated over the node tiles of this core.
    """
    # Zero this core's accumulator on its first node tile.
    @pl.when(pl.program_id(1) == 0)
    def _():
        out_ref[...] = jnp.zeros_like(out_ref)

    # ---- MLP on the node tile (bf16 MXU operands, f32 accumulation) -------
    h = jnp.dot(x_ref[...], w1_ref[...], preferred_element_type=jnp.float32)
    if bf16_act:                              # bias/ReLU in bf16 (v6e/v7x)
        h = h.astype(jnp.bfloat16)
    h = jnp.maximum(h + b1_ref[...], 0.0)     # Sequential's ReLU
    if not bf16_act:                          # f32 elementwise path (v5e)
        h = h.astype(jnp.bfloat16)

    h = jnp.dot(h, w2_ref[...], preferred_element_type=jnp.float32)
    if bf16_act:
        h = h.astype(jnp.bfloat16)
    h = jnp.maximum(h + b2_ref[...], 0.0)     # the extra F.relu
    if not bf16_act:
        h = h.astype(jnp.bfloat16)

    # Pooling linearity: mean_g(h2) @ w3 == mean_g(h2 @ w3); only a per-node
    # scalar score needs segment reduction.
    s = jnp.dot(h, w3_ref[...], preferred_element_type=jnp.float32)   # (T, 1)

    # ---- per-tile one-hot segment mask (G, T); exact 0/1 in bf16 ----------
    tile_n = x_ref.shape[0]
    n_graphs = out_ref.shape[1]
    gids = jax.lax.broadcasted_iota(jnp.int32, (n_graphs, tile_n), 0)
    mask = (gids == batch_ref[...]).astype(jnp.bfloat16)              # (G, T)

    # [score, 1] columns -> one matmul yields both score-sum and node count.
    # Padded rows carry graph id == n_graphs (outside the iota range), so
    # their mask column is all-zero and they contribute to neither column.
    lane = jax.lax.broadcasted_iota(jnp.int32, (tile_n, 2), 1)
    sv = jnp.where(lane == 0, s, 1.0).astype(jnp.bfloat16)            # (T, 2)
    out_ref[...] += jnp.dot(mask, sv,
                            preferred_element_type=jnp.float32)[None, :, :]

    # Dropout(p=0.1) is identity in eval mode.
    # TODO(synk): training-mode dropout (pltpu.prng_* mask/scale) not implemented.


def classifier_forward(x, batch, params, num_graphs, *, tile_n=1024,
                       num_core_splits=None, bf16_act=None):
    """x: (N, 66) float; batch: (N,) int graph ids in [0, num_graphs)."""
    w1, b1, w2, b2, w3, b3 = params
    n = x.shape[0]

    if num_core_splits is None:
        num_core_splits = _default_core_splits()
    if bf16_act is None:
        bf16_act = _default_bf16_act()
    act_dtype = jnp.bfloat16 if bf16_act else jnp.float32

    # --- tile sizing: cover small inputs in a single grid step per core ----
    rows_per_core = pl.cdiv(n, num_core_splits)
    if num_core_splits == 1 and rows_per_core <= tile_n:
        # single tile == full (padded) array -> any multiple of 8 is legal
        tile_n = max(_round_up(n, 8), 8)
        tiles_per_core = 1
    else:
        tile_n = _round_up(min(tile_n, _round_up(rows_per_core, 128)), 128)
        tiles_per_core = pl.cdiv(rows_per_core, tile_n)
    n_pad = num_core_splits * tiles_per_core * tile_n

    # --- inputs: cast to bf16 *before* padding; features 66 -> 128 ---------
    x_pad = jnp.pad(x.astype(jnp.bfloat16),
                    ((0, n_pad - n), (0, F_PAD - F_IN)))
    # padded rows get an out-of-range graph id -> excluded by the segment mask
    batch_pad = jnp.full((n_pad,), num_graphs, dtype=jnp.int32)
    batch_pad = batch_pad.at[:n].set(batch.astype(jnp.int32))
    batch_row = batch_pad.reshape(1, n_pad)

    # --- weights: bf16 MXU operands; layer-1 K padded 66 -> 128 ------------
    w1p = jnp.pad(w1.astype(jnp.bfloat16), ((0, F_PAD - F_IN), (0, 0)))
    w2b = w2.astype(jnp.bfloat16)
    w3b = w3.astype(jnp.bfloat16)
    b1r = b1.reshape(1, H1).astype(act_dtype)
    b2r = b2.reshape(1, H2).astype(act_dtype)

    def node_map(c, i):
        return (c * tiles_per_core + i, 0)

    def batch_map(c, i):
        return (0, c * tiles_per_core + i)

    def resident(c, i):
        return (0, 0)

    lead_sem = (getattr(pltpu, "CORE_PARALLEL", "parallel")
                if num_core_splits > 1 else "arbitrary")

    partials = pl.pallas_call(
        functools.partial(_classifier_kernel, bf16_act=bf16_act),
        out_shape=jax.ShapeDtypeStruct((num_core_splits, num_graphs, 2),
                                       jnp.float32),
        grid=(num_core_splits, tiles_per_core),
        in_specs=[
            pl.BlockSpec((tile_n, F_PAD), node_map),       # x node tile
            pl.BlockSpec((1, tile_n), batch_map),          # graph ids
            pl.BlockSpec((F_PAD, H1), resident),           # w1 (VMEM resident)
            pl.BlockSpec((1, H1), resident),               # b1
            pl.BlockSpec((H1, H2), resident),              # w2
            pl.BlockSpec((1, H2), resident),               # b2
            pl.BlockSpec((H2, F_OUT), resident),           # w3
        ],
        out_specs=pl.BlockSpec((1, num_graphs, 2), lambda c, i: (c, 0, 0)),
        compiler_params=pltpu.CompilerParams(
            dimension_semantics=(lead_sem, "arbitrary"),
            vmem_limit_bytes=32 * 1024 * 1024),
    )(x_pad, batch_row, w1p, b1r, w2b, b2r, w3b)

    # --- tiny (G,2) epilogue: combine core partials, mean-divide, + b3 -----
    totals = partials.sum(axis=0)                          # (G, 2)
    scores = totals[:, 0:1]                                # per-graph sum
    counts = totals[:, 1:2]                                # per-graph node count
    return scores / jnp.maximum(counts, 1.0) + b3.reshape(1, F_OUT)


def init_params(key):
    """Deterministic parameter init matching the PyTorch module's shapes."""
    ks = jax.random.split(key, 6)

    def linear(kw, kb, fan_in, fan_out):
        bound = 1.0 / jnp.sqrt(fan_in)
        w = jax.random.uniform(kw, (fan_in, fan_out), jnp.float32, -bound, bound)
        b = jax.random.uniform(kb, (fan_out,), jnp.float32, -bound, bound)
        return w, b

    w1, b1 = linear(ks[0], ks[1], F_IN, H1)
    w2, b2 = linear(ks[2], ks[3], H1, H2)
    w3, b3 = linear(ks[4], ks[5], H2, F_OUT)
    return (w1, b1, w2, b2, w3, b3)


def reference_forward(x, batch, params, num_graphs):
    """Pure-JAX f32 reference for correctness checking."""
    w1, b1, w2, b2, w3, b3 = params
    h = jnp.maximum(x @ w1 + b1, 0.0)
    h = jnp.maximum(h @ w2 + b2, 0.0)
    onehot = (jnp.arange(num_graphs)[:, None] == batch[None, :]).astype(jnp.float32)
    pooled = (onehot @ h) / jnp.maximum(onehot.sum(1, keepdims=True), 1.0)
    return pooled @ w3 + b3


if __name__ == "__main__":
    key = jax.random.PRNGKey(0)
    k_param, k_x, k_b = jax.random.split(key, 3)

    num_nodes = 1000
    num_graphs = 8
    x = jax.random.normal(k_x, (num_nodes, F_IN), dtype=jnp.float32)
    # sorted graph ids (PyG-style batching), roughly equal-sized graphs
    batch = jnp.sort(
        jax.random.randint(k_b, (num_nodes,), 0, num_graphs)).astype(jnp.int32)

    params = init_params(k_param)

    out = classifier_forward(x, batch, params, num_graphs)
    out = jax.block_until_ready(out)

    ref = reference_forward(x, batch, params, num_graphs)
    assert out.shape == (num_graphs, 1)
    # bf16 MXU operands (f32 accumulation) -> widened tolerance vs f32 reference
    assert jnp.allclose(out, ref, atol=3e-2, rtol=3e-2), (out, ref)

    print("KERNEL_OK")
</pallas_src>

<mosaic_0001>
module attributes {stable_mosaic.version = 11 : i64} {
  func.func @_classifier_kernel(%arg0: i32, %arg1: i32, %arg2: memref<1000x128xbf16, #tpu.memory_space<vmem>>, %arg3: memref<1x1000xi32, #tpu.memory_space<vmem>>, %arg4: memref<128x256xbf16, #tpu.memory_space<vmem>>, %arg5: memref<1x256xf32, #tpu.memory_space<vmem>>, %arg6: memref<256x64xbf16, #tpu.memory_space<vmem>>, %arg7: memref<1x64xf32, #tpu.memory_space<vmem>>, %arg8: memref<64x1xbf16, #tpu.memory_space<vmem>>, %arg9: memref<1x8x2xf32, #tpu.memory_space<vmem>>) attributes {dimension_semantics = [#tpu.dimension_semantics<arbitrary>, #tpu.dimension_semantics<arbitrary>], iteration_bounds = array<i64: 1, 1>, scalar_prefetch = 0 : i64, scratch_operands = 0 : i64, tpu.core_type = #tpu.core_type<tc>, window_params = [{transform_indices = @transform_0, window_bounds = array<i64: 1000, 128>}, {transform_indices = @transform_1, window_bounds = array<i64: 1, 1000>}, {pipeline_mode = #tpu.pipeline_mode<synchronous>, transform_indices = @transform_2, window_bounds = array<i64: 128, 256>}, {pipeline_mode = #tpu.pipeline_mode<synchronous>, transform_indices = @transform_3, window_bounds = array<i64: 1, 256>}, {pipeline_mode = #tpu.pipeline_mode<synchronous>, transform_indices = @transform_4, window_bounds = array<i64: 256, 64>}, {pipeline_mode = #tpu.pipeline_mode<synchronous>, transform_indices = @transform_5, window_bounds = array<i64: 1, 64>}, {pipeline_mode = #tpu.pipeline_mode<synchronous>, transform_indices = @transform_6, window_bounds = array<i64: 64, 1>}, {transform_indices = @transform_7, window_bounds = array<i64: 1, 8, 2>}]} {
    %c0_i32 = arith.constant 0 : i32
    %0 = arith.cmpi eq, %arg1, %c0_i32 : i32
    %1 = arith.extui %0 : i1 to i32
    %c0_i32_0 = arith.constant 0 : i32
    %2 = arith.cmpi ne, %1, %c0_i32_0 : i32
    scf.if %2 {
      %cst_27 = arith.constant 0.000000e+00 : f32
      %42 = vector.broadcast %cst_27 : f32 to vector<1x8x2xf32>
      %c0_28 = arith.constant 0 : index
      %c0_29 = arith.constant 0 : index
      %c0_30 = arith.constant 0 : index
      %43 = vector.load %arg9[%c0_28, %c0_29, %c0_30] : memref<1x8x2xf32, #tpu.memory_space<vmem>>, vector<1x8x2xf32>
      tpu.vector_store %arg9[%c0_28, %c0_29, %c0_30], %42 {strides = array<i32>} : memref<1x8x2xf32, #tpu.memory_space<vmem>>, vector<1x8x2xf32>,
    } else {
    }
    %c0 = arith.constant 0 : index
    %c0_1 = arith.constant 0 : index
    %3 = vector.load %arg2[%c0, %c0_1] : memref<1000x128xbf16, #tpu.memory_space<vmem>>, vector<1000x128xbf16>
    %c0_2 = arith.constant 0 : index
    %c0_3 = arith.constant 0 : index
    %4 = vector.load %arg4[%c0_2, %c0_3] : memref<128x256xbf16, #tpu.memory_space<vmem>>, vector<128x256xbf16>
    %cst = arith.constant dense<0.000000e+00> : vector<1000x256xf32>
    %5 = tpu.matmul %3, %4, %cst {dimension_numbers = #tpu.dot_dimension_numbers<[1], [0], [0], [1], [0, 0, 1, 1], [], []>} : vector<1000x128xbf16>, vector<128x256xbf16>, vector<1000x256xf32> -> vector<1000x256xf32>
    %c0_4 = arith.constant 0 : index
    %c0_5 = arith.constant 0 : index
    %6 = vector.load %arg5[%c0_4, %c0_5] : memref<1x256xf32, #tpu.memory_space<vmem>>, vector<1x256xf32>
    %7 = vector.broadcast %6 : vector<1x256xf32> to vector<1000x256xf32>
    %8 = arith.addf %5, %7 : vector<1000x256xf32>
    %cst_6 = arith.constant 0.000000e+00 : f32
    %9 = vector.broadcast %cst_6 : f32 to vector<1000x256xf32>
    %10 = arith.maximumf %8, %9 : vector<1000x256xf32>
    %11 = arith.truncf %10 : vector<1000x256xf32> to vector<1000x256xbf16>
    %c0_7 = arith.constant 0 : index
    %c0_8 = arith.constant 0 : index
    %12 = vector.load %arg6[%c0_7, %c0_8] : memref<256x64xbf16, #tpu.memory_space<vmem>>, vector<256x64xbf16>
    %cst_9 = arith.constant dense<0.000000e+00> : vector<1000x64xf32>
    %13 = tpu.matmul %11, %12, %cst_9 {dimension_numbers = #tpu.dot_dimension_numbers<[1], [0], [0], [1], [0, 0, 1, 1], [], []>} : vector<1000x256xbf16>, vector<256x64xbf16>, vector<1000x64xf32> -> vector<1000x64xf32>
    %c0_10 = arith.constant 0 : index
    %c0_11 = arith.constant 0 : index
    %14 = vector.load %arg7[%c0_10, %c0_11] : memref<1x64xf32, #tpu.memory_space<vmem>>, vector<1x64xf32>
    %15 = vector.broadcast %14 : vector<1x64xf32> to vector<1000x64xf32>
    %16 = arith.addf %13, %15 : vector<1000x64xf32>
    %cst_12 = arith.constant 0.000000e+00 : f32
    %17 = vector.broadcast %cst_12 : f32 to vector<1000x64xf32>
    %18 = arith.maximumf %16, %17 : vector<1000x64xf32>
    %19 = arith.truncf %18 : vector<1000x64xf32> to vector<1000x64xbf16>
    %c0_13 = arith.constant 0 : index
    %c0_14 = arith.constant 0 : index
    %20 = vector.load %arg8[%c0_13, %c0_14] : memref<64x1xbf16, #tpu.memory_space<vmem>>, vector<64x1xbf16>
    %cst_15 = arith.constant dense<0.000000e+00> : vector<1000x1xf32>
    %21 = tpu.matmul %19, %20, %cst_15 {dimension_numbers = #tpu.dot_dimension_numbers<[1], [0], [0], [1], [0, 0, 1, 1], [], []>} : vector<1000x64xbf16>, vector<64x1xbf16>, vector<1000x1xf32> -> vector<1000x1xf32>
    %22 = tpu.iota {dimensions = array<i32: 0>} : vector<8x1000xi32>
    %c0_16 = arith.constant 0 : index
    %c0_17 = arith.constant 0 : index
    %23 = vector.load %arg3[%c0_16, %c0_17] : memref<1x1000xi32, #tpu.memory_space<vmem>>, vector<1x1000xi32>
    %24 = vector.broadcast %23 : vector<1x1000xi32> to vector<8x1000xi32>
    %25 = arith.cmpi eq, %22, %24 : vector<8x1000xi32>
    %26 = arith.extui %25 : vector<8x1000xi1> to vector<8x1000xi32>
    %27 = arith.sitofp %26 : vector<8x1000xi32> to vector<8x1000xf32>
    %28 = arith.truncf %27 : vector<8x1000xf32> to vector<8x1000xbf16>
    %29 = tpu.iota {dimensions = array<i32: 1>} : vector<1000x2xi32>
    %c0_i32_18 = arith.constant 0 : i32
    %30 = vector.broadcast %c0_i32_18 : i32 to vector<1000x2xi32>
    %31 = arith.cmpi eq, %29, %30 : vector<1000x2xi32>
    %cst_19 = arith.constant 1.000000e+00 : f32
    %32 = vector.shape_cast %21 : vector<1000x1xf32> to vector<1000x1xf32>
    %33 = vector.broadcast %32 : vector<1000x1xf32> to vector<1000x2xf32>
    %34 = vector.broadcast %cst_19 : f32 to vector<1000x2xf32>
    %35 = arith.select %31, %33, %34 : vector<1000x2xi1>, vector<1000x2xf32>
    %36 = arith.truncf %35 : vector<1000x2xf32> to vector<1000x2xbf16>
    %c0_20 = arith.constant 0 : index
    %c0_21 = arith.constant 0 : index
    %c0_22 = arith.constant 0 : index
    %37 = vector.load %arg9[%c0_20, %c0_21, %c0_22] : memref<1x8x2xf32, #tpu.memory_space<vmem>>, vector<1x8x2xf32>
    %cst_23 = arith.constant dense<0.000000e+00> : vector<8x2xf32>
    %38 = tpu.matmul %28, %36, %cst_23 {dimension_numbers = #tpu.dot_dimension_numbers<[1], [0], [0], [1], [0, 0, 1, 1], [], []>} : vector<8x1000xbf16>, vector<1000x2xbf16>, vector<8x2xf32> -> vector<8x2xf32>
    %39 = vector.shape_cast %38 : vector<8x2xf32> to vector<1x8x2xf32>
    %40 = arith.addf %37, %39 : vector<1x8x2xf32>
    %c0_24 = arith.constant 0 : index
    %c0_25 = arith.constant 0 : index
    %c0_26 = arith.constant 0 : index
    %41 = vector.load %arg9[%c0_24, %c0_25, %c0_26] : memref<1x8x2xf32, #tpu.memory_space<vmem>>, vector<1x8x2xf32>
    tpu.vector_store %arg9[%c0_24, %c0_25, %c0_26], %40 {strides = array<i32>} : memref<1x8x2xf32, #tpu.memory_space<vmem>>, vector<1x8x2xf32>,
    return
  }
  func.func @transform_0(%arg0: i32, %arg1: i32) -> (i32, i32) {
    %c1_i32 = arith.constant 1 : i32
    %0 = arith.muli %arg0, %c1_i32 : i32
    %1 = arith.addi %0, %arg1 : i32
    %c0_i32 = arith.constant 0 : i32
    %c0_i32_0 = arith.constant 0 : i32
    return %1, %c0_i32 : i32, i32
  }
  func.func @transform_1(%arg0: i32, %arg1: i32) -> (i32, i32) {
    %c1_i32 = arith.constant 1 : i32
    %0 = arith.muli %arg0, %c1_i32 : i32
    %1 = arith.addi %0, %arg1 : i32
    %c0_i32 = arith.constant 0 : i32
    %c0_i32_0 = arith.constant 0 : i32
    return %c0_i32, %1 : i32, i32
  }
  func.func @transform_2(%arg0: i32, %arg1: i32) -> (i32, i32) {
    %c0_i32 = arith.constant 0 : i32
    %c0_i32_0 = arith.constant 0 : i32
    %c0_i32_1 = arith.constant 0 : i32
    return %c0_i32, %c0_i32_0 : i32, i32
  }
  func.func @transform_3(%arg0: i32, %arg1: i32) -> (i32, i32) {
    %c0_i32 = arith.constant 0 : i32
    %c0_i32_0 = arith.constant 0 : i32
    %c0_i32_1 = arith.constant 0 : i32
    return %c0_i32, %c0_i32_0 : i32, i32
  }
  func.func @transform_4(%arg0: i32, %arg1: i32) -> (i32, i32) {
    %c0_i32 = arith.constant 0 : i32
    %c0_i32_0 = arith.constant 0 : i32
    %c0_i32_1 = arith.constant 0 : i32
    return %c0_i32, %c0_i32_0 : i32, i32
  }
  func.func @transform_5(%arg0: i32, %arg1: i32) -> (i32, i32) {
    %c0_i32 = arith.constant 0 : i32
    %c0_i32_0 = arith.constant 0 : i32
    %c0_i32_1 = arith.constant 0 : i32
    return %c0_i32, %c0_i32_0 : i32, i32
  }
  func.func @transform_6(%arg0: i32, %arg1: i32) -> (i32, i32) {
    %c0_i32 = arith.constant 0 : i32
    %c0_i32_0 = arith.constant 0 : i32
    %c0_i32_1 = arith.constant 0 : i32
    return %c0_i32, %c0_i32_0 : i32, i32
  }
  func.func @transform_7(%arg0: i32, %arg1: i32) -> (i32, i32, i32) {
    %c0_i32 = arith.constant 0 : i32
    %c0_i32_0 = arith.constant 0 : i32
    %c0_i32_1 = arith.constant 0 : i32
    return %arg0, %c0_i32, %c0_i32_0 : i32, i32, i32
  }
}

</mosaic_0001>

<llo_original>
// kernel: tpu_custom_call.1
$region0: #{tpu_custom_call.1}
  #allocation0 [shape = 'u32[]', space=smem, size = 0x4, offset = 0x4, fixed_abs, tag = 'smem constant byte address 0x4 - core index']
  #allocation1 [shape = 'u32[144,128]{1,0:T(1,128)}', space=vmem, size = 0x12000, scoped, tag = 'internal scratch']
  %s0 = inlined_call_operand.hbm [shape: bf16[1000,128], index: 0, kind: input, shape index: {}]
  %s1 = inlined_call_operand.vmem [shape: s32[1,1000], index: 1, kind: input, shape index: {}]
  %s2 = inlined_call_operand.vmem [shape: bf16[128,256], index: 2, kind: input, shape index: {}]
  %s3 = inlined_call_operand.vmem [shape: f32[1,256], index: 3, kind: input, shape index: {}]
  %s4 = inlined_call_operand.vmem [shape: bf16[256,64], index: 4, kind: input, shape index: {}]
  %s5 = inlined_call_operand.vmem [shape: f32[1,64], index: 5, kind: input, shape index: {}]
  %s6 = inlined_call_operand.vmem [shape: bf16[64,1], index: 6, kind: input, shape index: {}]
  %s7 = inlined_call_operand.vmem [shape: f32[1,8,2], index: 7, kind: output, shape index: {}]
  %s8 = sld [smem:[#allocation0]]
  $region46: #{tpu_custom_call.1} parent=0
    _
  %s10 = ssub.s32 1, %s8
  %s11 = scalar_select 0, %s10, %s8
  $region1: #{tpu_custom_call.1} parent=0
    #allocation2 [shape = 'u8[256000]{0}', space=vmem, size = 0x3e800, scoped, tag = 'input window, operand 0, single buffered']
    #allocation3 [shape = 's32[1]{0}', space=sflag, size = 0x4, scoped, tag = 'scoped memory for tpu_custom_call.1']
    %12 = vsyncpa [#allocation3], 0
    // Predicated region
    $region2: #{tpu_custom_call.1} parent=1 // pred_check
      _
    $region3: #{tpu_custom_call.1} parent=1 // pred_check_branch
      %14 = sbr.rel (0) target = $region5
    $region4: #{tpu_custom_call.1} parent=1 // pred_region
      %s15 = sadd.s32 0, 0
      %s16 = smul.u32 125, %s15
      %s18 = ssub.s32 8000, 8000
      %19 = vsyncadd [#allocation3], %s18
      %s20 = smul.addr %s16, 64
      %s21 = scalar_lea.hbm %s0, %s20
      %s22 = sshll.u32 [#allocation2], 4
      %s23 = int_to_ptr.vmem [resolvable:$true] %s22
      %28 = dma.hbm_to_vmem [thread:$0]  %s21, 8000, %s23, [#allocation3], 64, 64, 4
    $region5: #{tpu_custom_call.1} parent=1 // pred_fallthru
      _
    // Predicated region
    $region6: #{tpu_custom_call.1} parent=1 // pred_check
      _
    $region7: #{tpu_custom_call.1} parent=1 // pred_check_branch
      %30 = sbr.rel (0) target = $region9
    $region8: #{tpu_custom_call.1} parent=1 // pred_region
      %s31 = sadd.s32 0, 0
      %s32 = smul.u32 8, %s31
      %p33 = scmp.lt.s32.totalorder %s32, 7
      %s34 = scalar_select %p33, %s32, 7
      %s35 = scalar_lea.vmem %s1, %s34
      %s36 = sadd.s32 0, 0
      %s37 = smul.u32 8, %s36
    $region9: #{tpu_custom_call.1} parent=1 // pred_fallthru
      _
    // Predicated region
    $region10: #{tpu_custom_call.1} parent=1 // pred_check
      _
    $region11: #{tpu_custom_call.1} parent=1 // pred_check_branch
      %39 = sbr.rel (0) target = $region13
    $region12: #{tpu_custom_call.1} parent=1 // pred_region
      _
    $region13: #{tpu_custom_call.1} parent=1 // pred_fallthru
      _
    // Predicated region
    $region14: #{tpu_custom_call.1} parent=1 // pred_check
      _
    $region15: #{tpu_custom_call.1} parent=1 // pred_check_branch
      %41 = sbr.rel (0) target = $region17
    $region16: #{tpu_custom_call.1} parent=1 // pred_region
      _
    $region17: #{tpu_custom_call.1} parent=1 // pred_fallthru
      _
    // Predicated region
    $region18: #{tpu_custom_call.1} parent=1 // pred_check
      _
    $region19: #{tpu_custom_call.1} parent=1 // pred_check_branch
      %43 = sbr.rel (0) target = $region21
    $region20: #{tpu_custom_call.1} parent=1 // pred_region
      _
    $region21: #{tpu_custom_call.1} parent=1 // pred_fallthru
      _
    // Predicated region
    $region22: #{tpu_custom_call.1} parent=1 // pred_check
      _
    $region23: #{tpu_custom_call.1} parent=1 // pred_check_branch
      %45 = sbr.rel (0) target = $region25
    $region24: #{tpu_custom_call.1} parent=1 // pred_region
      _
    $region25: #{tpu_custom_call.1} parent=1 // pred_fallthru
      _
    // Predicated region
    $region26: #{tpu_custom_call.1} parent=1 // pred_check
      _
    $region27: #{tpu_custom_call.1} parent=1 // pred_check_branch
      %47 = sbr.rel (0) target = $region29
    $region28: #{tpu_custom_call.1} parent=1 // pred_region
      _
    $region29: #{tpu_custom_call.1} parent=1 // pred_fallthru
      _
    // Predicated region
    $region30: #{tpu_custom_call.1} parent=1 // pred_check
      _
    $region31: #{tpu_custom_call.1} parent=1 // pred_check_branch
      %49 = sbr.rel (0) target = $region33
    $region32: #{tpu_custom_call.1} parent=1 // pred_region
      %50 = dma.done [#allocation3], 8000
    $region33: #{tpu_custom_call.1} parent=1 // pred_fallthru
      _
    %s51 = sadd.s32 0, 0
    %s52 = smul.u32 8, %s51
    %p53 = scmp.lt.s32.totalorder %s52, 7
    %s54 = scalar_select %p53, %s52, 7
    %s55 = scalar_lea.vmem %s1, %s54
    %s56 = sadd.s32 0, 0
    %s57 = smul.u32 125, %s56
    %s58 = sadd.s32 0, 0
    %s59 = smul.u32 8, %s58
    %p60 = scmp.lt.s32.totalorder %s59, 7
    %s61 = scalar_select %p60, %s59, 7
    %s62 = scalar_lea.vmem %s1, %s61
    %s63 = sadd.s32 0, 0
    %s64 = smul.u32 8, %s63
    %p66 = scmp.eq.s32.totalorder 0, 0
    // Predicated region
    $region34: #{tpu_custom_call.1} parent=1 // pred_check
      %p67 = pneg %p66
    $region35: #{tpu_custom_call.1} parent=1 // pred_check_branch
      %69 = sbr.rel (%p67) target = $region37
    $region36: #{tpu_custom_call.1} parent=1 // pred_region
      %vm70 = vcmask 15360
      %71 = vst.msk [vmem:[%s7] sm:$0xff] %vm70, 0.0
    $region37: #{tpu_custom_call.1} parent=1 // pred_fallthru
      _
    %v72 = vld [vmem:[#allocation2] sm:$0xf]
    %v73 = vld [vmem:[#allocation2 + $0x4] sm:$0xf]
    %v74 = vld [vmem:[#allocation2 + $0x8] sm:$0xf]
    %v75 = vld [vmem:[#allocation2 + $0xc] sm:$0xf]
    %v76 = vld [vmem:[#allocation2 + $0x10] sm:$0xf]
    %v77 = vld [vmem:[#allocation2 + $0x14] sm:$0xf]
    %v78 = vld [vmem:[#allocation2 + $0x18] sm:$0xf]
    %v79 = vld [vmem:[#allocation2 + $0x1c] sm:$0xf]
    %v80 = vld [vmem:[#allocation2 + $0x20] sm:$0xf]
    %v81 = vld [vmem:[#allocation2 + $0x24] sm:$0xf]
    %v82 = vld [vmem:[#allocation2 + $0x28] sm:$0xf]
    %v83 = vld [vmem:[#allocation2 + $0x2c] sm:$0xf]
    %v84 = vld [vmem:[#allocation2 + $0x30] sm:$0xf]
    %v85 = vld [vmem:[#allocation2 + $0x34] sm:$0xf]
    %v86 = vld [vmem:[#allocation2 + $0x38] sm:$0xf]
    %v87 = vld [vmem:[#allocation2 + $0x3c] sm:$0xf]
    %v88 = vld [vmem:[#allocation2 + $0x40] sm:$0xf]
    %v89 = vld [vmem:[#allocation2 + $0x44] sm:$0xf]
    %v90 = vld [vmem:[#allocation2 + $0x48] sm:$0xf]
    %v91 = vld [vmem:[#allocation2 + $0x4c] sm:$0xf]
    %v92 = vld [vmem:[#allocation2 + $0x50] sm:$0xf]
    %v93 = vld [vmem:[#allocation2 + $0x54] sm:$0xf]
    %v94 = vld [vmem:[#allocation2 + $0x58] sm:$0xf]
    %v95 = vld [vmem:[#allocation2 + $0x5c] sm:$0xf]
    %v96 = vld [vmem:[#allocation2 + $0x60] sm:$0xf]
    %v97 = vld [vmem:[#allocation2 + $0x64] sm:$0xf]
    %v98 = vld [vmem:[#allocation2 + $0x68] sm:$0xf]
    %v99 = vld [vmem:[#allocation2 + $0x6c] sm:$0xf]
    %v100 = vld [vmem:[#allocation2 + $0x70] sm:$0xf]
    %v101 = vld [vmem:[#allocation2 + $0x74] sm:$0xf]
    %v102 = vld [vmem:[#allocation2 + $0x78] sm:$0xf]
    %v103 = vld [vmem:[#allocation2 + $0x7c] sm:$0xf]
    %v104 = vld [vmem:[#allocation2 + $0x80] sm:$0xf]
    %v105 = vld [vmem:[#allocation2 + $0x84] sm:$0xf]
    %v106 = vld [vmem:[#allocation2 + $0x88] sm:$0xf]
    %v107 = vld [vmem:[#allocation2 + $0x8c] sm:$0xf]
    %v108 = vld [vmem:[#allocation2 + $0x90] sm:$0xf]
    %v109 = vld [vmem:[#allocation2 + $0x94] sm:$0xf]
    %v110 = vld [vmem:[#allocation2 + $0x98] sm:$0xf]
    %v111 = vld [vmem:[#allocation2 + $0x9c] sm:$0xf]
    %v112 = vld [vmem:[#allocation2 + $0xa0] sm:$0xf]
    %v113 = vld [vmem:[#allocation2 + $0xa4] sm:$0xf]
    %v114 = vld [vmem:[#allocation2 + $0xa8] sm:$0xf]
    %v115 = vld [vmem:[#allocation2 + $0xac] sm:$0xf]
    %v116 = vld [vmem:[#allocation2 + $0xb0] sm:$0xf]
    %v117 = vld [vmem:[#allocation2 + $0xb4] sm:$0xf]
    %v118 = vld [vmem:[#allocation2 + $0xb8] sm:$0xf]
    %v119 = vld [vmem:[#allocation2 + $0xbc] sm:$0xf]
    %v120 = vld [vmem:[#allocation2 + $0xc0] sm:$0xf]
    %v121 = vld [vmem:[#allocation2 + $0xc4] sm:$0xf]
    %v122 = vld [vmem:[#allocation2 + $0xc8] sm:$0xf]
    %v123 = vld [vmem:[#allocation2 + $0xcc] sm:$0xf]
    %v124 = vld [vmem:[#allocation2 + $0xd0] sm:$0xf]
    %v125 = vld [vmem:[#allocation2 + $0xd4] sm:$0xf]
    %v126 = vld [vmem:[#allocation2 + $0xd8] sm:$0xf]
    %v127 = vld [vmem:[#allocation2 + $0xdc] sm:$0xf]
    %v128 = vld [vmem:[#allocation2 + $0xe0] sm:$0xf]
    %v129 = vld [vmem:[#allocation2 + $0xe4] sm:$0xf]
    %v130 = vld [vmem:[#allocation2 + $0xe8] sm:$0xf]
    %v131 = vld [vmem:[#allocation2 + $0xec] sm:$0xf]
    %v132 = vld [vmem:[#allocation2 + $0xf0] sm:$0xf]
    %v133 = vld [vmem:[#allocation2 + $0xf4] sm:$0xf]
    %v134 = vld [vmem:[#allocation2 + $0xf8] sm:$0xf]
    %v135 = vld [vmem:[#allocation2 + $0xfc] sm:$0xf]
    %v136 = vld [vmem:[#allocation2 + $0x100] sm:$0xf]
    %v137 = vld [vmem:[#allocation2 + $0x104] sm:$0xf]
    %v138 = vld [vmem:[#allocation2 + $0x108] sm:$0xf]
    %v139 = vld [vmem:[#allocation2 + $0x10c] sm:$0xf]
    %v140 = vld [vmem:[#allocation2 + $0x110] sm:$0xf]
    %v141 = vld [vmem:[#allocation2 + $0x114] sm:$0xf]
    %v142 = vld [vmem:[#allocation2 + $0x118] sm:$0xf]
    %v143 = vld [vmem:[#allocation2 + $0x11c] sm:$0xf]
    %v144 = vld [vmem:[#allocation2 + $0x120] sm:$0xf]
    %v145 = vld [vmem:[#allocation2 + $0x124] sm:$0xf]
    %v146 = vld [vmem:[#allocation2 + $0x128] sm:$0xf]
    %v147 = vld [vmem:[#allocation2 + $0x12c] sm:$0xf]
    %v148 = vld [vmem:[#allocation2 + $0x130] sm:$0xf]
    %v149 = vld [vmem:[#allocation2 + $0x134] sm:$0xf]
    %v150 = vld [vmem:[#allocation2 + $0x138] sm:$0xf]
    %v151 = vld [vmem:[#allocation2 + $0x13c] sm:$0xf]
    %v152 = vld [vmem:[#allocation2 + $0x140] sm:$0xf]
    %v153 = vld [vmem:[#allocation2 + $0x144] sm:$0xf]
    %v154 = vld [vmem:[#allocation2 + $0x148] sm:$0xf]
    %v155 = vld [vmem:[#allocation2 + $0x14c] sm:$0xf]
    %v156 = vld [vmem:[#allocation2 + $0x150] sm:$0xf]
    %v157 = vld [vmem:[#allocation2 + $0x154] sm:$0xf]
    %v158 = vld [vmem:[#allocation2 + $0x158] sm:$0xf]
    %v159 = vld [vmem:[#allocation2 + $0x15c] sm:$0xf]
    %v160 = vld [vmem:[#allocation2 + $0x160] sm:$0xf]
    %v161 = vld [vmem:[#allocation2 + $0x164] sm:$0xf]
    %v162 = vld [vmem:[#allocation2 + $0x168] sm:$0xf]
    %v163 = vld [vmem:[#allocation2 + $0x16c] sm:$0xf]
    %v164 = vld [vmem:[#allocation2 + $0x170] sm:$0xf]
    %v165 = vld [vmem:[#allocation2 + $0x174] sm:$0xf]
    %v166 = vld [vmem:[#allocation2 + $0x178] sm:$0xf]
    %v167 = vld [vmem:[#allocation2 + $0x17c] sm:$0xf]
    %v168 = vld [vmem:[#allocation2 + $0x180] sm:$0xf]
    %v169 = vld [vmem:[#allocation2 + $0x184] sm:$0xf]
    %v170 = vld [vmem:[#allocation2 + $0x188] sm:$0xf]
    %v171 = vld [vmem:[#allocation2 + $0x18c] sm:$0xf]
    %v172 = vld [vmem:[#allocation2 + $0x190] sm:$0xf]
    %v173 = vld [vmem:[#allocation2 + $0x194] sm:$0xf]
    %v174 = vld [vmem:[#allocation2 + $0x198] sm:$0xf]
    %v175 = vld [vmem:[#allocation2 + $0x19c] sm:$0xf]
    %v176 = vld [vmem:[#allocation2 + $0x1a0] sm:$0xf]
    %v177 = vld [vmem:[#allocation2 + $0x1a4] sm:$0xf]
    %v178 = vld [vmem:[#allocation2 + $0x1a8] sm:$0xf]
    %v179 = vld [vmem:[#allocation2 + $0x1ac] sm:$0xf]
    %v180 = vld [vmem:[#allocation2 + $0x1b0] sm:$0xf]
    %v181 = vld [vmem:[#allocation2 + $0x1b4] sm:$0xf]
    %v182 = vld [vmem:[#allocation2 + $0x1b8] sm:$0xf]
    %v183 = vld [vmem:[#allocation2 + $0x1bc] sm:$0xf]
    %v184 = vld [vmem:[#allocation2 + $0x1c0] sm:$0xf]
    %v185 = vld [vmem:[#allocation2 + $0x1c4] sm:$0xf]
    %v186 = vld [vmem:[#allocation2 + $0x1c8] sm:$0xf]
    %v187 = vld [vmem:[#allocation2 + $0x1cc] sm:$0xf]
    %v188 = vld [vmem:[#allocation2 + $0x1d0] sm:$0xf]
    %v189 = vld [vmem:[#allocation2 + $0x1d4] sm:$0xf]
    %v190 = vld [vmem:[#allocation2 + $0x1d8] sm:$0xf]
    %v191 = vld [vmem:[#allocation2 + $0x1dc] sm:$0xf]
    %v192 = vld [vmem:[#allocation2 + $0x1e0] sm:$0xf]
    %v193 = vld [vmem:[#allocation2 + $0x1e4] sm:$0xf]
    %v194 = vld [vmem:[#allocation2 + $0x1e8] sm:$0xf]
    %v195 = vld [vmem:[#allocation2 + $0x1ec] sm:$0xf]
    %v196 = vld [vmem:[#allocation2 + $0x1f0] sm:$0xf]
    %v197 = vld [vmem:[%s2] sm:$0xff]
    %v198 = vld [vmem:[%s2 + $0x8] sm:$0xff]
    %v199 = vld [vmem:[%s2 + $0x10] sm:$0xff]
    %v200 = vld [vmem:[%s2 + $0x18] sm:$0xff]
    %v201 = vld [vmem:[%s2 + $0x20] sm:$0xff]
    %v202 = vld [vmem:[%s2 + $0x28] sm:$0xff]
    %v203 = vld [vmem:[%s2 + $0x30] sm:$0xff]
    %v204 = vld [vmem:[%s2 + $0x38] sm:$0xff]
    %v205 = vld [vmem:[%s2 + $0x40] sm:$0xff]
    %v206 = vld [vmem:[%s2 + $0x48] sm:$0xff]
    %v207 = vld [vmem:[%s2 + $0x50] sm:$0xff]
    %v208 = vld [vmem:[%s2 + $0x58] sm:$0xff]
    %v209 = vld [vmem:[%s2 + $0x60] sm:$0xff]
    %v210 = vld [vmem:[%s2 + $0x68] sm:$0xff]
    %v211 = vld [vmem:[%s2 + $0x70] sm:$0xff]
    %v212 = vld [vmem:[%s2 + $0x78] sm:$0xff]
    %v213 = vld [vmem:[%s3] sm:$0x3]
    %v215 = vlaneseq
    %v216 = vshrl.u32 %v215, 7
    %v217 = vsub.s32 0, %v216
    %v218 = vrot.slane %v213, %v217
    %v219 = vlaneseq
    %v220 = vshrl.u32 %v219, 7
    %v221 = vsub.s32 1, %v220
    %v222 = vrot.slane %v213, %v221
    %v350 = vunpack.c.l.b16 %v72
    %v351 = vunpack.c.l.b16 %v73
    %v352 = vunpack.c.l.b16 %v74
    %v353 = vunpack.c.l.b16 %v75
    %v354 = vunpack.c.l.b16 %v76
    %v355 = vunpack.c.l.b16 %v77
    %v356 = vunpack.c.l.b16 %v78
    %v357 = vunpack.c.l.b16 %v79
    %v358 = vunpack.c.l.b16 %v80
    %v359 = vunpack.c.l.b16 %v81
    %v360 = vunpack.c.l.b16 %v82
    %v361 = vunpack.c.l.b16 %v83
    %v362 = vunpack.c.l.b16 %v84
    %v363 = vunpack.c.l.b16 %v85
    %v364 = vunpack.c.l.b16 %v86
    %v365 = vunpack.c.l.b16 %v87
    %v366 = vunpack.c.l.b16 %v88
    %v367 = vunpack.c.l.b16 %v89
    %v368 = vunpack.c.l.b16 %v90
    %v369 = vunpack.c.l.b16 %v91
    %v370 = vunpack.c.l.b16 %v92
    %v371 = vunpack.c.l.b16 %v93
    %v372 = vunpack.c.l.b16 %v94
    %v373 = vunpack.c.l.b16 %v95
    %v374 = vunpack.c.l.b16 %v96
    %v375 = vunpack.c.l.b16 %v97
    %v376 = vunpack.c.l.b16 %v98
    %v377 = vunpack.c.l.b16 %v99
    %v378 = vunpack.c.l.b16 %v100
    %v379 = vunpack.c.l.b16 %v101
    %v380 = vunpack.c.l.b16 %v102
    %v381 = vunpack.c.l.b16 %v103
    %v382 = vunpack.c.l.b16 %v104
    %v383 = vunpack.c.l.b16 %v105
    %v384 = vunpack.c.l.b16 %v106
    %v385 = vunpack.c.l.b16 %v107
    %v386 = vunpack.c.l.b16 %v108
    %v387 = vunpack.c.l.b16 %v109
    %v388 = vunpack.c.l.b16 %v110
    %v389 = vunpack.c.l.b16 %v111
    %v390 = vunpack.c.l.b16 %v112
    %v391 = vunpack.c.l.b16 %v113
    %v392 = vunpack.c.l.b16 %v114
    %v393 = vunpack.c.l.b16 %v115
    %v394 = vunpack.c.l.b16 %v116
    %v395 = vunpack.c.l.b16 %v117
    %v396 = vunpack.c.l.b16 %v118
    %v397 = vunpack.c.l.b16 %v119
    %v398 = vunpack.c.l.b16 %v120
    %v399 = vunpack.c.l.b16 %v121
    %v400 = vunpack.c.l.b16 %v122
    %v401 = vunpack.c.l.b16 %v123
    %v402 = vunpack.c.l.b16 %v124
    %v403 = vunpack.c.l.b16 %v125
    %v404 = vunpack.c.l.b16 %v126
    %v405 = vunpack.c.l.b16 %v127
    %v406 = vunpack.c.l.b16 %v128
    %v407 = vunpack.c.l.b16 %v129
    %v408 = vunpack.c.l.b16 %v130
    %v409 = vunpack.c.l.b16 %v131
    %v410 = vunpack.c.l.b16 %v132
    %v411 = vunpack.c.l.b16 %v133
    %v412 = vunpack.c.l.b16 %v134
    %v413 = vunpack.c.l.b16 %v135
    %v414 = vunpack.c.l.b16 %v136
    %v415 = vunpack.c.l.b16 %v137
    %v416 = vunpack.c.l.b16 %v138
    %v417 = vunpack.c.l.b16 %v139
    %v418 = vunpack.c.l.b16 %v140
    %v419 = vunpack.c.l.b16 %v141
    %v420 = vunpack.c.l.b16 %v142
    %v421 = vunpack.c.l.b16 %v143
    %v422 = vunpack.c.l.b16 %v144
    %v423 = vunpack.c.l.b16 %v145
    %v424 = vunpack.c.l.b16 %v146
    %v425 = vunpack.c.l.b16 %v147
    %v426 = vunpack.c.l.b16 %v148
    %v427 = vunpack.c.l.b16 %v149
    %v428 = vunpack.c.l.b16 %v150
    %v429 = vunpack.c.l.b16 %v151
    %v430 = vunpack.c.l.b16 %v152
    %v431 = vunpack.c.l.b16 %v153
    %v432 = vunpack.c.l.b16 %v154
    %v433 = vunpack.c.l.b16 %v155
    %v434 = vunpack.c.l.b16 %v156
    %v435 = vunpack.c.l.b16 %v157
    %v436 = vunpack.c.l.b16 %v158
    %v437 = vunpack.c.l.b16 %v159
    %v438 = vunpack.c.l.b16 %v160
    %v439 = vunpack.c.l.b16 %v161
    %v440 = vunpack.c.l.b16 %v162
    %v441 = vunpack.c.l.b16 %v163
    %v442 = vunpack.c.l.b16 %v164
    %v443 = vunpack.c.l.b16 %v165
    %v444 = vunpack.c.l.b16 %v166
    %v445 = vunpack.c.l.b16 %v167
    %v446 = vunpack.c.l.b16 %v168
    %v447 = vunpack.c.l.b16 %v169
    %v448 = vunpack.c.l.b16 %v170
    %v449 = vunpack.c.l.b16 %v171
    %v450 = vunpack.c.l.b16 %v172
    %v451 = vunpack.c.l.b16 %v173
    %v452 = vunpack.c.l.b16 %v174
    %v453 = vunpack.c.l.b16 %v175
    %v454 = vunpack.c.l.b16 %v176
    %v455 = vunpack.c.l.b16 %v177
    %v456 = vunpack.c.l.b16 %v178
    %v457 = vunpack.c.l.b16 %v179
    %v458 = vunpack.c.l.b16 %v180
    %v459 = vunpack.c.l.b16 %v181
    %v460 = vunpack.c.l.b16 %v182
    %v461 = vunpack.c.l.b16 %v183
    %v462 = vunpack.c.l.b16 %v184
    %v463 = vunpack.c.l.b16 %v185
    %v464 = vunpack.c.l.b16 %v186
    %v465 = vunpack.c.l.b16 %v187
    %v466 = vunpack.c.l.b16 %v188
    %v467 = vunpack.c.l.b16 %v189
    %v468 = vunpack.c.l.b16 %v190
    %v469 = vunpack.c.l.b16 %v191
    %v470 = vunpack.c.l.b16 %v192
    %v471 = vunpack.c.l.b16 %v193
    %v472 = vunpack.c.l.b16 %v194
    %v473 = vunpack.c.l.b16 %v195
    %v474 = vunpack.c.l.b16 %v196
    %v475 = vpack.c.b16 %v351, %v350
    %v476 = vpack.c.b16 %v353, %v352
    %v477 = vpack.c.b16 %v355, %v354
    %v478 = vpack.c.b16 %v357, %v356
    %v479 = vpack.c.b16 %v359, %v358
    %v480 = vpack.c.b16 %v361, %v360
    %v481 = vpack.c.b16 %v363, %v362
    %v482 = vpack.c.b16 %v365, %v364
    %v483 = vpack.c.b16 %v367, %v366
    %v484 = vpack.c.b16 %v369, %v368
    %v485 = vpack.c.b16 %v371, %v370
    %v486 = vpack.c.b16 %v373, %v372
    %v487 = vpack.c.b16 %v375, %v374
    %v488 = vpack.c.b16 %v377, %v376
    %v489 = vpack.c.b16 %v379, %v378
    %v490 = vpack.c.b16 %v381, %v380
    %v491 = vpack.c.b16 %v383, %v382
    %v492 = vpack.c.b16 %v385, %v384
    %v493 = vpack.c.b16 %v387, %v386
    %v494 = vpack.c.b16 %v389, %v388
    %v495 = vpack.c.b16 %v391, %v390
    %v496 = vpack.c.b16 %v393, %v392
    %v497 = vpack.c.b16 %v395, %v394
    %v498 = vpack.c.b16 %v397, %v396
    %v499 = vpack.c.b16 %v399, %v398
    %v500 = vpack.c.b16 %v401, %v400
    %v501 = vpack.c.b16 %v403, %v402
    %v502 = vpack.c.b16 %v405, %v404
    %v503 = vpack.c.b16 %v407, %v406
    %v504 = vpack.c.b16 %v409, %v408
    %v505 = vpack.c.b16 %v411, %v410
    %v506 = vpack.c.b16 %v413, %v412
    %v507 = vpack.c.b16 %v415, %v414
    %v508 = vpack.c.b16 %v417, %v416
    %v509 = vpack.c.b16 %v419, %v418
    %v510 = vpack.c.b16 %v421, %v420
    %v511 = vpack.c.b16 %v423, %v422
    %v512 = vpack.c.b16 %v425, %v424
    %v513 = vpack.c.b16 %v427, %v426
    %v514 = vpack.c.b16 %v429, %v428
    %v515 = vpack.c.b16 %v431, %v430
    %v516 = vpack.c.b16 %v433, %v432
    %v517 = vpack.c.b16 %v435, %v434
    %v518 = vpack.c.b16 %v437, %v436
    %v519 = vpack.c.b16 %v439, %v438
    %v520 = vpack.c.b16 %v441, %v440
    %v521 = vpack.c.b16 %v443, %v442
    %v522 = vpack.c.b16 %v445, %v444
    %v523 = vpack.c.b16 %v447, %v446
    %v524 = vpack.c.b16 %v449, %v448
    %v525 = vpack.c.b16 %v451, %v450
    %v526 = vpack.c.b16 %v453, %v452
    %v527 = vpack.c.b16 %v455, %v454
    %v528 = vpack.c.b16 %v457, %v456
    %v529 = vpack.c.b16 %v459, %v458
    %v530 = vpack.c.b16 %v461, %v460
    %v531 = vpack.c.b16 %v463, %v462
    %v532 = vpack.c.b16 %v465, %v464
    %v533 = vpack.c.b16 %v467, %v466
    %v534 = vpack.c.b16 %v469, %v468
    %v535 = vpack.c.b16 %v471, %v470
    %v536 = vpack.c.b16 %v473, %v472
    %v537 = vpack.c.b16 %v474, %v474
    %v617 = vunpack.c.l.b16 %v197
    %v618 = vunpack.c.h.b16 %v197
    %v619 = vunpack.c.l.b16 %v198
    %v620 = vunpack.c.h.b16 %v198
    %v621 = vunpack.c.l.b16 %v199
    %v622 = vunpack.c.h.b16 %v199
    %v623 = vunpack.c.l.b16 %v200
    %v624 = vunpack.c.h.b16 %v200
    %v625 = vunpack.c.l.b16 %v201
    %v626 = vunpack.c.h.b16 %v201
    %v627 = vunpack.c.l.b16 %v202
    %v628 = vunpack.c.h.b16 %v202
    %v629 = vunpack.c.l.b16 %v203
    %v630 = vunpack.c.h.b16 %v203
    %v631 = vunpack.c.l.b16 %v204
    %v632 = vunpack.c.h.b16 %v204
    %v633 = vunpack.c.l.b16 %v205
    %v634 = vunpack.c.h.b16 %v205
    %v635 = vunpack.c.l.b16 %v206
    %v636 = vunpack.c.h.b16 %v206
    %v637 = vunpack.c.l.b16 %v207
    %v638 = vunpack.c.h.b16 %v207
    %v639 = vunpack.c.l.b16 %v208
    %v640 = vunpack.c.h.b16 %v208
    %v641 = vunpack.c.l.b16 %v209
    %v642 = vunpack.c.h.b16 %v209
    %v643 = vunpack.c.l.b16 %v210
    %v644 = vunpack.c.h.b16 %v210
    %v645 = vunpack.c.l.b16 %v211
    %v646 = vunpack.c.h.b16 %v211
    %v647 = vunpack.c.l.b16 %v212
    %v648 = vunpack.c.h.b16 %v212
    %v649 = vpack.c.b16 %v619, %v617
    %v650 = vpack.c.b16 %v620, %v618
    %v651 = vpack.c.b16 %v623, %v621
    %v652 = vpack.c.b16 %v624, %v622
    %v653 = vpack.c.b16 %v627, %v625
    %v654 = vpack.c.b16 %v628, %v626
    %v655 = vpack.c.b16 %v631, %v629
    %v656 = vpack.c.b16 %v632, %v630
    %v657 = vpack.c.b16 %v635, %v633
    %v658 = vpack.c.b16 %v636, %v634
    %v659 = vpack.c.b16 %v639, %v637
    %v660 = vpack.c.b16 %v640, %v638
    %v661 = vpack.c.b16 %v643, %v641
    %v662 = vpack.c.b16 %v644, %v642
    %v663 = vpack.c.b16 %v647, %v645
    %v664 = vpack.c.b16 %v648, %v646
    %681 = vmatprep.subr.bf16.mxu0 %v664
    %682 = vmatpush1.bf16.msra.mxu0 %v663
    %683 = vmatprep.subr.bf16.mxu0 %v662
    %684 = vmatpush1.bf16.msra.mxu0 %v661
    %685 = vmatprep.subr.bf16.mxu0 %v660
    %686 = vmatpush1.bf16.msra.mxu0 %v659
    %687 = vmatprep.subr.bf16.mxu0 %v658
    %688 = vmatpush1.bf16.msra.mxu0 %v657
    %689 = vmatprep.subr.bf16.mxu0 %v656
    %690 = vmatpush1.bf16.msra.mxu0 %v655
    %691 = vmatprep.subr.bf16.mxu0 %v654
    %692 = vmatpush1.bf16.msra.mxu0 %v653
    %693 = vmatprep.subr.bf16.mxu0 %v652
    %694 = vmatpush1.bf16.msra.mxu0 %v651
    %695 = vmatprep.subr.bf16.mxu0 %v650
    %696 = vmatpush1.bf16.msra.mxu0 %v649
    %697 = vmatprep.subr.bf16.mxu0 0
    %698 = vmatpush2.bf16.msra.mxu0 0
    %699 = vmatprep.subr.bf16.mxu0 0
    %700 = vmatpush2.bf16.msra.mxu0 0
    %701 = vmatprep.subr.bf16.mxu0 0
    %702 = vmatpush2.bf16.msra.mxu0 0
    %703 = vmatprep.subr.bf16.mxu0 0
    %704 = vmatpush2.bf16.msra.mxu0 0
    %705 = vmatprep.subr.bf16.mxu0 0
    %706 = vmatpush2.bf16.msra.mxu0 0
    %707 = vmatprep.subr.bf16.mxu0 0
    %708 = vmatpush2.bf16.msra.mxu0 0
    %709 = vmatprep.subr.bf16.mxu0 0
    %710 = vmatpush2.bf16.msra.mxu0 0
    %711 = vmatprep.subr.bf16.mxu0 0
    %712 = vmatpush2.bf16.msra.mxu0 0
    %713 = vmatprep.mubr.bf16.mxu0 0
    %714 = vmatmul.mubr.bf16.gmra.mxu0 %v475
    %v715 = vpop.f32.mrf.mxu0
    %v716 = vadd.f32 %v218, %v715
    %v717 = vpop.f32.mrf.mxu0
    %v718 = vadd.f32 %v222, %v717
    %v719 = vpop.f32.mrf.mxu0
    %v720 = vadd.f32 %v218, %v719
    %v721 = vpop.f32.mrf.mxu0
    %v722 = vadd.f32 %v222, %v721
    %723 = vmatprep.mubr.bf16.mxu0 0
    %724 = vmatmul.mubr.bf16.gmra.mxu0 %v476
    %v725 = vpop.f32.mrf.mxu0
    %v726 = vadd.f32 %v218, %v725
    %v727 = vpop.f32.mrf.mxu0
    %v728 = vadd.f32 %v222, %v727
    %v729 = vpop.f32.mrf.mxu0
    %v730 = vadd.f32 %v218, %v729
    %v731 = vpop.f32.mrf.mxu0
    %v732 = vadd.f32 %v222, %v731
    %733 = vmatprep.mubr.bf16.mxu0 0
    %734 = vmatmul.mubr.bf16.gmra.mxu0 %v477
    %v735 = vpop.f32.mrf.mxu0
    %v736 = vadd.f32 %v218, %v735
    %v737 = vpop.f32.mrf.mxu0
    %v738 = vadd.f32 %v222, %v737
    %v739 = vpop.f32.mrf.mxu0
    %v740 = vadd.f32 %v218, %v739
    %v741 = vpop.f32.mrf.mxu0
    %v742 = vadd.f32 %v222, %v741
    %743 = vmatprep.mubr.bf16.mxu0 0
    %744 = vmatmul.mubr.bf16.gmra.mxu0 %v478
    %v745 = vpop.f32.mrf.mxu0
    %v746 = vadd.f32 %v218, %v745
    %v747 = vpop.f32.mrf.mxu0
    %v748 = vadd.f32 %v222, %v747
    %v749 = vpop.f32.mrf.mxu0
    %v750 = vadd.f32 %v218, %v749
    %v751 = vpop.f32.mrf.mxu0
    %v752 = vadd.f32 %v222, %v751
    %753 = vmatprep.mubr.bf16.mxu0 0
    %754 = vmatmul.mubr.bf16.gmra.mxu0 %v479
    %v755 = vpop.f32.mrf.mxu0
    %v756 = vadd.f32 %v218, %v755
    %v757 = vpop.f32.mrf.mxu0
    %v758 = vadd.f32 %v222, %v757
    %v759 = vpop.f32.mrf.mxu0
    %v760 = vadd.f32 %v218, %v759
    %v761 = vpop.f32.mrf.mxu0
    %v762 = vadd.f32 %v222, %v761
    %763 = vmatprep.mubr.bf16.mxu0 0
    %764 = vmatmul.mubr.bf16.gmra.mxu0 %v480
    %v765 = vpop.f32.mrf.mxu0
    %v766 = vadd.f32 %v218, %v765
    %v767 = vpop.f32.mrf.mxu0
    %v768 = vadd.f32 %v222, %v767
    %v769 = vpop.f32.mrf.mxu0
    %v770 = vadd.f32 %v218, %v769
    %v771 = vpop.f32.mrf.mxu0
    %v772 = vadd.f32 %v222, %v771
    %773 = vmatprep.mubr.bf16.mxu0 0
    %774 = vmatmul.mubr.bf16.gmra.mxu0 %v481
    %v775 = vpop.f32.mrf.mxu0
    %v776 = vadd.f32 %v218, %v775
    %v777 = vpop.f32.mrf.mxu0
    %v778 = vadd.f32 %v222, %v777
    %v779 = vpop.f32.mrf.mxu0
    %v780 = vadd.f32 %v218, %v779
    %v781 = vpop.f32.mrf.mxu0
    %v782 = vadd.f32 %v222, %v781
    %783 = vmatprep.mubr.bf16.mxu0 0
    %784 = vmatmul.mubr.bf16.gmra.mxu0 %v482
    %v785 = vpop.f32.mrf.mxu0
    %v786 = vadd.f32 %v218, %v785
    %v787 = vpop.f32.mrf.mxu0
    %v788 = vadd.f32 %v222, %v787
    %v789 = vpop.f32.mrf.mxu0
    %v790 = vadd.f32 %v218, %v789
    %v791 = vpop.f32.mrf.mxu0
    %v792 = vadd.f32 %v222, %v791
    %793 = vmatprep.mubr.bf16.mxu0 0
    %794 = vmatmul.mubr.bf16.gmra.mxu0 %v483
    %v795 = vpop.f32.mrf.mxu0
    %v796 = vadd.f32 %v218, %v795
    %v797 = vpop.f32.mrf.mxu0
    %v798 = vadd.f32 %v222, %v797
    %v799 = vpop.f32.mrf.mxu0
    %v800 = vadd.f32 %v218, %v799
    %v801 = vpop.f32.mrf.mxu0
    %v802 = vadd.f32 %v222, %v801
    %803 = vmatprep.mubr.bf16.mxu0 0
    %804 = vmatmul.mubr.bf16.gmra.mxu0 %v484
    %v805 = vpop.f32.mrf.mxu0
    %v806 = vadd.f32 %v218, %v805
    %v807 = vpop.f32.mrf.mxu0
    %v808 = vadd.f32 %v222, %v807
    %v809 = vpop.f32.mrf.mxu0
    %v810 = vadd.f32 %v218, %v809
    %v811 = vpop.f32.mrf.mxu0
    %v812 = vadd.f32 %v222, %v811
    %813 = vmatprep.mubr.bf16.mxu0 0
    %814 = vmatmul.mubr.bf16.gmra.mxu0 %v485
    %v815 = vpop.f32.mrf.mxu0
    %v816 = vadd.f32 %v218, %v815
    %v817 = vpop.f32.mrf.mxu0
    %v818 = vadd.f32 %v222, %v817
    %v819 = vpop.f32.mrf.mxu0
    %v820 = vadd.f32 %v218, %v819
    %v821 = vpop.f32.mrf.mxu0
    %v822 = vadd.f32 %v222, %v821
    %823 = vmatprep.mubr.bf16.mxu0 0
    %824 = vmatmul.mubr.bf16.gmra.mxu0 %v486
    %v825 = vpop.f32.mrf.mxu0
    %v826 = vadd.f32 %v218, %v825
    %v827 = vpop.f32.mrf.mxu0
    %v828 = vadd.f32 %v222, %v827
    %v829 = vpop.f32.mrf.mxu0
    %v830 = vadd.f32 %v218, %v829
    %v831 = vpop.f32.mrf.mxu0
    %v832 = vadd.f32 %v222, %v831
    %833 = vmatprep.mubr.bf16.mxu0 0
    %834 = vmatmul.mubr.bf16.gmra.mxu0 %v487
    %v835 = vpop.f32.mrf.mxu0
    %v836 = vadd.f32 %v218, %v835
    %v837 = vpop.f32.mrf.mxu0
    %v838 = vadd.f32 %v222, %v837
    %v839 = vpop.f32.mrf.mxu0
    %v840 = vadd.f32 %v218, %v839
    %v841 = vpop.f32.mrf.mxu0
    %v842 = vadd.f32 %v222, %v841
    %843 = vmatprep.mubr.bf16.mxu0 0
    %844 = vmatmul.mubr.bf16.gmra.mxu0 %v488
    %v845 = vpop.f32.mrf.mxu0
    %v846 = vadd.f32 %v218, %v845
    %v847 = vpop.f32.mrf.mxu0
    %v848 = vadd.f32 %v222, %v847
    %v849 = vpop.f32.mrf.mxu0
    %v850 = vadd.f32 %v218, %v849
    %v851 = vpop.f32.mrf.mxu0
    %v852 = vadd.f32 %v222, %v851
    %853 = vmatprep.mubr.bf16.mxu0 0
    %854 = vmatmul.mubr.bf16.gmra.mxu0 %v489
    %v855 = vpop.f32.mrf.mxu0
    %v856 = vadd.f32 %v218, %v855
    %v857 = vpop.f32.mrf.mxu0
    %v858 = vadd.f32 %v222, %v857
    %v859 = vpop.f32.mrf.mxu0
    %v860 = vadd.f32 %v218, %v859
    %v861 = vpop.f32.mrf.mxu0
    %v862 = vadd.f32 %v222, %v861
    %863 = vmatprep.mubr.bf16.mxu0 0
    %864 = vmatmul.mubr.bf16.gmra.mxu0 %v490
    %v865 = vpop.f32.mrf.mxu0
    %v866 = vadd.f32 %v218, %v865
    %v867 = vpop.f32.mrf.mxu0
    %v868 = vadd.f32 %v222, %v867
    %v869 = vpop.f32.mrf.mxu0
    %v870 = vadd.f32 %v218, %v869
    %v871 = vpop.f32.mrf.mxu0
    %v872 = vadd.f32 %v222, %v871
    %873 = vmatprep.mubr.bf16.mxu0 0
    %874 = vmatmul.mubr.bf16.gmra.mxu0 %v491
    %v875 = vpop.f32.mrf.mxu0
    %v876 = vadd.f32 %v218, %v875
    %v877 = vpop.f32.mrf.mxu0
    %v878 = vadd.f32 %v222, %v877
    %v879 = vpop.f32.mrf.mxu0
    %v880 = vadd.f32 %v218, %v879
    %v881 = vpop.f32.mrf.mxu0
    %v882 = vadd.f32 %v222, %v881
    %883 = vmatprep.mubr.bf16.mxu0 0
    %884 = vmatmul.mubr.bf16.gmra.mxu0 %v492
    %v885 = vpop.f32.mrf.mxu0
    %v886 = vadd.f32 %v218, %v885
    %v887 = vpop.f32.mrf.mxu0
    %v888 = vadd.f32 %v222, %v887
    %v889 = vpop.f32.mrf.mxu0
    %v890 = vadd.f32 %v218, %v889
    %v891 = vpop.f32.mrf.mxu0
    %v892 = vadd.f32 %v222, %v891
    %893 = vmatprep.mubr.bf16.mxu0 0
    %894 = vmatmul.mubr.bf16.gmra.mxu0 %v493
    %v895 = vpop.f32.mrf.mxu0
    %v896 = vadd.f32 %v218, %v895
    %v897 = vpop.f32.mrf.mxu0
    %v898 = vadd.f32 %v222, %v897
    %v899 = vpop.f32.mrf.mxu0
    %v900 = vadd.f32 %v218, %v899
    %v901 = vpop.f32.mrf.mxu0
    %v902 = vadd.f32 %v222, %v901
    %903 = vmatprep.mubr.bf16.mxu0 0
    %904 = vmatmul.mubr.bf16.gmra.mxu0 %v494
    %v905 = vpop.f32.mrf.mxu0
    %v906 = vadd.f32 %v218, %v905
    %v907 = vpop.f32.mrf.mxu0
    %v908 = vadd.f32 %v222, %v907
    %v909 = vpop.f32.mrf.mxu0
    %v910 = vadd.f32 %v218, %v909
    %v911 = vpop.f32.mrf.mxu0
    %v912 = vadd.f32 %v222, %v911
    %913 = vmatprep.mubr.bf16.mxu0 0
    %914 = vmatmul.mubr.bf16.gmra.mxu0 %v495
    %v915 = vpop.f32.mrf.mxu0
    %v916 = vadd.f32 %v218, %v915
    %v917 = vpop.f32.mrf.mxu0
    %v918 = vadd.f32 %v222, %v917
    %v919 = vpop.f32.mrf.mxu0
    %v920 = vadd.f32 %v218, %v919
    %v921 = vpop.f32.mrf.mxu0
    %v922 = vadd.f32 %v222, %v921
    %923 = vmatprep.mubr.bf16.mxu0 0
    %924 = vmatmul.mubr.bf16.gmra.mxu0 %v496
    %v925 = vpop.f32.mrf.mxu0
    %v926 = vadd.f32 %v218, %v925
    %v927 = vpop.f32.mrf.mxu0
    %v928 = vadd.f32 %v222, %v927
    %v929 = vpop.f32.mrf.mxu0
    %v930 = vadd.f32 %v218, %v929
    %v931 = vpop.f32.mrf.mxu0
    %v932 = vadd.f32 %v222, %v931
    %933 = vmatprep.mubr.bf16.mxu0 0
    %934 = vmatmul.mubr.bf16.gmra.mxu0 %v497
    %v935 = vpop.f32.mrf.mxu0
    %v936 = vadd.f32 %v218, %v935
    %v937 = vpop.f32.mrf.mxu0
    %v938 = vadd.f32 %v222, %v937
    %v939 = vpop.f32.mrf.mxu0
    %v940 = vadd.f32 %v218, %v939
    %v941 = vpop.f32.mrf.mxu0
    %v942 = vadd.f32 %v222, %v941
    %943 = vmatprep.mubr.bf16.mxu0 0
    %944 = vmatmul.mubr.bf16.gmra.mxu0 %v498
    %v945 = vpop.f32.mrf.mxu0
    %v946 = vadd.f32 %v218, %v945
    %v947 = vpop.f32.mrf.mxu0
    %v948 = vadd.f32 %v222, %v947
    %v949 = vpop.f32.mrf.mxu0
    %v950 = vadd.f32 %v218, %v949
    %v951 = vpop.f32.mrf.mxu0
    %v952 = vadd.f32 %v222, %v951
    %953 = vmatprep.mubr.bf16.mxu0 0
    %954 = vmatmul.mubr.bf16.gmra.mxu0 %v499
    %v955 = vpop.f32.mrf.mxu0
    %v956 = vadd.f32 %v218, %v955
    %v957 = vpop.f32.mrf.mxu0
    %v958 = vadd.f32 %v222, %v957
    %v959 = vpop.f32.mrf.mxu0
    %v960 = vadd.f32 %v218, %v959
    %v961 = vpop.f32.mrf.mxu0
    %v962 = vadd.f32 %v222, %v961
    %963 = vmatprep.mubr.bf16.mxu0 0
    %964 = vmatmul.mubr.bf16.gmra.mxu0 %v500
    %v965 = vpop.f32.mrf.mxu0
    %v966 = vadd.f32 %v218, %v965
    %v967 = vpop.f32.mrf.mxu0
    %v968 = vadd.f32 %v222, %v967
    %v969 = vpop.f32.mrf.mxu0
    %v970 = vadd.f32 %v218, %v969
    %v971 = vpop.f32.mrf.mxu0
    %v972 = vadd.f32 %v222, %v971
    %973 = vmatprep.mubr.bf16.mxu0 0
    %974 = vmatmul.mubr.bf16.gmra.mxu0 %v501
    %v975 = vpop.f32.mrf.mxu0
    %v976 = vadd.f32 %v218, %v975
    %v977 = vpop.f32.mrf.mxu0
    %v978 = vadd.f32 %v222, %v977
    %v979 = vpop.f32.mrf.mxu0
    %v980 = vadd.f32 %v218, %v979
    %v981 = vpop.f32.mrf.mxu0
    %v982 = vadd.f32 %v222, %v981
    %983 = vmatprep.mubr.bf16.mxu0 0
    %984 = vmatmul.mubr.bf16.gmra.mxu0 %v502
    %v985 = vpop.f32.mrf.mxu0
    %v986 = vadd.f32 %v218, %v985
    %v987 = vpop.f32.mrf.mxu0
    %v988 = vadd.f32 %v222, %v987
    %v989 = vpop.f32.mrf.mxu0
    %v990 = vadd.f32 %v218, %v989
    %v991 = vpop.f32.mrf.mxu0
    %v992 = vadd.f32 %v222, %v991
    %993 = vmatprep.mubr.bf16.mxu0 0
    %994 = vmatmul.mubr.bf16.gmra.mxu0 %v503
    %v995 = vpop.f32.mrf.mxu0
    %v996 = vadd.f32 %v218, %v995
    %v997 = vpop.f32.mrf.mxu0
    %v998 = vadd.f32 %v222, %v997
    %v999 = vpop.f32.mrf.mxu0
    %v1000 = vadd.f32 %v218, %v999
    %v1001 = vpop.f32.mrf.mxu0
    %v1002 = vadd.f32 %v222, %v1001
    %1003 = vmatprep.mubr.bf16.mxu0 0
    %1004 = vmatmul.mubr.bf16.gmra.mxu0 %v504
    %v1005 = vpop.f32.mrf.mxu0
    %v1006 = vadd.f32 %v218, %v1005
    %v1007 = vpop.f32.mrf.mxu0
    %v1008 = vadd.f32 %v222, %v1007
    %v1009 = vpop.f32.mrf.mxu0
    %v1010 = vadd.f32 %v218, %v1009
    %v1011 = vpop.f32.mrf.mxu0
    %v1012 = vadd.f32 %v222, %v1011
    %1013 = vmatprep.mubr.bf16.mxu0 0
    %1014 = vmatmul.mubr.bf16.gmra.mxu0 %v505
    %v1015 = vpop.f32.mrf.mxu0
    %v1016 = vadd.f32 %v218, %v1015
    %v1017 = vpop.f32.mrf.mxu0
    %v1018 = vadd.f32 %v222, %v1017
    %v1019 = vpop.f32.mrf.mxu0
    %v1020 = vadd.f32 %v218, %v1019
    %v1021 = vpop.f32.mrf.mxu0
    %v1022 = vadd.f32 %v222, %v1021
    %1023 = vmatprep.mubr.bf16.mxu0 0
    %1024 = vmatmul.mubr.bf16.gmra.mxu0 %v506
    %v1025 = vpop.f32.mrf.mxu0
    %v1026 = vadd.f32 %v218, %v1025
    %v1027 = vpop.f32.mrf.mxu0
    %v1028 = vadd.f32 %v222, %v1027
    %v1029 = vpop.f32.mrf.mxu0
    %v1030 = vadd.f32 %v218, %v1029
    %v1031 = vpop.f32.mrf.mxu0
    %v1032 = vadd.f32 %v222, %v1031
    %1033 = vmatprep.mubr.bf16.mxu0 0
    %1034 = vmatmul.mubr.bf16.gmra.mxu0 %v507
    %v1035 = vpop.f32.mrf.mxu0
    %v1036 = vadd.f32 %v218, %v1035
    %v1037 = vpop.f32.mrf.mxu0
    %v1038 = vadd.f32 %v222, %v1037
    %v1039 = vpop.f32.mrf.mxu0
    %v1040 = vadd.f32 %v218, %v1039
    %v1041 = vpop.f32.mrf.mxu0
    %v1042 = vadd.f32 %v222, %v1041
    %1043 = vmatprep.mubr.bf16.mxu0 0
    %1044 = vmatmul.mubr.bf16.gmra.mxu0 %v508
    %v1045 = vpop.f32.mrf.mxu0
    %v1046 = vadd.f32 %v218, %v1045
    %v1047 = vpop.f32.mrf.mxu0
    %v1048 = vadd.f32 %v222, %v1047
    %v1049 = vpop.f32.mrf.mxu0
    %v1050 = vadd.f32 %v218, %v1049
    %v1051 = vpop.f32.mrf.mxu0
    %v1052 = vadd.f32 %v222, %v1051
    %1053 = vmatprep.mubr.bf16.mxu0 0
    %1054 = vmatmul.mubr.bf16.gmra.mxu0 %v509
    %v1055 = vpop.f32.mrf.mxu0
    %v1056 = vadd.f32 %v218, %v1055
    %v1057 = vpop.f32.mrf.mxu0
    %v1058 = vadd.f32 %v222, %v1057
    %v1059 = vpop.f32.mrf.mxu0
    %v1060 = vadd.f32 %v218, %v1059
    %v1061 = vpop.f32.mrf.mxu0
    %v1062 = vadd.f32 %v222, %v1061
    %1063 = vmatprep.mubr.bf16.mxu0 0
    %1064 = vmatmul.mubr.bf16.gmra.mxu0 %v510
    %v1065 = vpop.f32.mrf.mxu0
    %v1066 = vadd.f32 %v218, %v1065
    %v1067 = vpop.f32.mrf.mxu0
    %v1068 = vadd.f32 %v222, %v1067
    %v1069 = vpop.f32.mrf.mxu0
    %v1070 = vadd.f32 %v218, %v1069
    %v1071 = vpop.f32.mrf.mxu0
    %v1072 = vadd.f32 %v222, %v1071
    %1073 = vmatprep.mubr.bf16.mxu0 0
    %1074 = vmatmul.mubr.bf16.gmra.mxu0 %v511
    %v1075 = vpop.f32.mrf.mxu0
    %v1076 = vadd.f32 %v218, %v1075
    %v1077 = vpop.f32.mrf.mxu0
    %v1078 = vadd.f32 %v222, %v1077
    %v1079 = vpop.f32.mrf.mxu0
    %v1080 = vadd.f32 %v218, %v1079
    %v1081 = vpop.f32.mrf.mxu0
    %v1082 = vadd.f32 %v222, %v1081
    %1083 = vmatprep.mubr.bf16.mxu0 0
    %1084 = vmatmul.mubr.bf16.gmra.mxu0 %v512
    %v1085 = vpop.f32.mrf.mxu0
    %v1086 = vadd.f32 %v218, %v1085
    %v1087 = vpop.f32.mrf.mxu0
    %v1088 = vadd.f32 %v222, %v1087
    %v1089 = vpop.f32.mrf.mxu0
    %v1090 = vadd.f32 %v218, %v1089
    %v1091 = vpop.f32.mrf.mxu0
    %v1092 = vadd.f32 %v222, %v1091
    %1093 = vmatprep.mubr.bf16.mxu0 0
    %1094 = vmatmul.mubr.bf16.gmra.mxu0 %v513
    %v1095 = vpop.f32.mrf.mxu0
    %v1096 = vadd.f32 %v218, %v1095
    %v1097 = vpop.f32.mrf.mxu0
    %v1098 = vadd.f32 %v222, %v1097
    %v1099 = vpop.f32.mrf.mxu0
    %v1100 = vadd.f32 %v218, %v1099
    %v1101 = vpop.f32.mrf.mxu0
    %v1102 = vadd.f32 %v222, %v1101
    %1103 = vmatprep.mubr.bf16.mxu0 0
    %1104 = vmatmul.mubr.bf16.gmra.mxu0 %v514
    %v1105 = vpop.f32.mrf.mxu0
    %v1106 = vadd.f32 %v218, %v1105
    %v1107 = vpop.f32.mrf.mxu0
    %v1108 = vadd.f32 %v222, %v1107
    %v1109 = vpop.f32.mrf.mxu0
    %v1110 = vadd.f32 %v218, %v1109
    %v1111 = vpop.f32.mrf.mxu0
    %v1112 = vadd.f32 %v222, %v1111
    %1113 = vmatprep.mubr.bf16.mxu0 0
    %1114 = vmatmul.mubr.bf16.gmra.mxu0 %v515
    %v1115 = vpop.f32.mrf.mxu0
    %v1116 = vadd.f32 %v218, %v1115
    %v1117 = vpop.f32.mrf.mxu0
    %v1118 = vadd.f32 %v222, %v1117
    %v1119 = vpop.f32.mrf.mxu0
    %v1120 = vadd.f32 %v218, %v1119
    %v1121 = vpop.f32.mrf.mxu0
    %v1122 = vadd.f32 %v222, %v1121
    %1123 = vmatprep.mubr.bf16.mxu0 0
    %1124 = vmatmul.mubr.bf16.gmra.mxu0 %v516
    %v1125 = vpop.f32.mrf.mxu0
    %v1126 = vadd.f32 %v218, %v1125
    %v1127 = vpop.f32.mrf.mxu0
    %v1128 = vadd.f32 %v222, %v1127
    %v1129 = vpop.f32.mrf.mxu0
    %v1130 = vadd.f32 %v218, %v1129
    %v1131 = vpop.f32.mrf.mxu0
    %v1132 = vadd.f32 %v222, %v1131
    %1133 = vmatprep.mubr.bf16.mxu0 0
    %1134 = vmatmul.mubr.bf16.gmra.mxu0 %v517
    %v1135 = vpop.f32.mrf.mxu0
    %v1136 = vadd.f32 %v218, %v1135
    %v1137 = vpop.f32.mrf.mxu0
    %v1138 = vadd.f32 %v222, %v1137
    %v1139 = vpop.f32.mrf.mxu0
    %v1140 = vadd.f32 %v218, %v1139
    %v1141 = vpop.f32.mrf.mxu0
    %v1142 = vadd.f32 %v222, %v1141
    %1143 = vmatprep.mubr.bf16.mxu0 0
    %1144 = vmatmul.mubr.bf16.gmra.mxu0 %v518
    %v1145 = vpop.f32.mrf.mxu0
    %v1146 = vadd.f32 %v218, %v1145
    %v1147 = vpop.f32.mrf.mxu0
    %v1148 = vadd.f32 %v222, %v1147
    %v1149 = vpop.f32.mrf.mxu0
    %v1150 = vadd.f32 %v218, %v1149
    %v1151 = vpop.f32.mrf.mxu0
    %v1152 = vadd.f32 %v222, %v1151
    %1153 = vmatprep.mubr.bf16.mxu0 0
    %1154 = vmatmul.mubr.bf16.gmra.mxu0 %v519
    %v1155 = vpop.f32.mrf.mxu0
    %v1156 = vadd.f32 %v218, %v1155
    %v1157 = vpop.f32.mrf.mxu0
    %v1158 = vadd.f32 %v222, %v1157
    %v1159 = vpop.f32.mrf.mxu0
    %v1160 = vadd.f32 %v218, %v1159
    %v1161 = vpop.f32.mrf.mxu0
    %v1162 = vadd.f32 %v222, %v1161
    %1163 = vmatprep.mubr.bf16.mxu0 0
    %1164 = vmatmul.mubr.bf16.gmra.mxu0 %v520
    %v1165 = vpop.f32.mrf.mxu0
    %v1166 = vadd.f32 %v218, %v1165
    %v1167 = vpop.f32.mrf.mxu0
    %v1168 = vadd.f32 %v222, %v1167
    %v1169 = vpop.f32.mrf.mxu0
    %v1170 = vadd.f32 %v218, %v1169
    %v1171 = vpop.f32.mrf.mxu0
    %v1172 = vadd.f32 %v222, %v1171
    %1173 = vmatprep.mubr.bf16.mxu0 0
    %1174 = vmatmul.mubr.bf16.gmra.mxu0 %v521
    %v1175 = vpop.f32.mrf.mxu0
    %v1176 = vadd.f32 %v218, %v1175
    %v1177 = vpop.f32.mrf.mxu0
    %v1178 = vadd.f32 %v222, %v1177
    %v1179 = vpop.f32.mrf.mxu0
    %v1180 = vadd.f32 %v218, %v1179
    %v1181 = vpop.f32.mrf.mxu0
    %v1182 = vadd.f32 %v222, %v1181
    %1183 = vmatprep.mubr.bf16.mxu0 0
    %1184 = vmatmul.mubr.bf16.gmra.mxu0 %v522
    %v1185 = vpop.f32.mrf.mxu0
    %v1186 = vadd.f32 %v218, %v1185
    %v1187 = vpop.f32.mrf.mxu0
    %v1188 = vadd.f32 %v222, %v1187
    %v1189 = vpop.f32.mrf.mxu0
    %v1190 = vadd.f32 %v218, %v1189
    %v1191 = vpop.f32.mrf.mxu0
    %v1192 = vadd.f32 %v222, %v1191
    %1193 = vmatprep.mubr.bf16.mxu0 0
    %1194 = vmatmul.mubr.bf16.gmra.mxu0 %v523
    %v1195 = vpop.f32.mrf.mxu0
    %v1196 = vadd.f32 %v218, %v1195
    %v1197 = vpop.f32.mrf.mxu0
    %v1198 = vadd.f32 %v222, %v1197
    %v1199 = vpop.f32.mrf.mxu0
    %v1200 = vadd.f32 %v218, %v1199
    %v1201 = vpop.f32.mrf.mxu0
    %v1202 = vadd.f32 %v222, %v1201
    %1203 = vmatprep.mubr.bf16.mxu0 0
    %1204 = vmatmul.mubr.bf16.gmra.mxu0 %v524
    %v1205 = vpop.f32.mrf.mxu0
    %v1206 = vadd.f32 %v218, %v1205
    %v1207 = vpop.f32.mrf.mxu0
    %v1208 = vadd.f32 %v222, %v1207
    %v1209 = vpop.f32.mrf.mxu0
    %v1210 = vadd.f32 %v218, %v1209
    %v1211 = vpop.f32.mrf.mxu0
    %v1212 = vadd.f32 %v222, %v1211
    %1213 = vmatprep.mubr.bf16.mxu0 0
    %1214 = vmatmul.mubr.bf16.gmra.mxu0 %v525
    %v1215 = vpop.f32.mrf.mxu0
    %v1216 = vadd.f32 %v218, %v1215
    %v1217 = vpop.f32.mrf.mxu0
    %v1218 = vadd.f32 %v222, %v1217
    %v1219 = vpop.f32.mrf.mxu0
    %v1220 = vadd.f32 %v218, %v1219
    %v1221 = vpop.f32.mrf.mxu0
    %v1222 = vadd.f32 %v222, %v1221
    %1223 = vmatprep.mubr.bf16.mxu0 0
    %1224 = vmatmul.mubr.bf16.gmra.mxu0 %v526
    %v1225 = vpop.f32.mrf.mxu0
    %v1226 = vadd.f32 %v218, %v1225
    %v1227 = vpop.f32.mrf.mxu0
    %v1228 = vadd.f32 %v222, %v1227
    %v1229 = vpop.f32.mrf.mxu0
    %v1230 = vadd.f32 %v218, %v1229
    %v1231 = vpop.f32.mrf.mxu0
    %v1232 = vadd.f32 %v222, %v1231
    %1233 = vmatprep.mubr.bf16.mxu0 0
    %1234 = vmatmul.mubr.bf16.gmra.mxu0 %v527
    %v1235 = vpop.f32.mrf.mxu0
    %v1236 = vadd.f32 %v218, %v1235
    %v1237 = vpop.f32.mrf.mxu0
    %v1238 = vadd.f32 %v222, %v1237
    %v1239 = vpop.f32.mrf.mxu0
    %v1240 = vadd.f32 %v218, %v1239
    %v1241 = vpop.f32.mrf.mxu0
    %v1242 = vadd.f32 %v222, %v1241
    %1243 = vmatprep.mubr.bf16.mxu0 0
    %1244 = vmatmul.mubr.bf16.gmra.mxu0 %v528
    %v1245 = vpop.f32.mrf.mxu0
    %v1246 = vadd.f32 %v218, %v1245
    %v1247 = vpop.f32.mrf.mxu0
    %v1248 = vadd.f32 %v222, %v1247
    %v1249 = vpop.f32.mrf.mxu0
    %v1250 = vadd.f32 %v218, %v1249
    %v1251 = vpop.f32.mrf.mxu0
    %v1252 = vadd.f32 %v222, %v1251
    %1253 = vmatprep.mubr.bf16.mxu0 0
    %1254 = vmatmul.mubr.bf16.gmra.mxu0 %v529
    %v1255 = vpop.f32.mrf.mxu0
    %v1256 = vadd.f32 %v218, %v1255
    %v1257 = vpop.f32.mrf.mxu0
    %v1258 = vadd.f32 %v222, %v1257
    %v1259 = vpop.f32.mrf.mxu0
    %v1260 = vadd.f32 %v218, %v1259
    %v1261 = vpop.f32.mrf.mxu0
    %v1262 = vadd.f32 %v222, %v1261
    %1263 = vmatprep.mubr.bf16.mxu0 0
    %1264 = vmatmul.mubr.bf16.gmra.mxu0 %v530
    %v1265 = vpop.f32.mrf.mxu0
    %v1266 = vadd.f32 %v218, %v1265
    %v1267 = vpop.f32.mrf.mxu0
    %v1268 = vadd.f32 %v222, %v1267
    %v1269 = vpop.f32.mrf.mxu0
    %v1270 = vadd.f32 %v218, %v1269
    %v1271 = vpop.f32.mrf.mxu0
    %v1272 = vadd.f32 %v222, %v1271
    %1273 = vmatprep.mubr.bf16.mxu0 0
    %1274 = vmatmul.mubr.bf16.gmra.mxu0 %v531
    %v1275 = vpop.f32.mrf.mxu0
    %v1276 = vadd.f32 %v218, %v1275
    %v1277 = vpop.f32.mrf.mxu0
    %v1278 = vadd.f32 %v222, %v1277
    %v1279 = vpop.f32.mrf.mxu0
    %v1280 = vadd.f32 %v218, %v1279
    %v1281 = vpop.f32.mrf.mxu0
    %v1282 = vadd.f32 %v222, %v1281
    %1283 = vmatprep.mubr.bf16.mxu0 0
    %1284 = vmatmul.mubr.bf16.gmra.mxu0 %v532
    %v1285 = vpop.f32.mrf.mxu0
    %v1286 = vadd.f32 %v218, %v1285
    %v1287 = vpop.f32.mrf.mxu0
    %v1288 = vadd.f32 %v222, %v1287
    %v1289 = vpop.f32.mrf.mxu0
    %v1290 = vadd.f32 %v218, %v1289
    %v1291 = vpop.f32.mrf.mxu0
    %v1292 = vadd.f32 %v222, %v1291
    %1293 = vmatprep.mubr.bf16.mxu0 0
    %1294 = vmatmul.mubr.bf16.gmra.mxu0 %v533
    %v1295 = vpop.f32.mrf.mxu0
    %v1296 = vadd.f32 %v218, %v1295
    %v1297 = vpop.f32.mrf.mxu0
    %v1298 = vadd.f32 %v222, %v1297
    %v1299 = vpop.f32.mrf.mxu0
    %v1300 = vadd.f32 %v218, %v1299
    %v1301 = vpop.f32.mrf.mxu0
    %v1302 = vadd.f32 %v222, %v1301
    %1303 = vmatprep.mubr.bf16.mxu0 0
    %1304 = vmatmul.mubr.bf16.gmra.mxu0 %v534
    %v1305 = vpop.f32.mrf.mxu0
    %v1306 = vadd.f32 %v218, %v1305
    %v1307 = vpop.f32.mrf.mxu0
    %v1308 = vadd.f32 %v222, %v1307
    %v1309 = vpop.f32.mrf.mxu0
    %v1310 = vadd.f32 %v218, %v1309
    %v1311 = vpop.f32.mrf.mxu0
    %v1312 = vadd.f32 %v222, %v1311
    %1313 = vmatprep.mubr.bf16.mxu0 0
    %1314 = vmatmul.mubr.bf16.gmra.mxu0 %v535
    %v1315 = vpop.f32.mrf.mxu0
    %v1316 = vadd.f32 %v218, %v1315
    %v1317 = vpop.f32.mrf.mxu0
    %v1318 = vadd.f32 %v222, %v1317
    %v1319 = vpop.f32.mrf.mxu0
    %v1320 = vadd.f32 %v218, %v1319
    %v1321 = vpop.f32.mrf.mxu0
    %v1322 = vadd.f32 %v222, %v1321
    %1323 = vmatprep.mubr.bf16.mxu0 0
    %1324 = vmatmul.mubr.bf16.gmra.mxu0 %v536
    %v1325 = vpop.f32.mrf.mxu0
    %v1326 = vadd.f32 %v218, %v1325
    %v1327 = vpop.f32.mrf.mxu0
    %v1328 = vadd.f32 %v222, %v1327
    %v1329 = vpop.f32.mrf.mxu0
    %v1330 = vadd.f32 %v218, %v1329
    %v1331 = vpop.f32.mrf.mxu0
    %v1332 = vadd.f32 %v222, %v1331
    %1333 = vmatprep.mubr.bf16.mxu0 0
    %1334 = vmatmul.mubr.bf16.gmra.mxu0 %v537
    %v1335 = vpop.f32.mrf.mxu0
    %v1336 = vadd.f32 %v218, %v1335
    %v1337 = vpop.f32.mrf.mxu0
    %v1338 = vadd.f32 %v222, %v1337
    %v1339 = vpop.f32.mrf.mxu0
    %v1340 = vpop.f32.mrf.mxu0
    %1341 = vdwg.mxu0
    %v1342 = vmax.f32 %v716, 0.0
    %v1343 = vmax.f32 %v718, 0.0
    %v1344 = vmax.f32 %v720, 0.0
    %v1345 = vmax.f32 %v722, 0.0
    %v1346 = vmax.f32 %v726, 0.0
    %v1347 = vmax.f32 %v728, 0.0
    %v1348 = vmax.f32 %v730, 0.0
    %v1349 = vmax.f32 %v732, 0.0
    %v1350 = vmax.f32 %v736, 0.0
    %v1351 = vmax.f32 %v738, 0.0
    %v1352 = vmax.f32 %v740, 0.0
    %v1353 = vmax.f32 %v742, 0.0
    %v1354 = vmax.f32 %v746, 0.0
    %v1355 = vmax.f32 %v748, 0.0
    %v1356 = vmax.f32 %v750, 0.0
    %v1357 = vmax.f32 %v752, 0.0
    %v1358 = vmax.f32 %v756, 0.0
    %v1359 = vmax.f32 %v758, 0.0
    %v1360 = vmax.f32 %v760, 0.0
    %v1361 = vmax.f32 %v762, 0.0
    %v1362 = vmax.f32 %v766, 0.0
    %v1363 = vmax.f32 %v768, 0.0
    %v1364 = vmax.f32 %v770, 0.0
    %v1365 = vmax.f32 %v772, 0.0
    %v1366 = vmax.f32 %v776, 0.0
    %v1367 = vmax.f32 %v778, 0.0
    %v1368 = vmax.f32 %v780, 0.0
    %v1369 = vmax.f32 %v782, 0.0
    %v1370 = vmax.f32 %v786, 0.0
    %v1371 = vmax.f32 %v788, 0.0
    %v1372 = vmax.f32 %v790, 0.0
    %v1373 = vmax.f32 %v792, 0.0
    %v1374 = vmax.f32 %v796, 0.0
    %v1375 = vmax.f32 %v798, 0.0
    %v1376 = vmax.f32 %v800, 0.0
    %v1377 = vmax.f32 %v802, 0.0
    %v1378 = vmax.f32 %v806, 0.0
    %v1379 = vmax.f32 %v808, 0.0
    %v1380 = vmax.f32 %v810, 0.0
    %v1381 = vmax.f32 %v812, 0.0
    %v1382 = vmax.f32 %v816, 0.0
    %v1383 = vmax.f32 %v818, 0.0
    %v1384 = vmax.f32 %v820, 0.0
    %v1385 = vmax.f32 %v822, 0.0
    %v1386 = vmax.f32 %v826, 0.0
    %v1387 = vmax.f32 %v828, 0.0
    %v1388 = vmax.f32 %v830, 0.0
    %v1389 = vmax.f32 %v832, 0.0
    %v1390 = vmax.f32 %v836, 0.0
    %v1391 = vmax.f32 %v838, 0.0
    %v1392 = vmax.f32 %v840, 0.0
    %v1393 = vmax.f32 %v842, 0.0
    %v1394 = vmax.f32 %v846, 0.0
    %v1395 = vmax.f32 %v848, 0.0
    %v1396 = vmax.f32 %v850, 0.0
    %v1397 = vmax.f32 %v852, 0.0
    %v1398 = vmax.f32 %v856, 0.0
    %v1399 = vmax.f32 %v858, 0.0
    %v1400 = vmax.f32 %v860, 0.0
    %v1401 = vmax.f32 %v862, 0.0
    %v1402 = vmax.f32 %v866, 0.0
    %v1403 = vmax.f32 %v868, 0.0
    %v1404 = vmax.f32 %v870, 0.0
    %v1405 = vmax.f32 %v872, 0.0
    %v1406 = vmax.f32 %v876, 0.0
    %v1407 = vmax.f32 %v878, 0.0
    %v1408 = vmax.f32 %v880, 0.0
    %v1409 = vmax.f32 %v882, 0.0
    %v1410 = vmax.f32 %v886, 0.0
    %v1411 = vmax.f32 %v888, 0.0
    %v1412 = vmax.f32 %v890, 0.0
    %v1413 = vmax.f32 %v892, 0.0
    %v1414 = vmax.f32 %v896, 0.0
    %v1415 = vmax.f32 %v898, 0.0
    %v1416 = vmax.f32 %v900, 0.0
    %v1417 = vmax.f32 %v902, 0.0
    %v1418 = vmax.f32 %v906, 0.0
    %v1419 = vmax.f32 %v908, 0.0
    %v1420 = vmax.f32 %v910, 0.0
    %v1421 = vmax.f32 %v912, 0.0
    %v1422 = vmax.f32 %v916, 0.0
    %v1423 = vmax.f32 %v918, 0.0
    %v1424 = vmax.f32 %v920, 0.0
    %v1425 = vmax.f32 %v922, 0.0
    %v1426 = vmax.f32 %v926, 0.0
    %v1427 = vmax.f32 %v928, 0.0
    %v1428 = vmax.f32 %v930, 0.0
    %v1429 = vmax.f32 %v932, 0.0
    %v1430 = vmax.f32 %v936, 0.0
    %v1431 = vmax.f32 %v938, 0.0
    %v1432 = vmax.f32 %v940, 0.0
    %v1433 = vmax.f32 %v942, 0.0
    %v1434 = vmax.f32 %v946, 0.0
    %v1435 = vmax.f32 %v948, 0.0
    %v1436 = vmax.f32 %v950, 0.0
    %v1437 = vmax.f32 %v952, 0.0
    %v1438 = vmax.f32 %v956, 0.0
    %v1439 = vmax.f32 %v958, 0.0
    %v1440 = vmax.f32 %v960, 0.0
    %v1441 = vmax.f32 %v962, 0.0
    %v1442 = vmax.f32 %v966, 0.0
    %v1443 = vmax.f32 %v968, 0.0
    %v1444 = vmax.f32 %v970, 0.0
    %v1445 = vmax.f32 %v972, 0.0
    %v1446 = vmax.f32 %v976, 0.0
    %v1447 = vmax.f32 %v978, 0.0
    %v1448 = vmax.f32 %v980, 0.0
    %v1449 = vmax.f32 %v982, 0.0
    %v1450 = vmax.f32 %v986, 0.0
    %v1451 = vmax.f32 %v988, 0.0
    %v1452 = vmax.f32 %v990, 0.0
    %v1453 = vmax.f32 %v992, 0.0
    %v1454 = vmax.f32 %v996, 0.0
    %v1455 = vmax.f32 %v998, 0.0
    %v1456 = vmax.f32 %v1000, 0.0
    %v1457 = vmax.f32 %v1002, 0.0
    %v1458 = vmax.f32 %v1006, 0.0
    %v1459 = vmax.f32 %v1008, 0.0
    %v1460 = vmax.f32 %v1010, 0.0
    %v1461 = vmax.f32 %v1012, 0.0
    %v1462 = vmax.f32 %v1016, 0.0
    %v1463 = vmax.f32 %v1018, 0.0
    %v1464 = vmax.f32 %v1020, 0.0
    %v1465 = vmax.f32 %v1022, 0.0
    %v1466 = vmax.f32 %v1026, 0.0
    %v1467 = vmax.f32 %v1028, 0.0
    %v1468 = vmax.f32 %v1030, 0.0
    %v1469 = vmax.f32 %v1032, 0.0
    %v1470 = vmax.f32 %v1036, 0.0
    %v1471 = vmax.f32 %v1038, 0.0
    %v1472 = vmax.f32 %v1040, 0.0
    %v1473 = vmax.f32 %v1042, 0.0
    %v1474 = vmax.f32 %v1046, 0.0
    %v1475 = vmax.f32 %v1048, 0.0
    %v1476 = vmax.f32 %v1050, 0.0
    %v1477 = vmax.f32 %v1052, 0.0
    %v1478 = vmax.f32 %v1056, 0.0
    %v1479 = vmax.f32 %v1058, 0.0
    %v1480 = vmax.f32 %v1060, 0.0
    %v1481 = vmax.f32 %v1062, 0.0
    %v1482 = vmax.f32 %v1066, 0.0
    %v1483 = vmax.f32 %v1068, 0.0
    %v1484 = vmax.f32 %v1070, 0.0
    %v1485 = vmax.f32 %v1072, 0.0
    %v1486 = vmax.f32 %v1076, 0.0
    %v1487 = vmax.f32 %v1078, 0.0
    %v1488 = vmax.f32 %v1080, 0.0
    %v1489 = vmax.f32 %v1082, 0.0
    %v1490 = vmax.f32 %v1086, 0.0
    %v1491 = vmax.f32 %v1088, 0.0
    %v1492 = vmax.f32 %v1090, 0.0
    %v1493 = vmax.f32 %v1092, 0.0
    %v1494 = vmax.f32 %v1096, 0.0
    %v1495 = vmax.f32 %v1098, 0.0
    %v1496 = vmax.f32 %v1100, 0.0
    %v1497 = vmax.f32 %v1102, 0.0
    %v1498 = vmax.f32 %v1106, 0.0
    %v1499 = vmax.f32 %v1108, 0.0
    %v1500 = vmax.f32 %v1110, 0.0
    %v1501 = vmax.f32 %v1112, 0.0
    %v1502 = vmax.f32 %v1116, 0.0
    %v1503 = vmax.f32 %v1118, 0.0
    %v1504 = vmax.f32 %v1120, 0.0
    %v1505 = vmax.f32 %v1122, 0.0
    %v1506 = vmax.f32 %v1126, 0.0
    %v1507 = vmax.f32 %v1128, 0.0
    %v1508 = vmax.f32 %v1130, 0.0
    %v1509 = vmax.f32 %v1132, 0.0
    %v1510 = vmax.f32 %v1136, 0.0
    %v1511 = vmax.f32 %v1138, 0.0
    %v1512 = vmax.f32 %v1140, 0.0
    %v1513 = vmax.f32 %v1142, 0.0
    %v1514 = vmax.f32 %v1146, 0.0
    %v1515 = vmax.f32 %v1148, 0.0
    %v1516 = vmax.f32 %v1150, 0.0
    %v1517 = vmax.f32 %v1152, 0.0
    %v1518 = vmax.f32 %v1156, 0.0
    %v1519 = vmax.f32 %v1158, 0.0
    %v1520 = vmax.f32 %v1160, 0.0
    %v1521 = vmax.f32 %v1162, 0.0
    %v1522 = vmax.f32 %v1166, 0.0
    %v1523 = vmax.f32 %v1168, 0.0
    %v1524 = vmax.f32 %v1170, 0.0
    %v1525 = vmax.f32 %v1172, 0.0
    %v1526 = vmax.f32 %v1176, 0.0
    %v1527 = vmax.f32 %v1178, 0.0
    %v1528 = vmax.f32 %v1180, 0.0
    %v1529 = vmax.f32 %v1182, 0.0
    %v1530 = vmax.f32 %v1186, 0.0
    %v1531 = vmax.f32 %v1188, 0.0
    %v1532 = vmax.f32 %v1190, 0.0
    %v1533 = vmax.f32 %v1192, 0.0
    %v1534 = vmax.f32 %v1196, 0.0
    %v1535 = vmax.f32 %v1198, 0.0
    %v1536 = vmax.f32 %v1200, 0.0
    %v1537 = vmax.f32 %v1202, 0.0
    %v1538 = vmax.f32 %v1206, 0.0
    %v1539 = vmax.f32 %v1208, 0.0
    %v1540 = vmax.f32 %v1210, 0.0
    %v1541 = vmax.f32 %v1212, 0.0
    %v1542 = vmax.f32 %v1216, 0.0
    %v1543 = vmax.f32 %v1218, 0.0
    %v1544 = vmax.f32 %v1220, 0.0
    %v1545 = vmax.f32 %v1222, 0.0
    %v1546 = vmax.f32 %v1226, 0.0
    %v1547 = vmax.f32 %v1228, 0.0
    %v1548 = vmax.f32 %v1230, 0.0
    %v1549 = vmax.f32 %v1232, 0.0
    %v1550 = vmax.f32 %v1236, 0.0
    %v1551 = vmax.f32 %v1238, 0.0
    %v1552 = vmax.f32 %v1240, 0.0
    %v1553 = vmax.f32 %v1242, 0.0
    %v1554 = vmax.f32 %v1246, 0.0
    %v1555 = vmax.f32 %v1248, 0.0
    %v1556 = vmax.f32 %v1250, 0.0
    %v1557 = vmax.f32 %v1252, 0.0
    %v1558 = vmax.f32 %v1256, 0.0
    %v1559 = vmax.f32 %v1258, 0.0
    %v1560 = vmax.f32 %v1260, 0.0
    %v1561 = vmax.f32 %v1262, 0.0
    %v1562 = vmax.f32 %v1266, 0.0
    %v1563 = vmax.f32 %v1268, 0.0
    %v1564 = vmax.f32 %v1270, 0.0
    %v1565 = vmax.f32 %v1272, 0.0
    %v1566 = vmax.f32 %v1276, 0.0
    %v1567 = vmax.f32 %v1278, 0.0
    %v1568 = vmax.f32 %v1280, 0.0
    %v1569 = vmax.f32 %v1282, 0.0
    %v1570 = vmax.f32 %v1286, 0.0
    %v1571 = vmax.f32 %v1288, 0.0
    %v1572 = vmax.f32 %v1290, 0.0
    %v1573 = vmax.f32 %v1292, 0.0
    %v1574 = vmax.f32 %v1296, 0.0
    %v1575 = vmax.f32 %v1298, 0.0
    %v1576 = vmax.f32 %v1300, 0.0
    %v1577 = vmax.f32 %v1302, 0.0
    %v1578 = vmax.f32 %v1306, 0.0
    %v1579 = vmax.f32 %v1308, 0.0
    %v1580 = vmax.f32 %v1310, 0.0
    %v1581 = vmax.f32 %v1312, 0.0
    %v1582 = vmax.f32 %v1316, 0.0
    %v1583 = vmax.f32 %v1318, 0.0
    %v1584 = vmax.f32 %v1320, 0.0
    %v1585 = vmax.f32 %v1322, 0.0
    %v1586 = vmax.f32 %v1326, 0.0
    %v1587 = vmax.f32 %v1328, 0.0
    %v1588 = vmax.f32 %v1330, 0.0
    %v1589 = vmax.f32 %v1332, 0.0
    %v1590 = vmax.f32 %v1336, 0.0
    %v1591 = vmax.f32 %v1338, 0.0
    %v1592 = vpack.c.bf16 %v1344, %v1342
    %v1593 = vpack.c.bf16 %v1345, %v1343
    %v1594 = vpack.c.bf16 %v1348, %v1346
    %v1595 = vpack.c.bf16 %v1349, %v1347
    %v1596 = vpack.c.bf16 %v1352, %v1350
    %v1597 = vpack.c.bf16 %v1353, %v1351
    %v1598 = vpack.c.bf16 %v1356, %v1354
    %v1599 = vpack.c.bf16 %v1357, %v1355
    %v1600 = vpack.c.bf16 %v1360, %v1358
    %v1601 = vpack.c.bf16 %v1361, %v1359
    %v1602 = vpack.c.bf16 %v1364, %v1362
    %v1603 = vpack.c.bf16 %v1365, %v1363
    %v1604 = vpack.c.bf16 %v1368, %v1366
    %v1605 = vpack.c.bf16 %v1369, %v1367
    %v1606 = vpack.c.bf16 %v1372, %v1370
    %v1607 = vpack.c.bf16 %v1373, %v1371
    %v1608 = vpack.c.bf16 %v1376, %v1374
    %v1609 = vpack.c.bf16 %v1377, %v1375
    %v1610 = vpack.c.bf16 %v1380, %v1378
    %v1611 = vpack.c.bf16 %v1381, %v1379
    %v1612 = vpack.c.bf16 %v1384, %v1382
    %v1613 = vpack.c.bf16 %v1385, %v1383
    %v1614 = vpack.c.bf16 %v1388, %v1386
    %v1615 = vpack.c.bf16 %v1389, %v1387
    %v1616 = vpack.c.bf16 %v1392, %v1390
    %v1617 = vpack.c.bf16 %v1393, %v1391
    %v1618 = vpack.c.bf16 %v1396, %v1394
    %v1619 = vpack.c.bf16 %v1397, %v1395
    %v1620 = vpack.c.bf16 %v1400, %v1398
    %v1621 = vpack.c.bf16 %v1401, %v1399
    %v1622 = vpack.c.bf16 %v1404, %v1402
    %v1623 = vpack.c.bf16 %v1405, %v1403
    %v1624 = vpack.c.bf16 %v1408, %v1406
    %v1625 = vpack.c.bf16 %v1409, %v1407
    %v1626 = vpack.c.bf16 %v1412, %v1410
    %v1627 = vpack.c.bf16 %v1413, %v1411
    %v1628 = vpack.c.bf16 %v1416, %v1414
    %v1629 = vpack.c.bf16 %v1417, %v1415
    %v1630 = vpack.c.bf16 %v1420, %v1418
    %v1631 = vpack.c.bf16 %v1421, %v1419
    %v1632 = vpack.c.bf16 %v1424, %v1422
    %v1633 = vpack.c.bf16 %v1425, %v1423
    %v1634 = vpack.c.bf16 %v1428, %v1426
    %v1635 = vpack.c.bf16 %v1429, %v1427
    %v1636 = vpack.c.bf16 %v1432, %v1430
    %v1637 = vpack.c.bf16 %v1433, %v1431
    %v1638 = vpack.c.bf16 %v1436, %v1434
    %v1639 = vpack.c.bf16 %v1437, %v1435
    %v1640 = vpack.c.bf16 %v1440, %v1438
    %v1641 = vpack.c.bf16 %v1441, %v1439
    %v1642 = vpack.c.bf16 %v1444, %v1442
    %v1643 = vpack.c.bf16 %v1445, %v1443
    %v1644 = vpack.c.bf16 %v1448, %v1446
    %v1645 = vpack.c.bf16 %v1449, %v1447
    %v1646 = vpack.c.bf16 %v1452, %v1450
    %v1647 = vpack.c.bf16 %v1453, %v1451
    %v1648 = vpack.c.bf16 %v1456, %v1454
    %v1649 = vpack.c.bf16 %v1457, %v1455
    %v1650 = vpack.c.bf16 %v1460, %v1458
    %v1651 = vpack.c.bf16 %v1461, %v1459
    %v1652 = vpack.c.bf16 %v1464, %v1462
    %v1653 = vpack.c.bf16 %v1465, %v1463
    %v1654 = vpack.c.bf16 %v1468, %v1466
    %v1655 = vpack.c.bf16 %v1469, %v1467
    %v1656 = vpack.c.bf16 %v1472, %v1470
    %v1657 = vpack.c.bf16 %v1473, %v1471
    %v1658 = vpack.c.bf16 %v1476, %v1474
    %v1659 = vpack.c.bf16 %v1477, %v1475
    %v1660 = vpack.c.bf16 %v1480, %v1478
    %v1661 = vpack.c.bf16 %v1481, %v1479
    %v1662 = vpack.c.bf16 %v1484, %v1482
    %v1663 = vpack.c.bf16 %v1485, %v1483
    %v1664 = vpack.c.bf16 %v1488, %v1486
    %v1665 = vpack.c.bf16 %v1489, %v1487
    %v1666 = vpack.c.bf16 %v1492, %v1490
    %v1667 = vpack.c.bf16 %v1493, %v1491
    %v1668 = vpack.c.bf16 %v1496, %v1494
    %v1669 = vpack.c.bf16 %v1497, %v1495
    %v1670 = vpack.c.bf16 %v1500, %v1498
    %v1671 = vpack.c.bf16 %v1501, %v1499
    %v1672 = vpack.c.bf16 %v1504, %v1502
    %v1673 = vpack.c.bf16 %v1505, %v1503
    %v1674 = vpack.c.bf16 %v1508, %v1506
    %v1675 = vpack.c.bf16 %v1509, %v1507
    %v1676 = vpack.c.bf16 %v1512, %v1510
    %v1677 = vpack.c.bf16 %v1513, %v1511
    %v1678 = vpack.c.bf16 %v1516, %v1514
    %v1679 = vpack.c.bf16 %v1517, %v1515
    %v1680 = vpack.c.bf16 %v1520, %v1518
    %v1681 = vpack.c.bf16 %v1521, %v1519
    %v1682 = vpack.c.bf16 %v1524, %v1522
    %v1683 = vpack.c.bf16 %v1525, %v1523
    %v1684 = vpack.c.bf16 %v1528, %v1526
    %v1685 = vpack.c.bf16 %v1529, %v1527
    %v1686 = vpack.c.bf16 %v1532, %v1530
    %v1687 = vpack.c.bf16 %v1533, %v1531
    %v1688 = vpack.c.bf16 %v1536, %v1534
    %v1689 = vpack.c.bf16 %v1537, %v1535
    %v1690 = vpack.c.bf16 %v1540, %v1538
    %v1691 = vpack.c.bf16 %v1541, %v1539
    %v1692 = vpack.c.bf16 %v1544, %v1542
    %v1693 = vpack.c.bf16 %v1545, %v1543
    %v1694 = vpack.c.bf16 %v1548, %v1546
    %v1695 = vpack.c.bf16 %v1549, %v1547
    %v1696 = vpack.c.bf16 %v1552, %v1550
    %v1697 = vpack.c.bf16 %v1553, %v1551
    %v1698 = vpack.c.bf16 %v1556, %v1554
    %v1699 = vpack.c.bf16 %v1557, %v1555
    %v1700 = vpack.c.bf16 %v1560, %v1558
    %v1701 = vpack.c.bf16 %v1561, %v1559
    %v1702 = vpack.c.bf16 %v1564, %v1562
    %v1703 = vpack.c.bf16 %v1565, %v1563
    %v1704 = vpack.c.bf16 %v1568, %v1566
    %v1705 = vpack.c.bf16 %v1569, %v1567
    %v1706 = vpack.c.bf16 %v1572, %v1570
    %v1707 = vpack.c.bf16 %v1573, %v1571
    %v1708 = vpack.c.bf16 %v1576, %v1574
    %v1709 = vpack.c.bf16 %v1577, %v1575
    %v1710 = vpack.c.bf16 %v1580, %v1578
    %v1711 = vpack.c.bf16 %v1581, %v1579
    %v1712 = vpack.c.bf16 %v1584, %v1582
    %v1713 = vpack.c.bf16 %v1585, %v1583
    %v1714 = vpack.c.bf16 %v1588, %v1586
    %v1715 = vpack.c.bf16 %v1589, %v1587
    %v1716 = vpack.c.bf16 %v1590, %v1590
    %v1717 = vpack.c.bf16 %v1591, %v1591
    %v1718 = vld [vmem:[%s4] sm:$0xf]
    %v1719 = vld [vmem:[%s4 + $0x4] sm:$0xf]
    %v1720 = vld [vmem:[%s4 + $0x8] sm:$0xf]
    %v1721 = vld [vmem:[%s4 + $0xc] sm:$0xf]
    %v1722 = vld [vmem:[%s4 + $0x10] sm:$0xf]
    %v1723 = vld [vmem:[%s4 + $0x14] sm:$0xf]
    %v1724 = vld [vmem:[%s4 + $0x18] sm:$0xf]
    %v1725 = vld [vmem:[%s4 + $0x1c] sm:$0xf]
    %v1726 = vld [vmem:[%s4 + $0x20] sm:$0xf]
    %v1727 = vld [vmem:[%s4 + $0x24] sm:$0xf]
    %v1728 = vld [vmem:[%s4 + $0x28] sm:$0xf]
    %v1729 = vld [vmem:[%s4 + $0x2c] sm:$0xf]
    %v1730 = vld [vmem:[%s4 + $0x30] sm:$0xf]
    %v1731 = vld [vmem:[%s4 + $0x34] sm:$0xf]
    %v1732 = vld [vmem:[%s4 + $0x38] sm:$0xf]
    %v1733 = vld [vmem:[%s4 + $0x3c] sm:$0xf]
    %v1734 = vld [vmem:[%s4 + $0x40] sm:$0xf]
    %v1735 = vld [vmem:[%s4 + $0x44] sm:$0xf]
    %v1736 = vld [vmem:[%s4 + $0x48] sm:$0xf]
    %v1737 = vld [vmem:[%s4 + $0x4c] sm:$0xf]
    %v1738 = vld [vmem:[%s4 + $0x50] sm:$0xf]
    %v1739 = vld [vmem:[%s4 + $0x54] sm:$0xf]
    %v1740 = vld [vmem:[%s4 + $0x58] sm:$0xf]
    %v1741 = vld [vmem:[%s4 + $0x5c] sm:$0xf]
    %v1742 = vld [vmem:[%s4 + $0x60] sm:$0xf]
    %v1743 = vld [vmem:[%s4 + $0x64] sm:$0xf]
    %v1744 = vld [vmem:[%s4 + $0x68] sm:$0xf]
    %v1745 = vld [vmem:[%s4 + $0x6c] sm:$0xf]
    %v1746 = vld [vmem:[%s4 + $0x70] sm:$0xf]
    %v1747 = vld [vmem:[%s4 + $0x74] sm:$0xf]
    %v1748 = vld [vmem:[%s4 + $0x78] sm:$0xf]
    %v1749 = vld [vmem:[%s4 + $0x7c] sm:$0xf]
    %v1750 = vld [vmem:[%s5] sm:$0x1]
    %v1752 = vlaneseq
    %v1753 = vshrl.u32 %v1752, 7
    %v1754 = vsub.s32 0, %v1753
    %v1755 = vrot.slane %v1750, %v1754
    %v1789 = vunpack.c.l.b16 %v1718
    %v1790 = vunpack.c.l.b16 %v1719
    %v1791 = vunpack.c.l.b16 %v1720
    %v1792 = vunpack.c.l.b16 %v1721
    %v1793 = vunpack.c.l.b16 %v1722
    %v1794 = vunpack.c.l.b16 %v1723
    %v1795 = vunpack.c.l.b16 %v1724
    %v1796 = vunpack.c.l.b16 %v1725
    %v1797 = vunpack.c.l.b16 %v1726
    %v1798 = vunpack.c.l.b16 %v1727
    %v1799 = vunpack.c.l.b16 %v1728
    %v1800 = vunpack.c.l.b16 %v1729
    %v1801 = vunpack.c.l.b16 %v1730
    %v1802 = vunpack.c.l.b16 %v1731
    %v1803 = vunpack.c.l.b16 %v1732
    %v1804 = vunpack.c.l.b16 %v1733
    %v1805 = vunpack.c.l.b16 %v1734
    %v1806 = vunpack.c.l.b16 %v1735
    %v1807 = vunpack.c.l.b16 %v1736
    %v1808 = vunpack.c.l.b16 %v1737
    %v1809 = vunpack.c.l.b16 %v1738
    %v1810 = vunpack.c.l.b16 %v1739
    %v1811 = vunpack.c.l.b16 %v1740
    %v1812 = vunpack.c.l.b16 %v1741
    %v1813 = vunpack.c.l.b16 %v1742
    %v1814 = vunpack.c.l.b16 %v1743
    %v1815 = vunpack.c.l.b16 %v1744
    %v1816 = vunpack.c.l.b16 %v1745
    %v1817 = vunpack.c.l.b16 %v1746
    %v1818 = vunpack.c.l.b16 %v1747
    %v1819 = vunpack.c.l.b16 %v1748
    %v1820 = vunpack.c.l.b16 %v1749
    %v1821 = vpack.c.b16 %v1790, %v1789
    %v1822 = vpack.c.b16 %v1792, %v1791
    %v1823 = vpack.c.b16 %v1794, %v1793
    %v1824 = vpack.c.b16 %v1796, %v1795
    %v1825 = vpack.c.b16 %v1798, %v1797
    %v1826 = vpack.c.b16 %v1800, %v1799
    %v1827 = vpack.c.b16 %v1802, %v1801
    %v1828 = vpack.c.b16 %v1804, %v1803
    %v1829 = vpack.c.b16 %v1806, %v1805
    %v1830 = vpack.c.b16 %v1808, %v1807
    %v1831 = vpack.c.b16 %v1810, %v1809
    %v1832 = vpack.c.b16 %v1812, %v1811
    %v1833 = vpack.c.b16 %v1814, %v1813
    %v1834 = vpack.c.b16 %v1816, %v1815
    %v1835 = vpack.c.b16 %v1818, %v1817
    %v1836 = vpack.c.b16 %v1820, %v1819
    %1853 = vmatprep.subr.bf16.mxu0 0
    %1854 = vmatpush1.bf16.msra.mxu0 %v1828
    %1855 = vmatprep.subr.bf16.mxu0 0
    %1856 = vmatpush1.bf16.msra.mxu0 %v1827
    %1857 = vmatprep.subr.bf16.mxu0 0
    %1858 = vmatpush1.bf16.msra.mxu0 %v1826
    %1859 = vmatprep.subr.bf16.mxu0 0
    %1860 = vmatpush1.bf16.msra.mxu0 %v1825
    %1861 = vmatprep.subr.bf16.mxu0 0
    %1862 = vmatpush1.bf16.msra.mxu0 %v1824
    %1863 = vmatprep.subr.bf16.mxu0 0
    %1864 = vmatpush1.bf16.msra.mxu0 %v1823
    %1865 = vmatprep.subr.bf16.mxu0 0
    %1866 = vmatpush1.bf16.msra.mxu0 %v1822
    %1867 = vmatprep.subr.bf16.mxu0 0
    %1868 = vmatpush1.bf16.msra.mxu0 %v1821
    %1869 = vmatprep.subr.bf16.mxu0 0
    %1870 = vmatpush2.bf16.msra.mxu0 %v1836
    %1871 = vmatprep.subr.bf16.mxu0 0
    %1872 = vmatpush2.bf16.msra.mxu0 %v1835
    %1873 = vmatprep.subr.bf16.mxu0 0
    %1874 = vmatpush2.bf16.msra.mxu0 %v1834
    %1875 = vmatprep.subr.bf16.mxu0 0
    %1876 = vmatpush2.bf16.msra.mxu0 %v1833
    %1877 = vmatprep.subr.bf16.mxu0 0
    %1878 = vmatpush2.bf16.msra.mxu0 %v1832
    %1879 = vmatprep.subr.bf16.mxu0 0
    %1880 = vmatpush2.bf16.msra.mxu0 %v1831
    %1881 = vmatprep.subr.bf16.mxu0 0
    %1882 = vmatpush2.bf16.msra.mxu0 %v1830
    %1883 = vmatprep.subr.bf16.mxu0 0
    %1884 = vmatpush2.bf16.msra.mxu0 %v1829
    %1885 = vmatprep.mubr.bf16.mxu0 %v1593
    %1886 = vmatmul.mubr.bf16.gmra.mxu0 %v1592
    %v1887 = vpop.f32.mrf.mxu0
    %v1888 = vadd.f32 %v1755, %v1887
    %v1889 = vpop.f32.mrf.mxu0
    %v1890 = vpop.f32.mrf.mxu0
    %v1891 = vadd.f32 %v1755, %v1890
    %v1892 = vpop.f32.mrf.mxu0
    %1893 = vmatprep.mubr.bf16.mxu0 %v1595
    %1894 = vmatmul.mubr.bf16.gmra.mxu0 %v1594
    %v1895 = vpop.f32.mrf.mxu0
    %v1896 = vadd.f32 %v1755, %v1895
    %v1897 = vpop.f32.mrf.mxu0
    %v1898 = vpop.f32.mrf.mxu0
    %v1899 = vadd.f32 %v1755, %v1898
    %v1900 = vpop.f32.mrf.mxu0
    %1901 = vmatprep.mubr.bf16.mxu0 %v1597
    %1902 = vmatmul.mubr.bf16.gmra.mxu0 %v1596
    %v1903 = vpop.f32.mrf.mxu0
    %v1904 = vadd.f32 %v1755, %v1903
    %v1905 = vpop.f32.mrf.mxu0
    %v1906 = vpop.f32.mrf.mxu0
    %v1907 = vadd.f32 %v1755, %v1906
    %v1908 = vpop.f32.mrf.mxu0
    %1909 = vmatprep.mubr.bf16.mxu0 %v1599
    %1910 = vmatmul.mubr.bf16.gmra.mxu0 %v1598
    %v1911 = vpop.f32.mrf.mxu0
    %v1912 = vadd.f32 %v1755, %v1911
    %v1913 = vpop.f32.mrf.mxu0
    %v1914 = vpop.f32.mrf.mxu0
    %v1915 = vadd.f32 %v1755, %v1914
    %v1916 = vpop.f32.mrf.mxu0
    %1917 = vmatprep.mubr.bf16.mxu0 %v1601
    %1918 = vmatmul.mubr.bf16.gmra.mxu0 %v1600
    %v1919 = vpop.f32.mrf.mxu0
    %v1920 = vadd.f32 %v1755, %v1919
    %v1921 = vpop.f32.mrf.mxu0
    %v1922 = vpop.f32.mrf.mxu0
    %v1923 = vadd.f32 %v1755, %v1922
    %v1924 = vpop.f32.mrf.mxu0
    %1925 = vmatprep.mubr.bf16.mxu0 %v1603
    %1926 = vmatmul.mubr.bf16.gmra.mxu0 %v1602
    %v1927 = vpop.f32.mrf.mxu0
    %v1928 = vadd.f32 %v1755, %v1927
    %v1929 = vpop.f32.mrf.mxu0
    %v1930 = vpop.f32.mrf.mxu0
    %v1931 = vadd.f32 %v1755, %v1930
    %v1932 = vpop.f32.mrf.mxu0
    %1933 = vmatprep.mubr.bf16.mxu0 %v1605
    %1934 = vmatmul.mubr.bf16.gmra.mxu0 %v1604
    %v1935 = vpop.f32.mrf.mxu0
    %v1936 = vadd.f32 %v1755, %v1935
    %v1937 = vpop.f32.mrf.mxu0
    %v1938 = vpop.f32.mrf.mxu0
    %v1939 = vadd.f32 %v1755, %v1938
    %v1940 = vpop.f32.mrf.mxu0
    %1941 = vmatprep.mubr.bf16.mxu0 %v1607
    %1942 = vmatmul.mubr.bf16.gmra.mxu0 %v1606
    %v1943 = vpop.f32.mrf.mxu0
    %v1944 = vadd.f32 %v1755, %v1943
    %v1945 = vpop.f32.mrf.mxu0
    %v1946 = vpop.f32.mrf.mxu0
    %v1947 = vadd.f32 %v1755, %v1946
    %v1948 = vpop.f32.mrf.mxu0
    %1949 = vmatprep.mubr.bf16.mxu0 %v1609
    %1950 = vmatmul.mubr.bf16.gmra.mxu0 %v1608
    %v1951 = vpop.f32.mrf.mxu0
    %v1952 = vadd.f32 %v1755, %v1951
    %v1953 = vpop.f32.mrf.mxu0
    %v1954 = vpop.f32.mrf.mxu0
    %v1955 = vadd.f32 %v1755, %v1954
    %v1956 = vpop.f32.mrf.mxu0
    %1957 = vmatprep.mubr.bf16.mxu0 %v1611
    %1958 = vmatmul.mubr.bf16.gmra.mxu0 %v1610
    %v1959 = vpop.f32.mrf.mxu0
    %v1960 = vadd.f32 %v1755, %v1959
    %v1961 = vpop.f32.mrf.mxu0
    %v1962 = vpop.f32.mrf.mxu0
    %v1963 = vadd.f32 %v1755, %v1962
    %v1964 = vpop.f32.mrf.mxu0
    %1965 = vmatprep.mubr.bf16.mxu0 %v1613
    %1966 = vmatmul.mubr.bf16.gmra.mxu0 %v1612
    %v1967 = vpop.f32.mrf.mxu0
    %v1968 = vadd.f32 %v1755, %v1967
    %v1969 = vpop.f32.mrf.mxu0
    %v1970 = vpop.f32.mrf.mxu0
    %v1971 = vadd.f32 %v1755, %v1970
    %v1972 = vpop.f32.mrf.mxu0
    %1973 = vmatprep.mubr.bf16.mxu0 %v1615
    %1974 = vmatmul.mubr.bf16.gmra.mxu0 %v1614
    %v1975 = vpop.f32.mrf.mxu0
    %v1976 = vadd.f32 %v1755, %v1975
    %v1977 = vpop.f32.mrf.mxu0
    %v1978 = vpop.f32.mrf.mxu0
    %v1979 = vadd.f32 %v1755, %v1978
    %v1980 = vpop.f32.mrf.mxu0
    %1981 = vmatprep.mubr.bf16.mxu0 %v1617
    %1982 = vmatmul.mubr.bf16.gmra.mxu0 %v1616
    %v1983 = vpop.f32.mrf.mxu0
    %v1984 = vadd.f32 %v1755, %v1983
    %v1985 = vpop.f32.mrf.mxu0
    %v1986 = vpop.f32.mrf.mxu0
    %v1987 = vadd.f32 %v1755, %v1986
    %v1988 = vpop.f32.mrf.mxu0
    %1989 = vmatprep.mubr.bf16.mxu0 %v1619
    %1990 = vmatmul.mubr.bf16.gmra.mxu0 %v1618
    %v1991 = vpop.f32.mrf.mxu0
    %v1992 = vadd.f32 %v1755, %v1991
    %v1993 = vpop.f32.mrf.mxu0
    %v1994 = vpop.f32.mrf.mxu0
    %v1995 = vadd.f32 %v1755, %v1994
    %v1996 = vpop.f32.mrf.mxu0
    %1997 = vmatprep.mubr.bf16.mxu0 %v1621
    %1998 = vmatmul.mubr.bf16.gmra.mxu0 %v1620
    %v1999 = vpop.f32.mrf.mxu0
    %v2000 = vadd.f32 %v1755, %v1999
    %v2001 = vpop.f32.mrf.mxu0
    %v2002 = vpop.f32.mrf.mxu0
    %v2003 = vadd.f32 %v1755, %v2002
    %v2004 = vpop.f32.mrf.mxu0
    %2005 = vmatprep.mubr.bf16.mxu0 %v1623
    %2006 = vmatmul.mubr.bf16.gmra.mxu0 %v1622
    %v2007 = vpop.f32.mrf.mxu0
    %v2008 = vadd.f32 %v1755, %v2007
    %v2009 = vpop.f32.mrf.mxu0
    %v2010 = vpop.f32.mrf.mxu0
    %v2011 = vadd.f32 %v1755, %v2010
    %v2012 = vpop.f32.mrf.mxu0
    %2013 = vmatprep.mubr.bf16.mxu0 %v1625
    %2014 = vmatmul.mubr.bf16.gmra.mxu0 %v1624
    %v2015 = vpop.f32.mrf.mxu0
    %v2016 = vadd.f32 %v1755, %v2015
    %v2017 = vpop.f32.mrf.mxu0
    %v2018 = vpop.f32.mrf.mxu0
    %v2019 = vadd.f32 %v1755, %v2018
    %v2020 = vpop.f32.mrf.mxu0
    %2021 = vmatprep.mubr.bf16.mxu0 %v1627
    %2022 = vmatmul.mubr.bf16.gmra.mxu0 %v1626
    %v2023 = vpop.f32.mrf.mxu0
    %v2024 = vadd.f32 %v1755, %v2023
    %v2025 = vpop.f32.mrf.mxu0
    %v2026 = vpop.f32.mrf.mxu0
    %v2027 = vadd.f32 %v1755, %v2026
    %v2028 = vpop.f32.mrf.mxu0
    %2029 = vmatprep.mubr.bf16.mxu0 %v1629
    %2030 = vmatmul.mubr.bf16.gmra.mxu0 %v1628
    %v2031 = vpop.f32.mrf.mxu0
    %v2032 = vadd.f32 %v1755, %v2031
    %v2033 = vpop.f32.mrf.mxu0
    %v2034 = vpop.f32.mrf.mxu0
    %v2035 = vadd.f32 %v1755, %v2034
    %v2036 = vpop.f32.mrf.mxu0
    %2037 = vmatprep.mubr.bf16.mxu0 %v1631
    %2038 = vmatmul.mubr.bf16.gmra.mxu0 %v1630
    %v2039 = vpop.f32.mrf.mxu0
    %v2040 = vadd.f32 %v1755, %v2039
    %v2041 = vpop.f32.mrf.mxu0
    %v2042 = vpop.f32.mrf.mxu0
    %v2043 = vadd.f32 %v1755, %v2042
    %v2044 = vpop.f32.mrf.mxu0
    %2045 = vmatprep.mubr.bf16.mxu0 %v1633
    %2046 = vmatmul.mubr.bf16.gmra.mxu0 %v1632
    %v2047 = vpop.f32.mrf.mxu0
    %v2048 = vadd.f32 %v1755, %v2047
    %v2049 = vpop.f32.mrf.mxu0
    %v2050 = vpop.f32.mrf.mxu0
    %v2051 = vadd.f32 %v1755, %v2050
    %v2052 = vpop.f32.mrf.mxu0
    %2053 = vmatprep.mubr.bf16.mxu0 %v1635
    %2054 = vmatmul.mubr.bf16.gmra.mxu0 %v1634
    %v2055 = vpop.f32.mrf.mxu0
    %v2056 = vadd.f32 %v1755, %v2055
    %v2057 = vpop.f32.mrf.mxu0
    %v2058 = vpop.f32.mrf.mxu0
    %v2059 = vadd.f32 %v1755, %v2058
    %v2060 = vpop.f32.mrf.mxu0
    %2061 = vmatprep.mubr.bf16.mxu0 %v1637
    %2062 = vmatmul.mubr.bf16.gmra.mxu0 %v1636
    %v2063 = vpop.f32.mrf.mxu0
    %v2064 = vadd.f32 %v1755, %v2063
    %v2065 = vpop.f32.mrf.mxu0
    %v2066 = vpop.f32.mrf.mxu0
    %v2067 = vadd.f32 %v1755, %v2066
    %v2068 = vpop.f32.mrf.mxu0
    %2069 = vmatprep.mubr.bf16.mxu0 %v1639
    %2070 = vmatmul.mubr.bf16.gmra.mxu0 %v1638
    %v2071 = vpop.f32.mrf.mxu0
    %v2072 = vadd.f32 %v1755, %v2071
    %v2073 = vpop.f32.mrf.mxu0
    %v2074 = vpop.f32.mrf.mxu0
    %v2075 = vadd.f32 %v1755, %v2074
    %v2076 = vpop.f32.mrf.mxu0
    %2077 = vmatprep.mubr.bf16.mxu0 %v1641
    %2078 = vmatmul.mubr.bf16.gmra.mxu0 %v1640
    %v2079 = vpop.f32.mrf.mxu0
    %v2080 = vadd.f32 %v1755, %v2079
    %v2081 = vpop.f32.mrf.mxu0
    %v2082 = vpop.f32.mrf.mxu0
    %v2083 = vadd.f32 %v1755, %v2082
    %v2084 = vpop.f32.mrf.mxu0
    %2085 = vmatprep.mubr.bf16.mxu0 %v1643
    %2086 = vmatmul.mubr.bf16.gmra.mxu0 %v1642
    %v2087 = vpop.f32.mrf.mxu0
    %v2088 = vadd.f32 %v1755, %v2087
    %v2089 = vpop.f32.mrf.mxu0
    %v2090 = vpop.f32.mrf.mxu0
    %v2091 = vadd.f32 %v1755, %v2090
    %v2092 = vpop.f32.mrf.mxu0
    %2093 = vmatprep.mubr.bf16.mxu0 %v1645
    %2094 = vmatmul.mubr.bf16.gmra.mxu0 %v1644
    %v2095 = vpop.f32.mrf.mxu0
    %v2096 = vadd.f32 %v1755, %v2095
    %v2097 = vpop.f32.mrf.mxu0
    %v2098 = vpop.f32.mrf.mxu0
    %v2099 = vadd.f32 %v1755, %v2098
    %v2100 = vpop.f32.mrf.mxu0
    %2101 = vmatprep.mubr.bf16.mxu0 %v1647
    %2102 = vmatmul.mubr.bf16.gmra.mxu0 %v1646
    %v2103 = vpop.f32.mrf.mxu0
    %v2104 = vadd.f32 %v1755, %v2103
    %v2105 = vpop.f32.mrf.mxu0
    %v2106 = vpop.f32.mrf.mxu0
    %v2107 = vadd.f32 %v1755, %v2106
    %v2108 = vpop.f32.mrf.mxu0
    %2109 = vmatprep.mubr.bf16.mxu0 %v1649
    %2110 = vmatmul.mubr.bf16.gmra.mxu0 %v1648
    %v2111 = vpop.f32.mrf.mxu0
    %v2112 = vadd.f32 %v1755, %v2111
    %v2113 = vpop.f32.mrf.mxu0
    %v2114 = vpop.f32.mrf.mxu0
    %v2115 = vadd.f32 %v1755, %v2114
    %v2116 = vpop.f32.mrf.mxu0
    %2117 = vmatprep.mubr.bf16.mxu0 %v1651
    %2118 = vmatmul.mubr.bf16.gmra.mxu0 %v1650
    %v2119 = vpop.f32.mrf.mxu0
    %v2120 = vadd.f32 %v1755, %v2119
    %v2121 = vpop.f32.mrf.mxu0
    %v2122 = vpop.f32.mrf.mxu0
    %v2123 = vadd.f32 %v1755, %v2122
    %v2124 = vpop.f32.mrf.mxu0
    %2125 = vmatprep.mubr.bf16.mxu0 %v1653
    %2126 = vmatmul.mubr.bf16.gmra.mxu0 %v1652
    %v2127 = vpop.f32.mrf.mxu0
    %v2128 = vadd.f32 %v1755, %v2127
    %v2129 = vpop.f32.mrf.mxu0
    %v2130 = vpop.f32.mrf.mxu0
    %v2131 = vadd.f32 %v1755, %v2130
    %v2132 = vpop.f32.mrf.mxu0
    %2133 = vmatprep.mubr.bf16.mxu0 %v1655
    %2134 = vmatmul.mubr.bf16.gmra.mxu0 %v1654
    %v2135 = vpop.f32.mrf.mxu0
    %v2136 = vadd.f32 %v1755, %v2135
    %v2137 = vpop.f32.mrf.mxu0
    %v2138 = vpop.f32.mrf.mxu0
    %v2139 = vadd.f32 %v1755, %v2138
    %v2140 = vpop.f32.mrf.mxu0
    %2141 = vmatprep.mubr.bf16.mxu0 %v1657
    %2142 = vmatmul.mubr.bf16.gmra.mxu0 %v1656
    %v2143 = vpop.f32.mrf.mxu0
    %v2144 = vadd.f32 %v1755, %v2143
    %v2145 = vpop.f32.mrf.mxu0
    %v2146 = vpop.f32.mrf.mxu0
    %v2147 = vadd.f32 %v1755, %v2146
    %v2148 = vpop.f32.mrf.mxu0
    %2149 = vmatprep.mubr.bf16.mxu0 %v1659
    %2150 = vmatmul.mubr.bf16.gmra.mxu0 %v1658
    %v2151 = vpop.f32.mrf.mxu0
    %v2152 = vadd.f32 %v1755, %v2151
    %v2153 = vpop.f32.mrf.mxu0
    %v2154 = vpop.f32.mrf.mxu0
    %v2155 = vadd.f32 %v1755, %v2154
    %v2156 = vpop.f32.mrf.mxu0
    %2157 = vmatprep.mubr.bf16.mxu0 %v1661
    %2158 = vmatmul.mubr.bf16.gmra.mxu0 %v1660
    %v2159 = vpop.f32.mrf.mxu0
    %v2160 = vadd.f32 %v1755, %v2159
    %v2161 = vpop.f32.mrf.mxu0
    %v2162 = vpop.f32.mrf.mxu0
    %v2163 = vadd.f32 %v1755, %v2162
    %v2164 = vpop.f32.mrf.mxu0
    %2165 = vmatprep.mubr.bf16.mxu0 %v1663
    %2166 = vmatmul.mubr.bf16.gmra.mxu0 %v1662
    %v2167 = vpop.f32.mrf.mxu0
    %v2168 = vadd.f32 %v1755, %v2167
    %v2169 = vpop.f32.mrf.mxu0
    %v2170 = vpop.f32.mrf.mxu0
    %v2171 = vadd.f32 %v1755, %v2170
    %v2172 = vpop.f32.mrf.mxu0
    %2173 = vmatprep.mubr.bf16.mxu0 %v1665
    %2174 = vmatmul.mubr.bf16.gmra.mxu0 %v1664
    %v2175 = vpop.f32.mrf.mxu0
    %v2176 = vadd.f32 %v1755, %v2175
    %v2177 = vpop.f32.mrf.mxu0
    %v2178 = vpop.f32.mrf.mxu0
    %v2179 = vadd.f32 %v1755, %v2178
    %v2180 = vpop.f32.mrf.mxu0
    %2181 = vmatprep.mubr.bf16.mxu0 %v1667
    %2182 = vmatmul.mubr.bf16.gmra.mxu0 %v1666
    %v2183 = vpop.f32.mrf.mxu0
    %v2184 = vadd.f32 %v1755, %v2183
    %v2185 = vpop.f32.mrf.mxu0
    %v2186 = vpop.f32.mrf.mxu0
    %v2187 = vadd.f32 %v1755, %v2186
    %v2188 = vpop.f32.mrf.mxu0
    %2189 = vmatprep.mubr.bf16.mxu0 %v1669
    %2190 = vmatmul.mubr.bf16.gmra.mxu0 %v1668
    %v2191 = vpop.f32.mrf.mxu0
    %v2192 = vadd.f32 %v1755, %v2191
    %v2193 = vpop.f32.mrf.mxu0
    %v2194 = vpop.f32.mrf.mxu0
    %v2195 = vadd.f32 %v1755, %v2194
    %v2196 = vpop.f32.mrf.mxu0
    %2197 = vmatprep.mubr.bf16.mxu0 %v1671
    %2198 = vmatmul.mubr.bf16.gmra.mxu0 %v1670
    %v2199 = vpop.f32.mrf.mxu0
    %v2200 = vadd.f32 %v1755, %v2199
    %v2201 = vpop.f32.mrf.mxu0
    %v2202 = vpop.f32.mrf.mxu0
    %v2203 = vadd.f32 %v1755, %v2202
    %v2204 = vpop.f32.mrf.mxu0
    %2205 = vmatprep.mubr.bf16.mxu0 %v1673
    %2206 = vmatmul.mubr.bf16.gmra.mxu0 %v1672
    %v2207 = vpop.f32.mrf.mxu0
    %v2208 = vadd.f32 %v1755, %v2207
    %v2209 = vpop.f32.mrf.mxu0
    %v2210 = vpop.f32.mrf.mxu0
    %v2211 = vadd.f32 %v1755, %v2210
    %v2212 = vpop.f32.mrf.mxu0
    %2213 = vmatprep.mubr.bf16.mxu0 %v1675
    %2214 = vmatmul.mubr.bf16.gmra.mxu0 %v1674
    %v2215 = vpop.f32.mrf.mxu0
    %v2216 = vadd.f32 %v1755, %v2215
    %v2217 = vpop.f32.mrf.mxu0
    %v2218 = vpop.f32.mrf.mxu0
    %v2219 = vadd.f32 %v1755, %v2218
    %v2220 = vpop.f32.mrf.mxu0
    %2221 = vmatprep.mubr.bf16.mxu0 %v1677
    %2222 = vmatmul.mubr.bf16.gmra.mxu0 %v1676
    %v2223 = vpop.f32.mrf.mxu0
    %v2224 = vadd.f32 %v1755, %v2223
    %v2225 = vpop.f32.mrf.mxu0
    %v2226 = vpop.f32.mrf.mxu0
    %v2227 = vadd.f32 %v1755, %v2226
    %v2228 = vpop.f32.mrf.mxu0
    %2229 = vmatprep.mubr.bf16.mxu0 %v1679
    %2230 = vmatmul.mubr.bf16.gmra.mxu0 %v1678
    %v2231 = vpop.f32.mrf.mxu0
    %v2232 = vadd.f32 %v1755, %v2231
    %v2233 = vpop.f32.mrf.mxu0
    %v2234 = vpop.f32.mrf.mxu0
    %v2235 = vadd.f32 %v1755, %v2234
    %v2236 = vpop.f32.mrf.mxu0
    %2237 = vmatprep.mubr.bf16.mxu0 %v1681
    %2238 = vmatmul.mubr.bf16.gmra.mxu0 %v1680
    %v2239 = vpop.f32.mrf.mxu0
    %v2240 = vadd.f32 %v1755, %v2239
    %v2241 = vpop.f32.mrf.mxu0
    %v2242 = vpop.f32.mrf.mxu0
    %v2243 = vadd.f32 %v1755, %v2242
    %v2244 = vpop.f32.mrf.mxu0
    %2245 = vmatprep.mubr.bf16.mxu0 %v1683
    %2246 = vmatmul.mubr.bf16.gmra.mxu0 %v1682
    %v2247 = vpop.f32.mrf.mxu0
    %v2248 = vadd.f32 %v1755, %v2247
    %v2249 = vpop.f32.mrf.mxu0
    %v2250 = vpop.f32.mrf.mxu0
    %v2251 = vadd.f32 %v1755, %v2250
    %v2252 = vpop.f32.mrf.mxu0
    %2253 = vmatprep.mubr.bf16.mxu0 %v1685
    %2254 = vmatmul.mubr.bf16.gmra.mxu0 %v1684
    %v2255 = vpop.f32.mrf.mxu0
    %v2256 = vadd.f32 %v1755, %v2255
    %v2257 = vpop.f32.mrf.mxu0
    %v2258 = vpop.f32.mrf.mxu0
    %v2259 = vadd.f32 %v1755, %v2258
    %v2260 = vpop.f32.mrf.mxu0
    %2261 = vmatprep.mubr.bf16.mxu0 %v1687
    %2262 = vmatmul.mubr.bf16.gmra.mxu0 %v1686
    %v2263 = vpop.f32.mrf.mxu0
    %v2264 = vadd.f32 %v1755, %v2263
    %v2265 = vpop.f32.mrf.mxu0
    %v2266 = vpop.f32.mrf.mxu0
    %v2267 = vadd.f32 %v1755, %v2266
    %v2268 = vpop.f32.mrf.mxu0
    %2269 = vmatprep.mubr.bf16.mxu0 %v1689
    %2270 = vmatmul.mubr.bf16.gmra.mxu0 %v1688
    %v2271 = vpop.f32.mrf.mxu0
    %v2272 = vadd.f32 %v1755, %v2271
    %v2273 = vpop.f32.mrf.mxu0
    %v2274 = vpop.f32.mrf.mxu0
    %v2275 = vadd.f32 %v1755, %v2274
    %v2276 = vpop.f32.mrf.mxu0
    %2277 = vmatprep.mubr.bf16.mxu0 %v1691
    %2278 = vmatmul.mubr.bf16.gmra.mxu0 %v1690
    %v2279 = vpop.f32.mrf.mxu0
    %v2280 = vadd.f32 %v1755, %v2279
    %v2281 = vpop.f32.mrf.mxu0
    %v2282 = vpop.f32.mrf.mxu0
    %v2283 = vadd.f32 %v1755, %v2282
    %v2284 = vpop.f32.mrf.mxu0
    %2285 = vmatprep.mubr.bf16.mxu0 %v1693
    %2286 = vmatmul.mubr.bf16.gmra.mxu0 %v1692
    %v2287 = vpop.f32.mrf.mxu0
    %v2288 = vadd.f32 %v1755, %v2287
    %v2289 = vpop.f32.mrf.mxu0
    %v2290 = vpop.f32.mrf.mxu0
    %v2291 = vadd.f32 %v1755, %v2290
    %v2292 = vpop.f32.mrf.mxu0
    %2293 = vmatprep.mubr.bf16.mxu0 %v1695
    %2294 = vmatmul.mubr.bf16.gmra.mxu0 %v1694
    %v2295 = vpop.f32.mrf.mxu0
    %v2296 = vadd.f32 %v1755, %v2295
    %v2297 = vpop.f32.mrf.mxu0
    %v2298 = vpop.f32.mrf.mxu0
    %v2299 = vadd.f32 %v1755, %v2298
    %v2300 = vpop.f32.mrf.mxu0
    %2301 = vmatprep.mubr.bf16.mxu0 %v1697
    %2302 = vmatmul.mubr.bf16.gmra.mxu0 %v1696
    %v2303 = vpop.f32.mrf.mxu0
    %v2304 = vadd.f32 %v1755, %v2303
    %v2305 = vpop.f32.mrf.mxu0
    %v2306 = vpop.f32.mrf.mxu0
    %v2307 = vadd.f32 %v1755, %v2306
    %v2308 = vpop.f32.mrf.mxu0
    %2309 = vmatprep.mubr.bf16.mxu0 %v1699
    %2310 = vmatmul.mubr.bf16.gmra.mxu0 %v1698
    %v2311 = vpop.f32.mrf.mxu0
    %v2312 = vadd.f32 %v1755, %v2311
    %v2313 = vpop.f32.mrf.mxu0
    %v2314 = vpop.f32.mrf.mxu0
    %v2315 = vadd.f32 %v1755, %v2314
    %v2316 = vpop.f32.mrf.mxu0
    %2317 = vmatprep.mubr.bf16.mxu0 %v1701
    %2318 = vmatmul.mubr.bf16.gmra.mxu0 %v1700
    %v2319 = vpop.f32.mrf.mxu0
    %v2320 = vadd.f32 %v1755, %v2319
    %v2321 = vpop.f32.mrf.mxu0
    %v2322 = vpop.f32.mrf.mxu0
    %v2323 = vadd.f32 %v1755, %v2322
    %v2324 = vpop.f32.mrf.mxu0
    %2325 = vmatprep.mubr.bf16.mxu0 %v1703
    %2326 = vmatmul.mubr.bf16.gmra.mxu0 %v1702
    %v2327 = vpop.f32.mrf.mxu0
    %v2328 = vadd.f32 %v1755, %v2327
    %v2329 = vpop.f32.mrf.mxu0
    %v2330 = vpop.f32.mrf.mxu0
    %v2331 = vadd.f32 %v1755, %v2330
    %v2332 = vpop.f32.mrf.mxu0
    %2333 = vmatprep.mubr.bf16.mxu0 %v1705
    %2334 = vmatmul.mubr.bf16.gmra.mxu0 %v1704
    %v2335 = vpop.f32.mrf.mxu0
    %v2336 = vadd.f32 %v1755, %v2335
    %v2337 = vpop.f32.mrf.mxu0
    %v2338 = vpop.f32.mrf.mxu0
    %v2339 = vadd.f32 %v1755, %v2338
    %v2340 = vpop.f32.mrf.mxu0
    %2341 = vmatprep.mubr.bf16.mxu0 %v1707
    %2342 = vmatmul.mubr.bf16.gmra.mxu0 %v1706
    %v2343 = vpop.f32.mrf.mxu0
    %v2344 = vadd.f32 %v1755, %v2343
    %v2345 = vpop.f32.mrf.mxu0
    %v2346 = vpop.f32.mrf.mxu0
    %v2347 = vadd.f32 %v1755, %v2346
    %v2348 = vpop.f32.mrf.mxu0
    %2349 = vmatprep.mubr.bf16.mxu0 %v1709
    %2350 = vmatmul.mubr.bf16.gmra.mxu0 %v1708
    %v2351 = vpop.f32.mrf.mxu0
    %v2352 = vadd.f32 %v1755, %v2351
    %v2353 = vpop.f32.mrf.mxu0
    %v2354 = vpop.f32.mrf.mxu0
    %v2355 = vadd.f32 %v1755, %v2354
    %v2356 = vpop.f32.mrf.mxu0
    %2357 = vmatprep.mubr.bf16.mxu0 %v1711
    %2358 = vmatmul.mubr.bf16.gmra.mxu0 %v1710
    %v2359 = vpop.f32.mrf.mxu0
    %v2360 = vadd.f32 %v1755, %v2359
    %v2361 = vpop.f32.mrf.mxu0
    %v2362 = vpop.f32.mrf.mxu0
    %v2363 = vadd.f32 %v1755, %v2362
    %v2364 = vpop.f32.mrf.mxu0
    %2365 = vmatprep.mubr.bf16.mxu0 %v1713
    %2366 = vmatmul.mubr.bf16.gmra.mxu0 %v1712
    %v2367 = vpop.f32.mrf.mxu0
    %v2368 = vadd.f32 %v1755, %v2367
    %v2369 = vpop.f32.mrf.mxu0
    %v2370 = vpop.f32.mrf.mxu0
    %v2371 = vadd.f32 %v1755, %v2370
    %v2372 = vpop.f32.mrf.mxu0
    %2373 = vmatprep.mubr.bf16.mxu0 %v1715
    %2374 = vmatmul.mubr.bf16.gmra.mxu0 %v1714
    %v2375 = vpop.f32.mrf.mxu0
    %v2376 = vadd.f32 %v1755, %v2375
    %v2377 = vpop.f32.mrf.mxu0
    %v2378 = vpop.f32.mrf.mxu0
    %v2379 = vadd.f32 %v1755, %v2378
    %v2380 = vpop.f32.mrf.mxu0
    %2381 = vmatprep.mubr.bf16.mxu0 %v1717
    %2382 = vmatmul.mubr.bf16.gmra.mxu0 %v1716
    %v2383 = vpop.f32.mrf.mxu0
    %v2384 = vadd.f32 %v1755, %v2383
    %v2385 = vpop.f32.mrf.mxu0
    %v2386 = vpop.f32.mrf.mxu0
    %v2387 = vpop.f32.mrf.mxu0
    %2388 = vdwg.mxu0
    %v2389 = vmax.f32 %v1888, 0.0
    %v2390 = vmax.f32 %v1891, 0.0
    %v2391 = vmax.f32 %v1896, 0.0
    %v2392 = vmax.f32 %v1899, 0.0
    %v2393 = vmax.f32 %v1904, 0.0
    %v2394 = vmax.f32 %v1907, 0.0
    %v2395 = vmax.f32 %v1912, 0.0
    %v2396 = vmax.f32 %v1915, 0.0
    %v2397 = vmax.f32 %v1920, 0.0
    %v2398 = vmax.f32 %v1923, 0.0
    %v2399 = vmax.f32 %v1928, 0.0
    %v2400 = vmax.f32 %v1931, 0.0
    %v2401 = vmax.f32 %v1936, 0.0
    %v2402 = vmax.f32 %v1939, 0.0
    %v2403 = vmax.f32 %v1944, 0.0
    %v2404 = vmax.f32 %v1947, 0.0
    %v2405 = vmax.f32 %v1952, 0.0
    %v2406 = vmax.f32 %v1955, 0.0
    %v2407 = vmax.f32 %v1960, 0.0
    %v2408 = vmax.f32 %v1963, 0.0
    %v2409 = vmax.f32 %v1968, 0.0
    %v2410 = vmax.f32 %v1971, 0.0
    %v2411 = vmax.f32 %v1976, 0.0
    %v2412 = vmax.f32 %v1979, 0.0
    %v2413 = vmax.f32 %v1984, 0.0
    %v2414 = vmax.f32 %v1987, 0.0
    %v2415 = vmax.f32 %v1992, 0.0
    %v2416 = vmax.f32 %v1995, 0.0
    %v2417 = vmax.f32 %v2000, 0.0
    %v2418 = vmax.f32 %v2003, 0.0
    %v2419 = vmax.f32 %v2008, 0.0
    %v2420 = vmax.f32 %v2011, 0.0
    %v2421 = vmax.f32 %v2016, 0.0
    %v2422 = vmax.f32 %v2019, 0.0
    %v2423 = vmax.f32 %v2024, 0.0
    %v2424 = vmax.f32 %v2027, 0.0
    %v2425 = vmax.f32 %v2032, 0.0
    %v2426 = vmax.f32 %v2035, 0.0
    %v2427 = vmax.f32 %v2040, 0.0
    %v2428 = vmax.f32 %v2043, 0.0
    %v2429 = vmax.f32 %v2048, 0.0
    %v2430 = vmax.f32 %v2051, 0.0
    %v2431 = vmax.f32 %v2056, 0.0
    %v2432 = vmax.f32 %v2059, 0.0
    %v2433 = vmax.f32 %v2064, 0.0
    %v2434 = vmax.f32 %v2067, 0.0
    %v2435 = vmax.f32 %v2072, 0.0
    %v2436 = vmax.f32 %v2075, 0.0
    %v2437 = vmax.f32 %v2080, 0.0
    %v2438 = vmax.f32 %v2083, 0.0
    %v2439 = vmax.f32 %v2088, 0.0
    %v2440 = vmax.f32 %v2091, 0.0
    %v2441 = vmax.f32 %v2096, 0.0
    %v2442 = vmax.f32 %v2099, 0.0
    %v2443 = vmax.f32 %v2104, 0.0
    %v2444 = vmax.f32 %v2107, 0.0
    %v2445 = vmax.f32 %v2112, 0.0
    %v2446 = vmax.f32 %v2115, 0.0
    %v2447 = vmax.f32 %v2120, 0.0
    %v2448 = vmax.f32 %v2123, 0.0
    %v2449 = vmax.f32 %v2128, 0.0
    %v2450 = vmax.f32 %v2131, 0.0
    %v2451 = vmax.f32 %v2136, 0.0
    %v2452 = vmax.f32 %v2139, 0.0
    %v2453 = vmax.f32 %v2144, 0.0
    %v2454 = vmax.f32 %v2147, 0.0
    %v2455 = vmax.f32 %v2152, 0.0
    %v2456 = vmax.f32 %v2155, 0.0
    %v2457 = vmax.f32 %v2160, 0.0
    %v2458 = vmax.f32 %v2163, 0.0
    %v2459 = vmax.f32 %v2168, 0.0
    %v2460 = vmax.f32 %v2171, 0.0
    %v2461 = vmax.f32 %v2176, 0.0
    %v2462 = vmax.f32 %v2179, 0.0
    %v2463 = vmax.f32 %v2184, 0.0
    %v2464 = vmax.f32 %v2187, 0.0
    %v2465 = vmax.f32 %v2192, 0.0
    %v2466 = vmax.f32 %v2195, 0.0
    %v2467 = vmax.f32 %v2200, 0.0
    %v2468 = vmax.f32 %v2203, 0.0
    %v2469 = vmax.f32 %v2208, 0.0
    %v2470 = vmax.f32 %v2211, 0.0
    %v2471 = vmax.f32 %v2216, 0.0
    %v2472 = vmax.f32 %v2219, 0.0
    %v2473 = vmax.f32 %v2224, 0.0
    %v2474 = vmax.f32 %v2227, 0.0
    %v2475 = vmax.f32 %v2232, 0.0
    %v2476 = vmax.f32 %v2235, 0.0
    %v2477 = vmax.f32 %v2240, 0.0
    %v2478 = vmax.f32 %v2243, 0.0
    %v2479 = vmax.f32 %v2248, 0.0
    %v2480 = vmax.f32 %v2251, 0.0
    %v2481 = vmax.f32 %v2256, 0.0
    %v2482 = vmax.f32 %v2259, 0.0
    %v2483 = vmax.f32 %v2264, 0.0
    %v2484 = vmax.f32 %v2267, 0.0
    %v2485 = vmax.f32 %v2272, 0.0
    %v2486 = vmax.f32 %v2275, 0.0
    %v2487 = vmax.f32 %v2280, 0.0
    %v2488 = vmax.f32 %v2283, 0.0
    %v2489 = vmax.f32 %v2288, 0.0
    %v2490 = vmax.f32 %v2291, 0.0
    %v2491 = vmax.f32 %v2296, 0.0
    %v2492 = vmax.f32 %v2299, 0.0
    %v2493 = vmax.f32 %v2304, 0.0
    %v2494 = vmax.f32 %v2307, 0.0
    %v2495 = vmax.f32 %v2312, 0.0
    %v2496 = vmax.f32 %v2315, 0.0
    %v2497 = vmax.f32 %v2320, 0.0
    %v2498 = vmax.f32 %v2323, 0.0
    %v2499 = vmax.f32 %v2328, 0.0
    %v2500 = vmax.f32 %v2331, 0.0
    %v2501 = vmax.f32 %v2336, 0.0
    %v2502 = vmax.f32 %v2339, 0.0
    %v2503 = vmax.f32 %v2344, 0.0
    %v2504 = vmax.f32 %v2347, 0.0
    %v2505 = vmax.f32 %v2352, 0.0
    %v2506 = vmax.f32 %v2355, 0.0
    %v2507 = vmax.f32 %v2360, 0.0
    %v2508 = vmax.f32 %v2363, 0.0
    %v2509 = vmax.f32 %v2368, 0.0
    %v2510 = vmax.f32 %v2371, 0.0
    %v2511 = vmax.f32 %v2376, 0.0
    %v2512 = vmax.f32 %v2379, 0.0
    %v2513 = vmax.f32 %v2384, 0.0
    %v2514 = vpack.c.bf16 %v2390, %v2389
    %v2515 = vpack.c.bf16 %v2392, %v2391
    %v2516 = vpack.c.bf16 %v2394, %v2393
    %v2517 = vpack.c.bf16 %v2396, %v2395
    %v2518 = vpack.c.bf16 %v2398, %v2397
    %v2519 = vpack.c.bf16 %v2400, %v2399
    %v2520 = vpack.c.bf16 %v2402, %v2401
    %v2521 = vpack.c.bf16 %v2404, %v2403
    %v2522 = vpack.c.bf16 %v2406, %v2405
    %v2523 = vpack.c.bf16 %v2408, %v2407
    %v2524 = vpack.c.bf16 %v2410, %v2409
    %v2525 = vpack.c.bf16 %v2412, %v2411
    %v2526 = vpack.c.bf16 %v2414, %v2413
    %v2527 = vpack.c.bf16 %v2416, %v2415
    %v2528 = vpack.c.bf16 %v2418, %v2417
    %v2529 = vpack.c.bf16 %v2420, %v2419
    %v2530 = vpack.c.bf16 %v2422, %v2421
    %v2531 = vpack.c.bf16 %v2424, %v2423
    %v2532 = vpack.c.bf16 %v2426, %v2425
    %v2533 = vpack.c.bf16 %v2428, %v2427
    %v2534 = vpack.c.bf16 %v2430, %v2429
    %v2535 = vpack.c.bf16 %v2432, %v2431
    %v2536 = vpack.c.bf16 %v2434, %v2433
    %v2537 = vpack.c.bf16 %v2436, %v2435
    %v2538 = vpack.c.bf16 %v2438, %v2437
    %v2539 = vpack.c.bf16 %v2440, %v2439
    %v2540 = vpack.c.bf16 %v2442, %v2441
    %v2541 = vpack.c.bf16 %v2444, %v2443
    %v2542 = vpack.c.bf16 %v2446, %v2445
    %v2543 = vpack.c.bf16 %v2448, %v2447
    %v2544 = vpack.c.bf16 %v2450, %v2449
    %v2545 = vpack.c.bf16 %v2452, %v2451
    %v2546 = vpack.c.bf16 %v2454, %v2453
    %v2547 = vpack.c.bf16 %v2456, %v2455
    %v2548 = vpack.c.bf16 %v2458, %v2457
    %v2549 = vpack.c.bf16 %v2460, %v2459
    %v2550 = vpack.c.bf16 %v2462, %v2461
    %v2551 = vpack.c.bf16 %v2464, %v2463
    %v2552 = vpack.c.bf16 %v2466, %v2465
    %v2553 = vpack.c.bf16 %v2468, %v2467
    %v2554 = vpack.c.bf16 %v2470, %v2469
    %v2555 = vpack.c.bf16 %v2472, %v2471
    %v2556 = vpack.c.bf16 %v2474, %v2473
    %v2557 = vpack.c.bf16 %v2476, %v2475
    %v2558 = vpack.c.bf16 %v2478, %v2477
    %v2559 = vpack.c.bf16 %v2480, %v2479
    %v2560 = vpack.c.bf16 %v2482, %v2481
    %v2561 = vpack.c.bf16 %v2484, %v2483
    %v2562 = vpack.c.bf16 %v2486, %v2485
    %v2563 = vpack.c.bf16 %v2488, %v2487
    %v2564 = vpack.c.bf16 %v2490, %v2489
    %v2565 = vpack.c.bf16 %v2492, %v2491
    %v2566 = vpack.c.bf16 %v2494, %v2493
    %v2567 = vpack.c.bf16 %v2496, %v2495
    %v2568 = vpack.c.bf16 %v2498, %v2497
    %v2569 = vpack.c.bf16 %v2500, %v2499
    %v2570 = vpack.c.bf16 %v2502, %v2501
    %v2571 = vpack.c.bf16 %v2504, %v2503
    %v2572 = vpack.c.bf16 %v2506, %v2505
    %v2573 = vpack.c.bf16 %v2508, %v2507
    %v2574 = vpack.c.bf16 %v2510, %v2509
    %v2575 = vpack.c.bf16 %v2512, %v2511
    %v2576 = vpack.c.bf16 %v2513, %v2513
    %v2577 = vld [vmem:[%s6] sm:$0xf]
    %v2578 = vld [vmem:[%s6 + $0x4] sm:$0xf]
    %v2579 = vld [vmem:[%s6 + $0x8] sm:$0xf]
    %v2580 = vld [vmem:[%s6 + $0xc] sm:$0xf]
    %v2581 = vld [vmem:[%s6 + $0x10] sm:$0xf]
    %v2582 = vld [vmem:[%s6 + $0x14] sm:$0xf]
    %v2583 = vld [vmem:[%s6 + $0x18] sm:$0xf]
    %v2584 = vld [vmem:[%s6 + $0x1c] sm:$0xf]
    %v2593 = vunpack.c.l.b16 %v2577
    %v2594 = vunpack.c.l.b16 %v2578
    %v2595 = vunpack.c.l.b16 %v2579
    %v2596 = vunpack.c.l.b16 %v2580
    %v2597 = vunpack.c.l.b16 %v2581
    %v2598 = vunpack.c.l.b16 %v2582
    %v2599 = vunpack.c.l.b16 %v2583
    %v2600 = vunpack.c.l.b16 %v2584
    %v2601 = vpack.c.b16 %v2594, %v2593
    %v2602 = vpack.c.b16 %v2596, %v2595
    %v2603 = vpack.c.b16 %v2598, %v2597
    %v2604 = vpack.c.b16 %v2600, %v2599
    %vm2609 = vcmask 523264
    %v2611 = vsel %vm2609, %v2514, 0
    %v2614 = vsel %vm2609, %v2515, 0
    %v2617 = vsel %vm2609, %v2516, 0
    %v2620 = vsel %vm2609, %v2517, 0
    %v2623 = vsel %vm2609, %v2518, 0
    %v2626 = vsel %vm2609, %v2519, 0
    %v2629 = vsel %vm2609, %v2520, 0
    %v2632 = vsel %vm2609, %v2521, 0
    %v2635 = vsel %vm2609, %v2522, 0
    %v2638 = vsel %vm2609, %v2523, 0
    %v2641 = vsel %vm2609, %v2524, 0
    %v2644 = vsel %vm2609, %v2525, 0
    %v2647 = vsel %vm2609, %v2526, 0
    %v2650 = vsel %vm2609, %v2527, 0
    %v2653 = vsel %vm2609, %v2528, 0
    %v2656 = vsel %vm2609, %v2529, 0
    %v2659 = vsel %vm2609, %v2530, 0
    %v2662 = vsel %vm2609, %v2531, 0
    %v2665 = vsel %vm2609, %v2532, 0
    %v2668 = vsel %vm2609, %v2533, 0
    %v2671 = vsel %vm2609, %v2534, 0
    %v2674 = vsel %vm2609, %v2535, 0
    %v2677 = vsel %vm2609, %v2536, 0
    %v2680 = vsel %vm2609, %v2537, 0
    %v2683 = vsel %vm2609, %v2538, 0
    %v2686 = vsel %vm2609, %v2539, 0
    %v2689 = vsel %vm2609, %v2540, 0
    %v2692 = vsel %vm2609, %v2541, 0
    %v2695 = vsel %vm2609, %v2542, 0
    %v2698 = vsel %vm2609, %v2543, 0
    %v2701 = vsel %vm2609, %v2544, 0
    %v2704 = vsel %vm2609, %v2545, 0
    %v2707 = vsel %vm2609, %v2546, 0
    %v2710 = vsel %vm2609, %v2547, 0
    %v2713 = vsel %vm2609, %v2548, 0
    %v2716 = vsel %vm2609, %v2549, 0
    %v2719 = vsel %vm2609, %v2550, 0
    %v2722 = vsel %vm2609, %v2551, 0
    %v2725 = vsel %vm2609, %v2552, 0
    %v2728 = vsel %vm2609, %v2553, 0
    %v2731 = vsel %vm2609, %v2554, 0
    %v2734 = vsel %vm2609, %v2555, 0
    %v2737 = vsel %vm2609, %v2556, 0
    %v2740 = vsel %vm2609, %v2557, 0
    %v2743 = vsel %vm2609, %v2558, 0
    %v2746 = vsel %vm2609, %v2559, 0
    %v2749 = vsel %vm2609, %v2560, 0
    %v2752 = vsel %vm2609, %v2561, 0
    %v2755 = vsel %vm2609, %v2562, 0
    %v2758 = vsel %vm2609, %v2563, 0
    %v2761 = vsel %vm2609, %v2564, 0
    %v2764 = vsel %vm2609, %v2565, 0
    %v2767 = vsel %vm2609, %v2566, 0
    %v2770 = vsel %vm2609, %v2567, 0
    %v2773 = vsel %vm2609, %v2568, 0
    %v2776 = vsel %vm2609, %v2569, 0
    %v2779 = vsel %vm2609, %v2570, 0
    %v2782 = vsel %vm2609, %v2571, 0
    %v2785 = vsel %vm2609, %v2572, 0
    %v2788 = vsel %vm2609, %v2573, 0
    %v2791 = vsel %vm2609, %v2574, 0
    %v2794 = vsel %vm2609, %v2575, 0
    %v2797 = vsel %vm2609, %v2576, 0
    %2799 = vmatprep.subr.bf16.mxu0 0
    %2800 = vmatpush1.bf16.msra.mxu0 0
    %2801 = vmatprep.subr.bf16.mxu0 0
    %2802 = vmatpush1.bf16.msra.mxu0 0
    %2803 = vmatprep.subr.bf16.mxu0 0
    %2804 = vmatpush1.bf16.msra.mxu0 0
    %2805 = vmatprep.subr.bf16.mxu0 0
    %2806 = vmatpush1.bf16.msra.mxu0 0
    %2807 = vmatprep.subr.bf16.mxu0 0
    %2808 = vmatpush1.bf16.msra.mxu0 %v2604
    %2809 = vmatprep.subr.bf16.mxu0 0
    %2810 = vmatpush1.bf16.msra.mxu0 %v2603
    %2811 = vmatprep.subr.bf16.mxu0 0
    %2812 = vmatpush1.bf16.msra.mxu0 %v2602
    %2813 = vmatprep.subr.bf16.mxu0 0
    %2814 = vmatpush1.bf16.msra.mxu0 %v2601
    %2815 = vmatprep.subr.bf16.mxu0 0
    %2816 = vmatpush2.bf16.msra.mxu0 0
    %2817 = vmatprep.subr.bf16.mxu0 0
    %2818 = vmatpush2.bf16.msra.mxu0 0
    %2819 = vmatprep.subr.bf16.mxu0 0
    %2820 = vmatpush2.bf16.msra.mxu0 0
    %2821 = vmatprep.subr.bf16.mxu0 0
    %2822 = vmatpush2.bf16.msra.mxu0 0
    %2823 = vmatprep.subr.bf16.mxu0 0
    %2824 = vmatpush2.bf16.msra.mxu0 0
    %2825 = vmatprep.subr.bf16.mxu0 0
    %2826 = vmatpush2.bf16.msra.mxu0 0
    %2827 = vmatprep.subr.bf16.mxu0 0
    %2828 = vmatpush2.bf16.msra.mxu0 0
    %2829 = vmatprep.subr.bf16.mxu0 0
    %2830 = vmatpush2.bf16.msra.mxu0 0
    %2831 = vmatprep.mubr.bf16.mxu0 0
    %2832 = vmatmul.mubr.bf16.gmra.mxu0 %v2611
    %v2833 = vpop.f32.mrf.mxu0
    %v2834 = vadd.f32 0.0, %v2833
    %v2835 = vpop.f32.mrf.mxu0
    %v2836 = vpop.f32.mrf.mxu0
    %v2837 = vadd.f32 0.0, %v2836
    %v2838 = vpop.f32.mrf.mxu0
    %2839 = vmatprep.mubr.bf16.mxu0 0
    %2840 = vmatmul.mubr.bf16.gmra.mxu0 %v2614
    %v2841 = vpop.f32.mrf.mxu0
    %v2842 = vadd.f32 0.0, %v2841
    %v2843 = vpop.f32.mrf.mxu0
    %v2844 = vpop.f32.mrf.mxu0
    %v2845 = vadd.f32 0.0, %v2844
    %v2846 = vpop.f32.mrf.mxu0
    %2847 = vmatprep.mubr.bf16.mxu0 0
    %2848 = vmatmul.mubr.bf16.gmra.mxu0 %v2617
    %v2849 = vpop.f32.mrf.mxu0
    %v2850 = vadd.f32 0.0, %v2849
    %v2851 = vpop.f32.mrf.mxu0
    %v2852 = vpop.f32.mrf.mxu0
    %v2853 = vadd.f32 0.0, %v2852
    %v2854 = vpop.f32.mrf.mxu0
    %2855 = vmatprep.mubr.bf16.mxu0 0
    %2856 = vmatmul.mubr.bf16.gmra.mxu0 %v2620
    %v2857 = vpop.f32.mrf.mxu0
    %v2858 = vadd.f32 0.0, %v2857
    %v2859 = vpop.f32.mrf.mxu0
    %v2860 = vpop.f32.mrf.mxu0
    %v2861 = vadd.f32 0.0, %v2860
    %v2862 = vpop.f32.mrf.mxu0
    %2863 = vmatprep.mubr.bf16.mxu0 0
    %2864 = vmatmul.mubr.bf16.gmra.mxu0 %v2623
    %v2865 = vpop.f32.mrf.mxu0
    %v2866 = vadd.f32 0.0, %v2865
    %v2867 = vpop.f32.mrf.mxu0
    %v2868 = vpop.f32.mrf.mxu0
    %v2869 = vadd.f32 0.0, %v2868
    %v2870 = vpop.f32.mrf.mxu0
    %2871 = vmatprep.mubr.bf16.mxu0 0
    %2872 = vmatmul.mubr.bf16.gmra.mxu0 %v2626
    %v2873 = vpop.f32.mrf.mxu0
    %v2874 = vadd.f32 0.0, %v2873
    %v2875 = vpop.f32.mrf.mxu0
    %v2876 = vpop.f32.mrf.mxu0
    %v2877 = vadd.f32 0.0, %v2876
    %v2878 = vpop.f32.mrf.mxu0
    %2879 = vmatprep.mubr.bf16.mxu0 0
    %2880 = vmatmul.mubr.bf16.gmra.mxu0 %v2629
    %v2881 = vpop.f32.mrf.mxu0
    %v2882 = vadd.f32 0.0, %v2881
    %v2883 = vpop.f32.mrf.mxu0
    %v2884 = vpop.f32.mrf.mxu0
    %v2885 = vadd.f32 0.0, %v2884
    %v2886 = vpop.f32.mrf.mxu0
    %2887 = vmatprep.mubr.bf16.mxu0 0
    %2888 = vmatmul.mubr.bf16.gmra.mxu0 %v2632
    %v2889 = vpop.f32.mrf.mxu0
    %v2890 = vadd.f32 0.0, %v2889
    %v2891 = vpop.f32.mrf.mxu0
    %v2892 = vpop.f32.mrf.mxu0
    %v2893 = vadd.f32 0.0, %v2892
    %v2894 = vpop.f32.mrf.mxu0
    %2895 = vmatprep.mubr.bf16.mxu0 0
    %2896 = vmatmul.mubr.bf16.gmra.mxu0 %v2635
    %v2897 = vpop.f32.mrf.mxu0
    %v2898 = vadd.f32 0.0, %v2897
    %v2899 = vpop.f32.mrf.mxu0
    %v2900 = vpop.f32.mrf.mxu0
    %v2901 = vadd.f32 0.0, %v2900
    %v2902 = vpop.f32.mrf.mxu0
    %2903 = vmatprep.mubr.bf16.mxu0 0
    %2904 = vmatmul.mubr.bf16.gmra.mxu0 %v2638
    %v2905 = vpop.f32.mrf.mxu0
    %v2906 = vadd.f32 0.0, %v2905
    %v2907 = vpop.f32.mrf.mxu0
    %v2908 = vpop.f32.mrf.mxu0
    %v2909 = vadd.f32 0.0, %v2908
    %v2910 = vpop.f32.mrf.mxu0
    %2911 = vmatprep.mubr.bf16.mxu0 0
    %2912 = vmatmul.mubr.bf16.gmra.mxu0 %v2641
    %v2913 = vpop.f32.mrf.mxu0
    %v2914 = vadd.f32 0.0, %v2913
    %v2915 = vpop.f32.mrf.mxu0
    %v2916 = vpop.f32.mrf.mxu0
    %v2917 = vadd.f32 0.0, %v2916
    %v2918 = vpop.f32.mrf.mxu0
    %2919 = vmatprep.mubr.bf16.mxu0 0
    %2920 = vmatmul.mubr.bf16.gmra.mxu0 %v2644
    %v2921 = vpop.f32.mrf.mxu0
    %v2922 = vadd.f32 0.0, %v2921
    %v2923 = vpop.f32.mrf.mxu0
    %v2924 = vpop.f32.mrf.mxu0
    %v2925 = vadd.f32 0.0, %v2924
    %v2926 = vpop.f32.mrf.mxu0
    %2927 = vmatprep.mubr.bf16.mxu0 0
    %2928 = vmatmul.mubr.bf16.gmra.mxu0 %v2647
    %v2929 = vpop.f32.mrf.mxu0
    %v2930 = vadd.f32 0.0, %v2929
    %v2931 = vpop.f32.mrf.mxu0
    %v2932 = vpop.f32.mrf.mxu0
    %v2933 = vadd.f32 0.0, %v2932
    %v2934 = vpop.f32.mrf.mxu0
    %2935 = vmatprep.mubr.bf16.mxu0 0
    %2936 = vmatmul.mubr.bf16.gmra.mxu0 %v2650
    %v2937 = vpop.f32.mrf.mxu0
    %v2938 = vadd.f32 0.0, %v2937
    %v2939 = vpop.f32.mrf.mxu0
    %v2940 = vpop.f32.mrf.mxu0
    %v2941 = vadd.f32 0.0, %v2940
    %v2942 = vpop.f32.mrf.mxu0
    %2943 = vmatprep.mubr.bf16.mxu0 0
    %2944 = vmatmul.mubr.bf16.gmra.mxu0 %v2653
    %v2945 = vpop.f32.mrf.mxu0
    %v2946 = vadd.f32 0.0, %v2945
    %v2947 = vpop.f32.mrf.mxu0
    %v2948 = vpop.f32.mrf.mxu0
    %v2949 = vadd.f32 0.0, %v2948
    %v2950 = vpop.f32.mrf.mxu0
    %2951 = vmatprep.mubr.bf16.mxu0 0
    %2952 = vmatmul.mubr.bf16.gmra.mxu0 %v2656
    %v2953 = vpop.f32.mrf.mxu0
    %v2954 = vadd.f32 0.0, %v2953
    %v2955 = vpop.f32.mrf.mxu0
    %v2956 = vpop.f32.mrf.mxu0
    %v2957 = vadd.f32 0.0, %v2956
    %v2958 = vpop.f32.mrf.mxu0
    %2959 = vmatprep.mubr.bf16.mxu0 0
    %2960 = vmatmul.mubr.bf16.gmra.mxu0 %v2659
    %v2961 = vpop.f32.mrf.mxu0
    %v2962 = vadd.f32 0.0, %v2961
    %v2963 = vpop.f32.mrf.mxu0
    %v2964 = vpop.f32.mrf.mxu0
    %v2965 = vadd.f32 0.0, %v2964
    %v2966 = vpop.f32.mrf.mxu0
    %2967 = vmatprep.mubr.bf16.mxu0 0
    %2968 = vmatmul.mubr.bf16.gmra.mxu0 %v2662
    %v2969 = vpop.f32.mrf.mxu0
    %v2970 = vadd.f32 0.0, %v2969
    %v2971 = vpop.f32.mrf.mxu0
    %v2972 = vpop.f32.mrf.mxu0
    %v2973 = vadd.f32 0.0, %v2972
    %v2974 = vpop.f32.mrf.mxu0
    %2975 = vmatprep.mubr.bf16.mxu0 0
    %2976 = vmatmul.mubr.bf16.gmra.mxu0 %v2665
    %v2977 = vpop.f32.mrf.mxu0
    %v2978 = vadd.f32 0.0, %v2977
    %v2979 = vpop.f32.mrf.mxu0
    %v2980 = vpop.f32.mrf.mxu0
    %v2981 = vadd.f32 0.0, %v2980
    %v2982 = vpop.f32.mrf.mxu0
    %2983 = vmatprep.mubr.bf16.mxu0 0
    %2984 = vmatmul.mubr.bf16.gmra.mxu0 %v2668
    %v2985 = vpop.f32.mrf.mxu0
    %v2986 = vadd.f32 0.0, %v2985
    %v2987 = vpop.f32.mrf.mxu0
    %v2988 = vpop.f32.mrf.mxu0
    %v2989 = vadd.f32 0.0, %v2988
    %v2990 = vpop.f32.mrf.mxu0
    %2991 = vmatprep.mubr.bf16.mxu0 0
    %2992 = vmatmul.mubr.bf16.gmra.mxu0 %v2671
    %v2993 = vpop.f32.mrf.mxu0
    %v2994 = vadd.f32 0.0, %v2993
    %v2995 = vpop.f32.mrf.mxu0
    %v2996 = vpop.f32.mrf.mxu0
    %v2997 = vadd.f32 0.0, %v2996
    %v2998 = vpop.f32.mrf.mxu0
    %2999 = vmatprep.mubr.bf16.mxu0 0
    %3000 = vmatmul.mubr.bf16.gmra.mxu0 %v2674
    %v3001 = vpop.f32.mrf.mxu0
    %v3002 = vadd.f32 0.0, %v3001
    %v3003 = vpop.f32.mrf.mxu0
    %v3004 = vpop.f32.mrf.mxu0
    %v3005 = vadd.f32 0.0, %v3004
    %v3006 = vpop.f32.mrf.mxu0
    %3007 = vmatprep.mubr.bf16.mxu0 0
    %3008 = vmatmul.mubr.bf16.gmra.mxu0 %v2677
    %v3009 = vpop.f32.mrf.mxu0
    %v3010 = vadd.f32 0.0, %v3009
    %v3011 = vpop.f32.mrf.mxu0
    %v3012 = vpop.f32.mrf.mxu0
    %v3013 = vadd.f32 0.0, %v3012
    %v3014 = vpop.f32.mrf.mxu0
    %3015 = vmatprep.mubr.bf16.mxu0 0
    %3016 = vmatmul.mubr.bf16.gmra.mxu0 %v2680
    %v3017 = vpop.f32.mrf.mxu0
    %v3018 = vadd.f32 0.0, %v3017
    %v3019 = vpop.f32.mrf.mxu0
    %v3020 = vpop.f32.mrf.mxu0
    %v3021 = vadd.f32 0.0, %v3020
    %v3022 = vpop.f32.mrf.mxu0
    %3023 = vmatprep.mubr.bf16.mxu0 0
    %3024 = vmatmul.mubr.bf16.gmra.mxu0 %v2683
    %v3025 = vpop.f32.mrf.mxu0
    %v3026 = vadd.f32 0.0, %v3025
    %v3027 = vpop.f32.mrf.mxu0
    %v3028 = vpop.f32.mrf.mxu0
    %v3029 = vadd.f32 0.0, %v3028
    %v3030 = vpop.f32.mrf.mxu0
    %3031 = vmatprep.mubr.bf16.mxu0 0
    %3032 = vmatmul.mubr.bf16.gmra.mxu0 %v2686
    %v3033 = vpop.f32.mrf.mxu0
    %v3034 = vadd.f32 0.0, %v3033
    %v3035 = vpop.f32.mrf.mxu0
    %v3036 = vpop.f32.mrf.mxu0
    %v3037 = vadd.f32 0.0, %v3036
    %v3038 = vpop.f32.mrf.mxu0
    %3039 = vmatprep.mubr.bf16.mxu0 0
    %3040 = vmatmul.mubr.bf16.gmra.mxu0 %v2689
    %v3041 = vpop.f32.mrf.mxu0
    %v3042 = vadd.f32 0.0, %v3041
    %v3043 = vpop.f32.mrf.mxu0
    %v3044 = vpop.f32.mrf.mxu0
    %v3045 = vadd.f32 0.0, %v3044
    %v3046 = vpop.f32.mrf.mxu0
    %3047 = vmatprep.mubr.bf16.mxu0 0
    %3048 = vmatmul.mubr.bf16.gmra.mxu0 %v2692
    %v3049 = vpop.f32.mrf.mxu0
    %v3050 = vadd.f32 0.0, %v3049
    %v3051 = vpop.f32.mrf.mxu0
    %v3052 = vpop.f32.mrf.mxu0
    %v3053 = vadd.f32 0.0, %v3052
    %v3054 = vpop.f32.mrf.mxu0
    %3055 = vmatprep.mubr.bf16.mxu0 0
    %3056 = vmatmul.mubr.bf16.gmra.mxu0 %v2695
    %v3057 = vpop.f32.mrf.mxu0
    %v3058 = vadd.f32 0.0, %v3057
    %v3059 = vpop.f32.mrf.mxu0
    %v3060 = vpop.f32.mrf.mxu0
    %v3061 = vadd.f32 0.0, %v3060
    %v3062 = vpop.f32.mrf.mxu0
    %3063 = vmatprep.mubr.bf16.mxu0 0
    %3064 = vmatmul.mubr.bf16.gmra.mxu0 %v2698
    %v3065 = vpop.f32.mrf.mxu0
    %v3066 = vadd.f32 0.0, %v3065
    %v3067 = vpop.f32.mrf.mxu0
    %v3068 = vpop.f32.mrf.mxu0
    %v3069 = vadd.f32 0.0, %v3068
    %v3070 = vpop.f32.mrf.mxu0
    %3071 = vmatprep.mubr.bf16.mxu0 0
    %3072 = vmatmul.mubr.bf16.gmra.mxu0 %v2701
    %v3073 = vpop.f32.mrf.mxu0
    %v3074 = vadd.f32 0.0, %v3073
    %v3075 = vpop.f32.mrf.mxu0
    %v3076 = vpop.f32.mrf.mxu0
    %v3077 = vadd.f32 0.0, %v3076
    %v3078 = vpop.f32.mrf.mxu0
    %3079 = vmatprep.mubr.bf16.mxu0 0
    %3080 = vmatmul.mubr.bf16.gmra.mxu0 %v2704
    %v3081 = vpop.f32.mrf.mxu0
    %v3082 = vadd.f32 0.0, %v3081
    %v3083 = vpop.f32.mrf.mxu0
    %v3084 = vpop.f32.mrf.mxu0
    %v3085 = vadd.f32 0.0, %v3084
    %v3086 = vpop.f32.mrf.mxu0
    %3087 = vmatprep.mubr.bf16.mxu0 0
    %3088 = vmatmul.mubr.bf16.gmra.mxu0 %v2707
    %v3089 = vpop.f32.mrf.mxu0
    %v3090 = vadd.f32 0.0, %v3089
    %v3091 = vpop.f32.mrf.mxu0
    %v3092 = vpop.f32.mrf.mxu0
    %v3093 = vadd.f32 0.0, %v3092
    %v3094 = vpop.f32.mrf.mxu0
    %3095 = vmatprep.mubr.bf16.mxu0 0
    %3096 = vmatmul.mubr.bf16.gmra.mxu0 %v2710
    %v3097 = vpop.f32.mrf.mxu0
    %v3098 = vadd.f32 0.0, %v3097
    %v3099 = vpop.f32.mrf.mxu0
    %v3100 = vpop.f32.mrf.mxu0
    %v3101 = vadd.f32 0.0, %v3100
    %v3102 = vpop.f32.mrf.mxu0
    %3103 = vmatprep.mubr.bf16.mxu0 0
    %3104 = vmatmul.mubr.bf16.gmra.mxu0 %v2713
    %v3105 = vpop.f32.mrf.mxu0
    %v3106 = vadd.f32 0.0, %v3105
    %v3107 = vpop.f32.mrf.mxu0
    %v3108 = vpop.f32.mrf.mxu0
    %v3109 = vadd.f32 0.0, %v3108
    %v3110 = vpop.f32.mrf.mxu0
    %3111 = vmatprep.mubr.bf16.mxu0 0
    %3112 = vmatmul.mubr.bf16.gmra.mxu0 %v2716
    %v3113 = vpop.f32.mrf.mxu0
    %v3114 = vadd.f32 0.0, %v3113
    %v3115 = vpop.f32.mrf.mxu0
    %v3116 = vpop.f32.mrf.mxu0
    %v3117 = vadd.f32 0.0, %v3116
    %v3118 = vpop.f32.mrf.mxu0
    %3119 = vmatprep.mubr.bf16.mxu0 0
    %3120 = vmatmul.mubr.bf16.gmra.mxu0 %v2719
    %v3121 = vpop.f32.mrf.mxu0
    %v3122 = vadd.f32 0.0, %v3121
    %v3123 = vpop.f32.mrf.mxu0
    %v3124 = vpop.f32.mrf.mxu0
    %v3125 = vadd.f32 0.0, %v3124
    %v3126 = vpop.f32.mrf.mxu0
    %3127 = vmatprep.mubr.bf16.mxu0 0
    %3128 = vmatmul.mubr.bf16.gmra.mxu0 %v2722
    %v3129 = vpop.f32.mrf.mxu0
    %v3130 = vadd.f32 0.0, %v3129
    %v3131 = vpop.f32.mrf.mxu0
    %v3132 = vpop.f32.mrf.mxu0
    %v3133 = vadd.f32 0.0, %v3132
    %v3134 = vpop.f32.mrf.mxu0
    %3135 = vmatprep.mubr.bf16.mxu0 0
    %3136 = vmatmul.mubr.bf16.gmra.mxu0 %v2725
    %v3137 = vpop.f32.mrf.mxu0
    %v3138 = vadd.f32 0.0, %v3137
    %v3139 = vpop.f32.mrf.mxu0
    %v3140 = vpop.f32.mrf.mxu0
    %v3141 = vadd.f32 0.0, %v3140
    %v3142 = vpop.f32.mrf.mxu0
    %3143 = vmatprep.mubr.bf16.mxu0 0
    %3144 = vmatmul.mubr.bf16.gmra.mxu0 %v2728
    %v3145 = vpop.f32.mrf.mxu0
    %v3146 = vadd.f32 0.0, %v3145
    %v3147 = vpop.f32.mrf.mxu0
    %v3148 = vpop.f32.mrf.mxu0
    %v3149 = vadd.f32 0.0, %v3148
    %v3150 = vpop.f32.mrf.mxu0
    %3151 = vmatprep.mubr.bf16.mxu0 0
    %3152 = vmatmul.mubr.bf16.gmra.mxu0 %v2731
    %v3153 = vpop.f32.mrf.mxu0
    %v3154 = vadd.f32 0.0, %v3153
    %v3155 = vpop.f32.mrf.mxu0
    %v3156 = vpop.f32.mrf.mxu0
    %v3157 = vadd.f32 0.0, %v3156
    %v3158 = vpop.f32.mrf.mxu0
    %3159 = vmatprep.mubr.bf16.mxu0 0
    %3160 = vmatmul.mubr.bf16.gmra.mxu0 %v2734
    %v3161 = vpop.f32.mrf.mxu0
    %v3162 = vadd.f32 0.0, %v3161
    %v3163 = vpop.f32.mrf.mxu0
    %v3164 = vpop.f32.mrf.mxu0
    %v3165 = vadd.f32 0.0, %v3164
    %v3166 = vpop.f32.mrf.mxu0
    %3167 = vmatprep.mubr.bf16.mxu0 0
    %3168 = vmatmul.mubr.bf16.gmra.mxu0 %v2737
    %v3169 = vpop.f32.mrf.mxu0
    %v3170 = vadd.f32 0.0, %v3169
    %v3171 = vpop.f32.mrf.mxu0
    %v3172 = vpop.f32.mrf.mxu0
    %v3173 = vadd.f32 0.0, %v3172
    %v3174 = vpop.f32.mrf.mxu0
    %3175 = vmatprep.mubr.bf16.mxu0 0
    %3176 = vmatmul.mubr.bf16.gmra.mxu0 %v2740
    %v3177 = vpop.f32.mrf.mxu0
    %v3178 = vadd.f32 0.0, %v3177
    %v3179 = vpop.f32.mrf.mxu0
    %v3180 = vpop.f32.mrf.mxu0
    %v3181 = vadd.f32 0.0, %v3180
    %v3182 = vpop.f32.mrf.mxu0
    %3183 = vmatprep.mubr.bf16.mxu0 0
    %3184 = vmatmul.mubr.bf16.gmra.mxu0 %v2743
    %v3185 = vpop.f32.mrf.mxu0
    %v3186 = vadd.f32 0.0, %v3185
    %v3187 = vpop.f32.mrf.mxu0
    %v3188 = vpop.f32.mrf.mxu0
    %v3189 = vadd.f32 0.0, %v3188
    %v3190 = vpop.f32.mrf.mxu0
    %3191 = vmatprep.mubr.bf16.mxu0 0
    %3192 = vmatmul.mubr.bf16.gmra.mxu0 %v2746
    %v3193 = vpop.f32.mrf.mxu0
    %v3194 = vadd.f32 0.0, %v3193
    %v3195 = vpop.f32.mrf.mxu0
    %v3196 = vpop.f32.mrf.mxu0
    %v3197 = vadd.f32 0.0, %v3196
    %v3198 = vpop.f32.mrf.mxu0
    %3199 = vmatprep.mubr.bf16.mxu0 0
    %3200 = vmatmul.mubr.bf16.gmra.mxu0 %v2749
    %v3201 = vpop.f32.mrf.mxu0
    %v3202 = vadd.f32 0.0, %v3201
    %v3203 = vpop.f32.mrf.mxu0
    %v3204 = vpop.f32.mrf.mxu0
    %v3205 = vadd.f32 0.0, %v3204
    %v3206 = vpop.f32.mrf.mxu0
    %3207 = vmatprep.mubr.bf16.mxu0 0
    %3208 = vmatmul.mubr.bf16.gmra.mxu0 %v2752
    %v3209 = vpop.f32.mrf.mxu0
    %v3210 = vadd.f32 0.0, %v3209
    %v3211 = vpop.f32.mrf.mxu0
    %v3212 = vpop.f32.mrf.mxu0
    %v3213 = vadd.f32 0.0, %v3212
    %v3214 = vpop.f32.mrf.mxu0
    %3215 = vmatprep.mubr.bf16.mxu0 0
    %3216 = vmatmul.mubr.bf16.gmra.mxu0 %v2755
    %v3217 = vpop.f32.mrf.mxu0
    %v3218 = vadd.f32 0.0, %v3217
    %v3219 = vpop.f32.mrf.mxu0
    %v3220 = vpop.f32.mrf.mxu0
    %v3221 = vadd.f32 0.0, %v3220
    %v3222 = vpop.f32.mrf.mxu0
    %3223 = vmatprep.mubr.bf16.mxu0 0
    %3224 = vmatmul.mubr.bf16.gmra.mxu0 %v2758
    %v3225 = vpop.f32.mrf.mxu0
    %v3226 = vadd.f32 0.0, %v3225
    %v3227 = vpop.f32.mrf.mxu0
    %v3228 = vpop.f32.mrf.mxu0
    %v3229 = vadd.f32 0.0, %v3228
    %v3230 = vpop.f32.mrf.mxu0
    %3231 = vmatprep.mubr.bf16.mxu0 0
    %3232 = vmatmul.mubr.bf16.gmra.mxu0 %v2761
    %v3233 = vpop.f32.mrf.mxu0
    %v3234 = vadd.f32 0.0, %v3233
    %v3235 = vpop.f32.mrf.mxu0
    %v3236 = vpop.f32.mrf.mxu0
    %v3237 = vadd.f32 0.0, %v3236
    %v3238 = vpop.f32.mrf.mxu0
    %3239 = vmatprep.mubr.bf16.mxu0 0
    %3240 = vmatmul.mubr.bf16.gmra.mxu0 %v2764
    %v3241 = vpop.f32.mrf.mxu0
    %v3242 = vadd.f32 0.0, %v3241
    %v3243 = vpop.f32.mrf.mxu0
    %v3244 = vpop.f32.mrf.mxu0
    %v3245 = vadd.f32 0.0, %v3244
    %v3246 = vpop.f32.mrf.mxu0
    %3247 = vmatprep.mubr.bf16.mxu0 0
    %3248 = vmatmul.mubr.bf16.gmra.mxu0 %v2767
    %v3249 = vpop.f32.mrf.mxu0
    %v3250 = vadd.f32 0.0, %v3249
    %v3251 = vpop.f32.mrf.mxu0
    %v3252 = vpop.f32.mrf.mxu0
    %v3253 = vadd.f32 0.0, %v3252
    %v3254 = vpop.f32.mrf.mxu0
    %3255 = vmatprep.mubr.bf16.mxu0 0
    %3256 = vmatmul.mubr.bf16.gmra.mxu0 %v2770
    %v3257 = vpop.f32.mrf.mxu0
    %v3258 = vadd.f32 0.0, %v3257
    %v3259 = vpop.f32.mrf.mxu0
    %v3260 = vpop.f32.mrf.mxu0
    %v3261 = vadd.f32 0.0, %v3260
    %v3262 = vpop.f32.mrf.mxu0
    %3263 = vmatprep.mubr.bf16.mxu0 0
    %3264 = vmatmul.mubr.bf16.gmra.mxu0 %v2773
    %v3265 = vpop.f32.mrf.mxu0
    %v3266 = vadd.f32 0.0, %v3265
    %v3267 = vpop.f32.mrf.mxu0
    %v3268 = vpop.f32.mrf.mxu0
    %v3269 = vadd.f32 0.0, %v3268
    %v3270 = vpop.f32.mrf.mxu0
    %3271 = vmatprep.mubr.bf16.mxu0 0
    %3272 = vmatmul.mubr.bf16.gmra.mxu0 %v2776
    %v3273 = vpop.f32.mrf.mxu0
    %v3274 = vadd.f32 0.0, %v3273
    %v3275 = vpop.f32.mrf.mxu0
    %v3276 = vpop.f32.mrf.mxu0
    %v3277 = vadd.f32 0.0, %v3276
    %v3278 = vpop.f32.mrf.mxu0
    %3279 = vmatprep.mubr.bf16.mxu0 0
    %3280 = vmatmul.mubr.bf16.gmra.mxu0 %v2779
    %v3281 = vpop.f32.mrf.mxu0
    %v3282 = vadd.f32 0.0, %v3281
    %v3283 = vpop.f32.mrf.mxu0
    %v3284 = vpop.f32.mrf.mxu0
    %v3285 = vadd.f32 0.0, %v3284
    %v3286 = vpop.f32.mrf.mxu0
    %3287 = vmatprep.mubr.bf16.mxu0 0
    %3288 = vmatmul.mubr.bf16.gmra.mxu0 %v2782
    %v3289 = vpop.f32.mrf.mxu0
    %v3290 = vadd.f32 0.0, %v3289
    %v3291 = vpop.f32.mrf.mxu0
    %v3292 = vpop.f32.mrf.mxu0
    %v3293 = vadd.f32 0.0, %v3292
    %v3294 = vpop.f32.mrf.mxu0
    %3295 = vmatprep.mubr.bf16.mxu0 0
    %3296 = vmatmul.mubr.bf16.gmra.mxu0 %v2785
    %v3297 = vpop.f32.mrf.mxu0
    %v3298 = vadd.f32 0.0, %v3297
    %v3299 = vpop.f32.mrf.mxu0
    %v3300 = vpop.f32.mrf.mxu0
    %v3301 = vadd.f32 0.0, %v3300
    %v3302 = vpop.f32.mrf.mxu0
    %3303 = vmatprep.mubr.bf16.mxu0 0
    %3304 = vmatmul.mubr.bf16.gmra.mxu0 %v2788
    %v3305 = vpop.f32.mrf.mxu0
    %v3306 = vadd.f32 0.0, %v3305
    %v3307 = vpop.f32.mrf.mxu0
    %v3308 = vpop.f32.mrf.mxu0
    %v3309 = vadd.f32 0.0, %v3308
    %v3310 = vpop.f32.mrf.mxu0
    %3311 = vmatprep.mubr.bf16.mxu0 0
    %3312 = vmatmul.mubr.bf16.gmra.mxu0 %v2791
    %v3313 = vpop.f32.mrf.mxu0
    %v3314 = vadd.f32 0.0, %v3313
    %v3315 = vpop.f32.mrf.mxu0
    %v3316 = vpop.f32.mrf.mxu0
    %v3317 = vadd.f32 0.0, %v3316
    %v3318 = vpop.f32.mrf.mxu0
    %3319 = vmatprep.mubr.bf16.mxu0 0
    %3320 = vmatmul.mubr.bf16.gmra.mxu0 %v2794
    %v3321 = vpop.f32.mrf.mxu0
    %v3322 = vadd.f32 0.0, %v3321
    %v3323 = vpop.f32.mrf.mxu0
    %v3324 = vpop.f32.mrf.mxu0
    %v3325 = vadd.f32 0.0, %v3324
    %v3326 = vpop.f32.mrf.mxu0
    %3327 = vmatprep.mubr.bf16.mxu0 0
    %3328 = vmatmul.mubr.bf16.gmra.mxu0 %v2797
    %v3329 = vpop.f32.mrf.mxu0
    %v3330 = vadd.f32 0.0, %v3329
    %v3331 = vpop.f32.mrf.mxu0
    %v3332 = vpop.f32.mrf.mxu0
    %v3333 = vpop.f32.mrf.mxu0
    %3334 = vdwg.mxu0
    %v3335 = vlaneseq
    %v3336 = vshrl.u32 %v3335, 7
    %v3337 = vld [vmem:[%s62] sm:$0xff]
    %v3338 = vlaneseq
    %v3339 = vshrl.u32 %v3338, 7
    %v3340 = vsub.s32 0, %v3339
    %v3341 = vrot.slane %v3337, %v3340
    %v3342 = vlaneseq
    %v3343 = vshrl.u32 %v3342, 7
    %v3344 = vsub.s32 1, %v3343
    %v3345 = vrot.slane %v3337, %v3344
    %v3346 = vlaneseq
    %v3347 = vshrl.u32 %v3346, 7
    %v3348 = vsub.s32 2, %v3347
    %v3349 = vrot.slane %v3337, %v3348
    %v3350 = vlaneseq
    %v3351 = vshrl.u32 %v3350, 7
    %v3352 = vsub.s32 3, %v3351
    %v3353 = vrot.slane %v3337, %v3352
    %v3354 = vlaneseq
    %v3355 = vshrl.u32 %v3354, 7
    %v3356 = vsub.s32 4, %v3355
    %v3357 = vrot.slane %v3337, %v3356
    %v3358 = vlaneseq
    %v3359 = vshrl.u32 %v3358, 7
    %v3360 = vsub.s32 5, %v3359
    %v3361 = vrot.slane %v3337, %v3360
    %v3362 = vlaneseq
    %v3363 = vshrl.u32 %v3362, 7
    %v3364 = vsub.s32 6, %v3363
    %v3365 = vrot.slane %v3337, %v3364
    %v3366 = vlaneseq
    %v3367 = vshrl.u32 %v3366, 7
    %v3368 = vsub.s32 7, %v3367
    %v3369 = vrot.slane %v3337, %v3368
    %vm3370 = vcmp.eq.s32.totalorder %v3336, %v3341
    %vm3371 = vcmp.eq.s32.totalorder %v3336, %v3345
    %vm3372 = vcmp.eq.s32.totalorder %v3336, %v3349
    %vm3373 = vcmp.eq.s32.totalorder %v3336, %v3353
    %vm3374 = vcmp.eq.s32.totalorder %v3336, %v3357
    %vm3375 = vcmp.eq.s32.totalorder %v3336, %v3361
    %vm3376 = vcmp.eq.s32.totalorder %v3336, %v3365
    %vm3377 = vcmp.eq.s32.totalorder %v3336, %v3369
    %v3378 = vsel %vm3370, 1, 0
    %v3379 = vsel %vm3371, 1, 0
    %v3380 = vsel %vm3372, 1, 0
    %v3381 = vsel %vm3373, 1, 0
    %v3382 = vsel %vm3374, 1, 0
    %v3383 = vsel %vm3375, 1, 0
    %v3384 = vsel %vm3376, 1, 0
    %v3385 = vsel %vm3377, 1, 0
    %v3386 = vcvt.s32.f32 %v3378
    %v3387 = vcvt.s32.f32 %v3379
    %v3388 = vcvt.s32.f32 %v3380
    %v3389 = vcvt.s32.f32 %v3381
    %v3390 = vcvt.s32.f32 %v3382
    %v3391 = vcvt.s32.f32 %v3383
    %v3392 = vcvt.s32.f32 %v3384
    %v3393 = vcvt.s32.f32 %v3385
    %v3394 = vpack.c.bf16 %v3386, %v3386
    %v3395 = vpack.c.bf16 %v3387, %v3387
    %v3396 = vpack.c.bf16 %v3388, %v3388
    %v3397 = vpack.c.bf16 %v3389, %v3389
    %v3398 = vpack.c.bf16 %v3390, %v3390
    %v3399 = vpack.c.bf16 %v3391, %v3391
    %v3400 = vpack.c.bf16 %v3392, %v3392
    %v3401 = vpack.c.bf16 %v3393, %v3393
    %v3402 = vlaneseq
    %v3403 = vand.u32 %v3402, 127
    %vm3404 = vcmp.eq.s32.totalorder %v3403, 0
    %3406 = vset.pattern.permute.xlu0 0
    %3407 = vperm.xlu0 %3406, %v2834
    %v3408 = vpop.permute.xlu0 %3407
    %3411 = vset.pattern.permute.xlu0 0
    %3412 = vperm.xlu0 %3411, %v2837
    %v3413 = vpop.permute.xlu0 %3412
    %3416 = vset.pattern.permute.xlu0 0
    %3417 = vperm.xlu0 %3416, %v2842
    %v3418 = vpop.permute.xlu0 %3417
    %3421 = vset.pattern.permute.xlu0 0
    %3422 = vperm.xlu0 %3421, %v2845
    %v3423 = vpop.permute.xlu0 %3422
    %3426 = vset.pattern.permute.xlu0 0
    %3427 = vperm.xlu0 %3426, %v2850
    %v3428 = vpop.permute.xlu0 %3427
    %3431 = vset.pattern.permute.xlu0 0
    %3432 = vperm.xlu0 %3431, %v2853
    %v3433 = vpop.permute.xlu0 %3432
    %3436 = vset.pattern.permute.xlu0 0
    %3437 = vperm.xlu0 %3436, %v2858
    %v3438 = vpop.permute.xlu0 %3437
    %3441 = vset.pattern.permute.xlu0 0
    %3442 = vperm.xlu0 %3441, %v2861
    %v3443 = vpop.permute.xlu0 %3442
    %3446 = vset.pattern.permute.xlu0 0
    %3447 = vperm.xlu0 %3446, %v2866
    %v3448 = vpop.permute.xlu0 %3447
    %3451 = vset.pattern.permute.xlu0 0
    %3452 = vperm.xlu0 %3451, %v2869
    %v3453 = vpop.permute.xlu0 %3452
    %3456 = vset.pattern.permute.xlu0 0
    %3457 = vperm.xlu0 %3456, %v2874
    %v3458 = vpop.permute.xlu0 %3457
    %3461 = vset.pattern.permute.xlu0 0
    %3462 = vperm.xlu0 %3461, %v2877
    %v3463 = vpop.permute.xlu0 %3462
    %3466 = vset.pattern.permute.xlu0 0
    %3467 = vperm.xlu0 %3466, %v2882
    %v3468 = vpop.permute.xlu0 %3467
    %3471 = vset.pattern.permute.xlu0 0
    %3472 = vperm.xlu0 %3471, %v2885
    %v3473 = vpop.permute.xlu0 %3472
    %3476 = vset.pattern.permute.xlu0 0
    %3477 = vperm.xlu0 %3476, %v2890
    %v3478 = vpop.permute.xlu0 %3477
    %3481 = vset.pattern.permute.xlu0 0
    %3482 = vperm.xlu0 %3481, %v2893
    %v3483 = vpop.permute.xlu0 %3482
    %3486 = vset.pattern.permute.xlu0 0
    %3487 = vperm.xlu0 %3486, %v2898
    %v3488 = vpop.permute.xlu0 %3487
    %3491 = vset.pattern.permute.xlu0 0
    %3492 = vperm.xlu0 %3491, %v2901
    %v3493 = vpop.permute.xlu0 %3492
    %3496 = vset.pattern.permute.xlu0 0
    %3497 = vperm.xlu0 %3496, %v2906
    %v3498 = vpop.permute.xlu0 %3497
    %3501 = vset.pattern.permute.xlu0 0
    %3502 = vperm.xlu0 %3501, %v2909
    %v3503 = vpop.permute.xlu0 %3502
    %3506 = vset.pattern.permute.xlu0 0
    %3507 = vperm.xlu0 %3506, %v2914
    %v3508 = vpop.permute.xlu0 %3507
    %3511 = vset.pattern.permute.xlu0 0
    %3512 = vperm.xlu0 %3511, %v2917
    %v3513 = vpop.permute.xlu0 %3512
    %3516 = vset.pattern.permute.xlu0 0
    %3517 = vperm.xlu0 %3516, %v2922
    %v3518 = vpop.permute.xlu0 %3517
    %3521 = vset.pattern.permute.xlu0 0
    %3522 = vperm.xlu0 %3521, %v2925
    %v3523 = vpop.permute.xlu0 %3522
    %3526 = vset.pattern.permute.xlu0 0
    %3527 = vperm.xlu0 %3526, %v2930
    %v3528 = vpop.permute.xlu0 %3527
    %3531 = vset.pattern.permute.xlu0 0
    %3532 = vperm.xlu0 %3531, %v2933
    %v3533 = vpop.permute.xlu0 %3532
    %3536 = vset.pattern.permute.xlu0 0
    %3537 = vperm.xlu0 %3536, %v2938
    %v3538 = vpop.permute.xlu0 %3537
    %3541 = vset.pattern.permute.xlu0 0
    %3542 = vperm.xlu0 %3541, %v2941
    %v3543 = vpop.permute.xlu0 %3542
    %3546 = vset.pattern.permute.xlu0 0
    %3547 = vperm.xlu0 %3546, %v2946
    %v3548 = vpop.permute.xlu0 %3547
    %3551 = vset.pattern.permute.xlu0 0
    %3552 = vperm.xlu0 %3551, %v2949
    %v3553 = vpop.permute.xlu0 %3552
    %3556 = vset.pattern.permute.xlu0 0
    %3557 = vperm.xlu0 %3556, %v2954
    %v3558 = vpop.permute.xlu0 %3557
    %3561 = vset.pattern.permute.xlu0 0
    %3562 = vperm.xlu0 %3561, %v2957
    %v3563 = vpop.permute.xlu0 %3562
    %3566 = vset.pattern.permute.xlu0 0
    %3567 = vperm.xlu0 %3566, %v2962
    %v3568 = vpop.permute.xlu0 %3567
    %3571 = vset.pattern.permute.xlu0 0
    %3572 = vperm.xlu0 %3571, %v2965
    %v3573 = vpop.permute.xlu0 %3572
    %3576 = vset.pattern.permute.xlu0 0
    %3577 = vperm.xlu0 %3576, %v2970
    %v3578 = vpop.permute.xlu0 %3577
    %3581 = vset.pattern.permute.xlu0 0
    %3582 = vperm.xlu0 %3581, %v2973
    %v3583 = vpop.permute.xlu0 %3582
    %3586 = vset.pattern.permute.xlu0 0
    %3587 = vperm.xlu0 %3586, %v2978
    %v3588 = vpop.permute.xlu0 %3587
    %3591 = vset.pattern.permute.xlu0 0
    %3592 = vperm.xlu0 %3591, %v2981
    %v3593 = vpop.permute.xlu0 %3592
    %3596 = vset.pattern.permute.xlu0 0
    %3597 = vperm.xlu0 %3596, %v2986
    %v3598 = vpop.permute.xlu0 %3597
    %3601 = vset.pattern.permute.xlu0 0
    %3602 = vperm.xlu0 %3601, %v2989
    %v3603 = vpop.permute.xlu0 %3602
    %3606 = vset.pattern.permute.xlu0 0
    %3607 = vperm.xlu0 %3606, %v2994
    %v3608 = vpop.permute.xlu0 %3607
    %3611 = vset.pattern.permute.xlu0 0
    %3612 = vperm.xlu0 %3611, %v2997
    %v3613 = vpop.permute.xlu0 %3612
    %3616 = vset.pattern.permute.xlu0 0
    %3617 = vperm.xlu0 %3616, %v3002
    %v3618 = vpop.permute.xlu0 %3617
    %3621 = vset.pattern.permute.xlu0 0
    %3622 = vperm.xlu0 %3621, %v3005
    %v3623 = vpop.permute.xlu0 %3622
    %3626 = vset.pattern.permute.xlu0 0
    %3627 = vperm.xlu0 %3626, %v3010
    %v3628 = vpop.permute.xlu0 %3627
    %3631 = vset.pattern.permute.xlu0 0
    %3632 = vperm.xlu0 %3631, %v3013
    %v3633 = vpop.permute.xlu0 %3632
    %3636 = vset.pattern.permute.xlu0 0
    %3637 = vperm.xlu0 %3636, %v3018
    %v3638 = vpop.permute.xlu0 %3637
    %3641 = vset.pattern.permute.xlu0 0
    %3642 = vperm.xlu0 %3641, %v3021
    %v3643 = vpop.permute.xlu0 %3642
    %3646 = vset.pattern.permute.xlu0 0
    %3647 = vperm.xlu0 %3646, %v3026
    %v3648 = vpop.permute.xlu0 %3647
    %3651 = vset.pattern.permute.xlu0 0
    %3652 = vperm.xlu0 %3651, %v3029
    %v3653 = vpop.permute.xlu0 %3652
    %3656 = vset.pattern.permute.xlu0 0
    %3657 = vperm.xlu0 %3656, %v3034
    %v3658 = vpop.permute.xlu0 %3657
    %3661 = vset.pattern.permute.xlu0 0
    %3662 = vperm.xlu0 %3661, %v3037
    %v3663 = vpop.permute.xlu0 %3662
    %3666 = vset.pattern.permute.xlu0 0
    %3667 = vperm.xlu0 %3666, %v3042
    %v3668 = vpop.permute.xlu0 %3667
    %3671 = vset.pattern.permute.xlu0 0
    %3672 = vperm.xlu0 %3671, %v3045
    %v3673 = vpop.permute.xlu0 %3672
    %3676 = vset.pattern.permute.xlu0 0
    %3677 = vperm.xlu0 %3676, %v3050
    %v3678 = vpop.permute.xlu0 %3677
    %3681 = vset.pattern.permute.xlu0 0
    %3682 = vperm.xlu0 %3681, %v3053
    %v3683 = vpop.permute.xlu0 %3682
    %3686 = vset.pattern.permute.xlu0 0
    %3687 = vperm.xlu0 %3686, %v3058
    %v3688 = vpop.permute.xlu0 %3687
    %3691 = vset.pattern.permute.xlu0 0
    %3692 = vperm.xlu0 %3691, %v3061
    %v3693 = vpop.permute.xlu0 %3692
    %3696 = vset.pattern.permute.xlu0 0
    %3697 = vperm.xlu0 %3696, %v3066
    %v3698 = vpop.permute.xlu0 %3697
    %3701 = vset.pattern.permute.xlu0 0
    %3702 = vperm.xlu0 %3701, %v3069
    %v3703 = vpop.permute.xlu0 %3702
    %3706 = vset.pattern.permute.xlu0 0
    %3707 = vperm.xlu0 %3706, %v3074
    %v3708 = vpop.permute.xlu0 %3707
    %3711 = vset.pattern.permute.xlu0 0
    %3712 = vperm.xlu0 %3711, %v3077
    %v3713 = vpop.permute.xlu0 %3712
    %3716 = vset.pattern.permute.xlu0 0
    %3717 = vperm.xlu0 %3716, %v3082
    %v3718 = vpop.permute.xlu0 %3717
    %3721 = vset.pattern.permute.xlu0 0
    %3722 = vperm.xlu0 %3721, %v3085
    %v3723 = vpop.permute.xlu0 %3722
    %3726 = vset.pattern.permute.xlu0 0
    %3727 = vperm.xlu0 %3726, %v3090
    %v3728 = vpop.permute.xlu0 %3727
    %3731 = vset.pattern.permute.xlu0 0
    %3732 = vperm.xlu0 %3731, %v3093
    %v3733 = vpop.permute.xlu0 %3732
    %3736 = vset.pattern.permute.xlu0 0
    %3737 = vperm.xlu0 %3736, %v3098
    %v3738 = vpop.permute.xlu0 %3737
    %3741 = vset.pattern.permute.xlu0 0
    %3742 = vperm.xlu0 %3741, %v3101
    %v3743 = vpop.permute.xlu0 %3742
    %3746 = vset.pattern.permute.xlu0 0
    %3747 = vperm.xlu0 %3746, %v3106
    %v3748 = vpop.permute.xlu0 %3747
    %3751 = vset.pattern.permute.xlu0 0
    %3752 = vperm.xlu0 %3751, %v3109
    %v3753 = vpop.permute.xlu0 %3752
    %3756 = vset.pattern.permute.xlu0 0
    %3757 = vperm.xlu0 %3756, %v3114
    %v3758 = vpop.permute.xlu0 %3757
    %3761 = vset.pattern.permute.xlu0 0
    %3762 = vperm.xlu0 %3761, %v3117
    %v3763 = vpop.permute.xlu0 %3762
    %3766 = vset.pattern.permute.xlu0 0
    %3767 = vperm.xlu0 %3766, %v3122
    %v3768 = vpop.permute.xlu0 %3767
    %3771 = vset.pattern.permute.xlu0 0
    %3772 = vperm.xlu0 %3771, %v3125
    %v3773 = vpop.permute.xlu0 %3772
    %3776 = vset.pattern.permute.xlu0 0
    %3777 = vperm.xlu0 %3776, %v3130
    %v3778 = vpop.permute.xlu0 %3777
    %3781 = vset.pattern.permute.xlu0 0
    %3782 = vperm.xlu0 %3781, %v3133
    %v3783 = vpop.permute.xlu0 %3782
    %3786 = vset.pattern.permute.xlu0 0
    %3787 = vperm.xlu0 %3786, %v3138
    %v3788 = vpop.permute.xlu0 %3787
    %3791 = vset.pattern.permute.xlu0 0
    %3792 = vperm.xlu0 %3791, %v3141
    %v3793 = vpop.permute.xlu0 %3792
    %3796 = vset.pattern.permute.xlu0 0
    %3797 = vperm.xlu0 %3796, %v3146
    %v3798 = vpop.permute.xlu0 %3797
    %3801 = vset.pattern.permute.xlu0 0
    %3802 = vperm.xlu0 %3801, %v3149
    %v3803 = vpop.permute.xlu0 %3802
    %3806 = vset.pattern.permute.xlu0 0
    %3807 = vperm.xlu0 %3806, %v3154
    %v3808 = vpop.permute.xlu0 %3807
    %3811 = vset.pattern.permute.xlu0 0
    %3812 = vperm.xlu0 %3811, %v3157
    %v3813 = vpop.permute.xlu0 %3812
    %3816 = vset.pattern.permute.xlu0 0
    %3817 = vperm.xlu0 %3816, %v3162
    %v3818 = vpop.permute.xlu0 %3817
    %3821 = vset.pattern.permute.xlu0 0
    %3822 = vperm.xlu0 %3821, %v3165
    %v3823 = vpop.permute.xlu0 %3822
    %3826 = vset.pattern.permute.xlu0 0
    %3827 = vperm.xlu0 %3826, %v3170
    %v3828 = vpop.permute.xlu0 %3827
    %3831 = vset.pattern.permute.xlu0 0
    %3832 = vperm.xlu0 %3831, %v3173
    %v3833 = vpop.permute.xlu0 %3832
    %3836 = vset.pattern.permute.xlu0 0
    %3837 = vperm.xlu0 %3836, %v3178
    %v3838 = vpop.permute.xlu0 %3837
    %3841 = vset.pattern.permute.xlu0 0
    %3842 = vperm.xlu0 %3841, %v3181
    %v3843 = vpop.permute.xlu0 %3842
    %3846 = vset.pattern.permute.xlu0 0
    %3847 = vperm.xlu0 %3846, %v3186
    %v3848 = vpop.permute.xlu0 %3847
    %3851 = vset.pattern.permute.xlu0 0
    %3852 = vperm.xlu0 %3851, %v3189
    %v3853 = vpop.permute.xlu0 %3852
    %3856 = vset.pattern.permute.xlu0 0
    %3857 = vperm.xlu0 %3856, %v3194
    %v3858 = vpop.permute.xlu0 %3857
    %3861 = vset.pattern.permute.xlu0 0
    %3862 = vperm.xlu0 %3861, %v3197
    %v3863 = vpop.permute.xlu0 %3862
    %3866 = vset.pattern.permute.xlu0 0
    %3867 = vperm.xlu0 %3866, %v3202
    %v3868 = vpop.permute.xlu0 %3867
    %3871 = vset.pattern.permute.xlu0 0
    %3872 = vperm.xlu0 %3871, %v3205
    %v3873 = vpop.permute.xlu0 %3872
    %3876 = vset.pattern.permute.xlu0 0
    %3877 = vperm.xlu0 %3876, %v3210
    %v3878 = vpop.permute.xlu0 %3877
    %3881 = vset.pattern.permute.xlu0 0
    %3882 = vperm.xlu0 %3881, %v3213
    %v3883 = vpop.permute.xlu0 %3882
    %3886 = vset.pattern.permute.xlu0 0
    %3887 = vperm.xlu0 %3886, %v3218
    %v3888 = vpop.permute.xlu0 %3887
    %3891 = vset.pattern.permute.xlu0 0
    %3892 = vperm.xlu0 %3891, %v3221
    %v3893 = vpop.permute.xlu0 %3892
    %3896 = vset.pattern.permute.xlu0 0
    %3897 = vperm.xlu0 %3896, %v3226
    %v3898 = vpop.permute.xlu0 %3897
    %3901 = vset.pattern.permute.xlu0 0
    %3902 = vperm.xlu0 %3901, %v3229
    %v3903 = vpop.permute.xlu0 %3902
    %3906 = vset.pattern.permute.xlu0 0
    %3907 = vperm.xlu0 %3906, %v3234
    %v3908 = vpop.permute.xlu0 %3907
    %3911 = vset.pattern.permute.xlu0 0
    %3912 = vperm.xlu0 %3911, %v3237
    %v3913 = vpop.permute.xlu0 %3912
    %3916 = vset.pattern.permute.xlu0 0
    %3917 = vperm.xlu0 %3916, %v3242
    %v3918 = vpop.permute.xlu0 %3917
    %3921 = vset.pattern.permute.xlu0 0
    %3922 = vperm.xlu0 %3921, %v3245
    %v3923 = vpop.permute.xlu0 %3922
    %3926 = vset.pattern.permute.xlu0 0
    %3927 = vperm.xlu0 %3926, %v3250
    %v3928 = vpop.permute.xlu0 %3927
    %3931 = vset.pattern.permute.xlu0 0
    %3932 = vperm.xlu0 %3931, %v3253
    %v3933 = vpop.permute.xlu0 %3932
    %3936 = vset.pattern.permute.xlu0 0
    %3937 = vperm.xlu0 %3936, %v3258
    %v3938 = vpop.permute.xlu0 %3937
    %3941 = vset.pattern.permute.xlu0 0
    %3942 = vperm.xlu0 %3941, %v3261
    %v3943 = vpop.permute.xlu0 %3942
    %3946 = vset.pattern.permute.xlu0 0
    %3947 = vperm.xlu0 %3946, %v3266
    %v3948 = vpop.permute.xlu0 %3947
    %3951 = vset.pattern.permute.xlu0 0
    %3952 = vperm.xlu0 %3951, %v3269
    %v3953 = vpop.permute.xlu0 %3952
    %3956 = vset.pattern.permute.xlu0 0
    %3957 = vperm.xlu0 %3956, %v3274
    %v3958 = vpop.permute.xlu0 %3957
    %3961 = vset.pattern.permute.xlu0 0
    %3962 = vperm.xlu0 %3961, %v3277
    %v3963 = vpop.permute.xlu0 %3962
    %3966 = vset.pattern.permute.xlu0 0
    %3967 = vperm.xlu0 %3966, %v3282
    %v3968 = vpop.permute.xlu0 %3967
    %3971 = vset.pattern.permute.xlu0 0
    %3972 = vperm.xlu0 %3971, %v3285
    %v3973 = vpop.permute.xlu0 %3972
    %3976 = vset.pattern.permute.xlu0 0
    %3977 = vperm.xlu0 %3976, %v3290
    %v3978 = vpop.permute.xlu0 %3977
    %3981 = vset.pattern.permute.xlu0 0
    %3982 = vperm.xlu0 %3981, %v3293
    %v3983 = vpop.permute.xlu0 %3982
    %3986 = vset.pattern.permute.xlu0 0
    %3987 = vperm.xlu0 %3986, %v3298
    %v3988 = vpop.permute.xlu0 %3987
    %3991 = vset.pattern.permute.xlu0 0
    %3992 = vperm.xlu0 %3991, %v3301
    %v3993 = vpop.permute.xlu0 %3992
    %3996 = vset.pattern.permute.xlu0 0
    %3997 = vperm.xlu0 %3996, %v3306
    %v3998 = vpop.permute.xlu0 %3997
    %4001 = vset.pattern.permute.xlu0 0
    %4002 = vperm.xlu0 %4001, %v3309
    %v4003 = vpop.permute.xlu0 %4002
    %4006 = vset.pattern.permute.xlu0 0
    %4007 = vperm.xlu0 %4006, %v3314
    %v4008 = vpop.permute.xlu0 %4007
    %4011 = vset.pattern.permute.xlu0 0
    %4012 = vperm.xlu0 %4011, %v3317
    %v4013 = vpop.permute.xlu0 %4012
    %4016 = vset.pattern.permute.xlu0 0
    %4017 = vperm.xlu0 %4016, %v3322
    %v4018 = vpop.permute.xlu0 %4017
    %4021 = vset.pattern.permute.xlu0 0
    %4022 = vperm.xlu0 %4021, %v3325
    %v4023 = vpop.permute.xlu0 %4022
    %4026 = vset.pattern.permute.xlu0 0
    %4027 = vperm.xlu0 %4026, %v3330
    %v4028 = vpop.permute.xlu0 %4027
    %v4030 = vsel %vm3404, %v3408, 1.0
    %v4031 = vsel %vm3404, %v3413, 1.0
    %v4032 = vsel %vm3404, %v3418, 1.0
    %v4033 = vsel %vm3404, %v3423, 1.0
    %v4034 = vsel %vm3404, %v3428, 1.0
    %v4035 = vsel %vm3404, %v3433, 1.0
    %v4036 = vsel %vm3404, %v3438, 1.0
    %v4037 = vsel %vm3404, %v3443, 1.0
    %v4038 = vsel %vm3404, %v3448, 1.0
    %v4039 = vsel %vm3404, %v3453, 1.0
    %v4040 = vsel %vm3404, %v3458, 1.0
    %v4041 = vsel %vm3404, %v3463, 1.0
    %v4042 = vsel %vm3404, %v3468, 1.0
    %v4043 = vsel %vm3404, %v3473, 1.0
    %v4044 = vsel %vm3404, %v3478, 1.0
    %v4045 = vsel %vm3404, %v3483, 1.0
    %v4046 = vsel %vm3404, %v3488, 1.0
    %v4047 = vsel %vm3404, %v3493, 1.0
    %v4048 = vsel %vm3404, %v3498, 1.0
    %v4049 = vsel %vm3404, %v3503, 1.0
    %v4050 = vsel %vm3404, %v3508, 1.0
    %v4051 = vsel %vm3404, %v3513, 1.0
    %v4052 = vsel %vm3404, %v3518, 1.0
    %v4053 = vsel %vm3404, %v3523, 1.0
    %v4054 = vsel %vm3404, %v3528, 1.0
    %v4055 = vsel %vm3404, %v3533, 1.0
    %v4056 = vsel %vm3404, %v3538, 1.0
    %v4057 = vsel %vm3404, %v3543, 1.0
    %v4058 = vsel %vm3404, %v3548, 1.0
    %v4059 = vsel %vm3404, %v3553, 1.0
    %v4060 = vsel %vm3404, %v3558, 1.0
    %v4061 = vsel %vm3404, %v3563, 1.0
    %v4062 = vsel %vm3404, %v3568, 1.0
    %v4063 = vsel %vm3404, %v3573, 1.0
    %v4064 = vsel %vm3404, %v3578, 1.0
    %v4065 = vsel %vm3404, %v3583, 1.0
    %v4066 = vsel %vm3404, %v3588, 1.0
    %v4067 = vsel %vm3404, %v3593, 1.0
    %v4068 = vsel %vm3404, %v3598, 1.0
    %v4069 = vsel %vm3404, %v3603, 1.0
    %v4070 = vsel %vm3404, %v3608, 1.0
    %v4071 = vsel %vm3404, %v3613, 1.0
    %v4072 = vsel %vm3404, %v3618, 1.0
    %v4073 = vsel %vm3404, %v3623, 1.0
    %v4074 = vsel %vm3404, %v3628, 1.0
    %v4075 = vsel %vm3404, %v3633, 1.0
    %v4076 = vsel %vm3404, %v3638, 1.0
    %v4077 = vsel %vm3404, %v3643, 1.0
    %v4078 = vsel %vm3404, %v3648, 1.0
    %v4079 = vsel %vm3404, %v3653, 1.0
    %v4080 = vsel %vm3404, %v3658, 1.0
    %v4081 = vsel %vm3404, %v3663, 1.0
    %v4082 = vsel %vm3404, %v3668, 1.0
    %v4083 = vsel %vm3404, %v3673, 1.0
    %v4084 = vsel %vm3404, %v3678, 1.0
    %v4085 = vsel %vm3404, %v3683, 1.0
    %v4086 = vsel %vm3404, %v3688, 1.0
    %v4087 = vsel %vm3404, %v3693, 1.0
    %v4088 = vsel %vm3404, %v3698, 1.0
    %v4089 = vsel %vm3404, %v3703, 1.0
    %v4090 = vsel %vm3404, %v3708, 1.0
    %v4091 = vsel %vm3404, %v3713, 1.0
    %v4092 = vsel %vm3404, %v3718, 1.0
    %v4093 = vsel %vm3404, %v3723, 1.0
    %v4094 = vsel %vm3404, %v3728, 1.0
    %v4095 = vsel %vm3404, %v3733, 1.0
    %v4096 = vsel %vm3404, %v3738, 1.0
    %v4097 = vsel %vm3404, %v3743, 1.0
    %v4098 = vsel %vm3404, %v3748, 1.0
    %v4099 = vsel %vm3404, %v3753, 1.0
    %v4100 = vsel %vm3404, %v3758, 1.0
    %v4101 = vsel %vm3404, %v3763, 1.0
    %v4102 = vsel %vm3404, %v3768, 1.0
    %v4103 = vsel %vm3404, %v3773, 1.0
    %v4104 = vsel %vm3404, %v3778, 1.0
    %v4105 = vsel %vm3404, %v3783, 1.0
    %v4106 = vsel %vm3404, %v3788, 1.0
    %v4107 = vsel %vm3404, %v3793, 1.0
    %v4108 = vsel %vm3404, %v3798, 1.0
    %v4109 = vsel %vm3404, %v3803, 1.0
    %v4110 = vsel %vm3404, %v3808, 1.0
    %v4111 = vsel %vm3404, %v3813, 1.0
    %v4112 = vsel %vm3404, %v3818, 1.0
    %v4113 = vsel %vm3404, %v3823, 1.0
    %v4114 = vsel %vm3404, %v3828, 1.0
    %v4115 = vsel %vm3404, %v3833, 1.0
    %v4116 = vsel %vm3404, %v3838, 1.0
    %v4117 = vsel %vm3404, %v3843, 1.0
    %v4118 = vsel %vm3404, %v3848, 1.0
    %v4119 = vsel %vm3404, %v3853, 1.0
    %v4120 = vsel %vm3404, %v3858, 1.0
    %v4121 = vsel %vm3404, %v3863, 1.0
    %v4122 = vsel %vm3404, %v3868, 1.0
    %v4123 = vsel %vm3404, %v3873, 1.0
    %v4124 = vsel %vm3404, %v3878, 1.0
    %v4125 = vsel %vm3404, %v3883, 1.0
    %v4126 = vsel %vm3404, %v3888, 1.0
    %v4127 = vsel %vm3404, %v3893, 1.0
    %v4128 = vsel %vm3404, %v3898, 1.0
    %v4129 = vsel %vm3404, %v3903, 1.0
    %v4130 = vsel %vm3404, %v3908, 1.0
    %v4131 = vsel %vm3404, %v3913, 1.0
    %v4132 = vsel %vm3404, %v3918, 1.0
    %v4133 = vsel %vm3404, %v3923, 1.0
    %v4134 = vsel %vm3404, %v3928, 1.0
    %v4135 = vsel %vm3404, %v3933, 1.0
    %v4136 = vsel %vm3404, %v3938, 1.0
    %v4137 = vsel %vm3404, %v3943, 1.0
    %v4138 = vsel %vm3404, %v3948, 1.0
    %v4139 = vsel %vm3404, %v3953, 1.0
    %v4140 = vsel %vm3404, %v3958, 1.0
    %v4141 = vsel %vm3404, %v3963, 1.0
    %v4142 = vsel %vm3404, %v3968, 1.0
    %v4143 = vsel %vm3404, %v3973, 1.0
    %v4144 = vsel %vm3404, %v3978, 1.0
    %v4145 = vsel %vm3404, %v3983, 1.0
    %v4146 = vsel %vm3404, %v3988, 1.0
    %v4147 = vsel %vm3404, %v3993, 1.0
    %v4148 = vsel %vm3404, %v3998, 1.0
    %v4149 = vsel %vm3404, %v4003, 1.0
    %v4150 = vsel %vm3404, %v4008, 1.0
    %v4151 = vsel %vm3404, %v4013, 1.0
    %v4152 = vsel %vm3404, %v4018, 1.0
    %v4153 = vsel %vm3404, %v4023, 1.0
    %v4154 = vsel %vm3404, %v4028, 1.0
    %v4155 = vpack.c.bf16 %v4031, %v4030
    %v4156 = vpack.c.bf16 %v4033, %v4032
    %v4157 = vpack.c.bf16 %v4035, %v4034
    %v4158 = vpack.c.bf16 %v4037, %v4036
    %v4159 = vpack.c.bf16 %v4039, %v4038
    %v4160 = vpack.c.bf16 %v4041, %v4040
    %v4161 = vpack.c.bf16 %v4043, %v4042
    %v4162 = vpack.c.bf16 %v4045, %v4044
    %v4163 = vpack.c.bf16 %v4047, %v4046
    %v4164 = vpack.c.bf16 %v4049, %v4048
    %v4165 = vpack.c.bf16 %v4051, %v4050
    %v4166 = vpack.c.bf16 %v4053, %v4052
    %v4167 = vpack.c.bf16 %v4055, %v4054
    %v4168 = vpack.c.bf16 %v4057, %v4056
    %v4169 = vpack.c.bf16 %v4059, %v4058
    %v4170 = vpack.c.bf16 %v4061, %v4060
    %v4171 = vpack.c.bf16 %v4063, %v4062
    %v4172 = vpack.c.bf16 %v4065, %v4064
    %v4173 = vpack.c.bf16 %v4067, %v4066
    %v4174 = vpack.c.bf16 %v4069, %v4068
    %v4175 = vpack.c.bf16 %v4071, %v4070
    %v4176 = vpack.c.bf16 %v4073, %v4072
    %v4177 = vpack.c.bf16 %v4075, %v4074
    %v4178 = vpack.c.bf16 %v4077, %v4076
    %v4179 = vpack.c.bf16 %v4079, %v4078
    %v4180 = vpack.c.bf16 %v4081, %v4080
    %v4181 = vpack.c.bf16 %v4083, %v4082
    %v4182 = vpack.c.bf16 %v4085, %v4084
    %v4183 = vpack.c.bf16 %v4087, %v4086
    %v4184 = vpack.c.bf16 %v4089, %v4088
    %v4185 = vpack.c.bf16 %v4091, %v4090
    %v4186 = vpack.c.bf16 %v4093, %v4092
    %v4187 = vpack.c.bf16 %v4095, %v4094
    %v4188 = vpack.c.bf16 %v4097, %v4096
    %v4189 = vpack.c.bf16 %v4099, %v4098
    %v4190 = vpack.c.bf16 %v4101, %v4100
    %v4191 = vpack.c.bf16 %v4103, %v4102
    %v4192 = vpack.c.bf16 %v4105, %v4104
    %v4193 = vpack.c.bf16 %v4107, %v4106
    %v4194 = vpack.c.bf16 %v4109, %v4108
    %v4195 = vpack.c.bf16 %v4111, %v4110
    %v4196 = vpack.c.bf16 %v4113, %v4112
    %v4197 = vpack.c.bf16 %v4115, %v4114
    %v4198 = vpack.c.bf16 %v4117, %v4116
    %v4199 = vpack.c.bf16 %v4119, %v4118
    %v4200 = vpack.c.bf16 %v4121, %v4120
    %v4201 = vpack.c.bf16 %v4123, %v4122
    %v4202 = vpack.c.bf16 %v4125, %v4124
    %v4203 = vpack.c.bf16 %v4127, %v4126
    %v4204 = vpack.c.bf16 %v4129, %v4128
    %v4205 = vpack.c.bf16 %v4131, %v4130
    %v4206 = vpack.c.bf16 %v4133, %v4132
    %v4207 = vpack.c.bf16 %v4135, %v4134
    %v4208 = vpack.c.bf16 %v4137, %v4136
    %v4209 = vpack.c.bf16 %v4139, %v4138
    %v4210 = vpack.c.bf16 %v4141, %v4140
    %v4211 = vpack.c.bf16 %v4143, %v4142
    %v4212 = vpack.c.bf16 %v4145, %v4144
    %v4213 = vpack.c.bf16 %v4147, %v4146
    %v4214 = vpack.c.bf16 %v4149, %v4148
    %v4215 = vpack.c.bf16 %v4151, %v4150
    %v4216 = vpack.c.bf16 %v4153, %v4152
    %v4217 = vpack.c.bf16 %v4154, %v4154
    %v4218 = vld [vmem:[%s7] sm:$0xff]
    %vm4219 = vcmask 850944
    %v4221 = vsel %vm4219, %v3401, 0
    %vm4223 = vcmask 1043456
    %v4225 = vsel %vm4223, %v4217, 0
    %4227 = vmatprep.subr.bf16.mxu0 0
    %4228 = vmatpush1.bf16.msra.mxu0 %v4162
    %4229 = vmatprep.subr.bf16.mxu0 0
    %4230 = vmatpush1.bf16.msra.mxu0 %v4161
    %4231 = vmatprep.subr.bf16.mxu0 0
    %4232 = vmatpush1.bf16.msra.mxu0 %v4160
    %4233 = vmatprep.subr.bf16.mxu0 0
    %4234 = vmatpush1.bf16.msra.mxu0 %v4159
    %4235 = vmatprep.subr.bf16.mxu0 0
    %4236 = vmatpush1.bf16.msra.mxu0 %v4158
    %4237 = vmatprep.subr.bf16.mxu0 0
    %4238 = vmatpush1.bf16.msra.mxu0 %v4157
    %4239 = vmatprep.subr.bf16.mxu0 0
    %4240 = vmatpush1.bf16.msra.mxu0 %v4156
    %4241 = vmatprep.subr.bf16.mxu0 0
    %4242 = vmatpush1.bf16.msra.mxu0 %v4155
    %4243 = vmatprep.subr.bf16.mxu0 0
    %4244 = vmatpush2.bf16.msra.mxu0 %v4170
    %4245 = vmatprep.subr.bf16.mxu0 0
    %4246 = vmatpush2.bf16.msra.mxu0 %v4169
    %4247 = vmatprep.subr.bf16.mxu0 0
    %4248 = vmatpush2.bf16.msra.mxu0 %v4168
    %4249 = vmatprep.subr.bf16.mxu0 0
    %4250 = vmatpush2.bf16.msra.mxu0 %v4167
    %4251 = vmatprep.subr.bf16.mxu0 0
    %4252 = vmatpush2.bf16.msra.mxu0 %v4166
    %4253 = vmatprep.subr.bf16.mxu0 0
    %4254 = vmatpush2.bf16.msra.mxu0 %v4165
    %4255 = vmatprep.subr.bf16.mxu0 0
    %4256 = vmatpush2.bf16.msra.mxu0 %v4164
    %4257 = vmatprep.subr.bf16.mxu0 0
    %4258 = vmatpush2.bf16.msra.mxu0 %v4163
    %4259 = vmatprep.mubr.bf16.mxu0 %v3395
    %4260 = vmatmul.mubr.bf16.gmra.mxu0 %v3394
    %v4261 = vpop.f32.mrf.mxu0
    %v4262 = vadd.f32 0.0, %v4261
    %v4263 = vpop.f32.mrf.mxu0
    %v4264 = vpop.f32.mrf.mxu0
    %v4265 = vpop.f32.mrf.mxu0
    %4266 = vdwg.mxu0
    %4267 = vmatprep.subr.bf16.mxu0 0
    %4268 = vmatpush1.bf16.msra.mxu0 %v4178
    %4269 = vmatprep.subr.bf16.mxu0 0
    %4270 = vmatpush1.bf16.msra.mxu0 %v4177
    %4271 = vmatprep.subr.bf16.mxu0 0
    %4272 = vmatpush1.bf16.msra.mxu0 %v4176
    %4273 = vmatprep.subr.bf16.mxu0 0
    %4274 = vmatpush1.bf16.msra.mxu0 %v4175
    %4275 = vmatprep.subr.bf16.mxu0 0
    %4276 = vmatpush1.bf16.msra.mxu0 %v4174
    %4277 = vmatprep.subr.bf16.mxu0 0
    %4278 = vmatpush1.bf16.msra.mxu0 %v4173
    %4279 = vmatprep.subr.bf16.mxu0 0
    %4280 = vmatpush1.bf16.msra.mxu0 %v4172
    %4281 = vmatprep.subr.bf16.mxu0 0
    %4282 = vmatpush1.bf16.msra.mxu0 %v4171
    %4283 = vmatprep.subr.bf16.mxu0 0
    %4284 = vmatpush2.bf16.msra.mxu0 %v4186
    %4285 = vmatprep.subr.bf16.mxu0 0
    %4286 = vmatpush2.bf16.msra.mxu0 %v4185
    %4287 = vmatprep.subr.bf16.mxu0 0
    %4288 = vmatpush2.bf16.msra.mxu0 %v4184
    %4289 = vmatprep.subr.bf16.mxu0 0
    %4290 = vmatpush2.bf16.msra.mxu0 %v4183
    %4291 = vmatprep.subr.bf16.mxu0 0
    %4292 = vmatpush2.bf16.msra.mxu0 %v4182
    %4293 = vmatprep.subr.bf16.mxu0 0
    %4294 = vmatpush2.bf16.msra.mxu0 %v4181
    %4295 = vmatprep.subr.bf16.mxu0 0
    %4296 = vmatpush2.bf16.msra.mxu0 %v4180
    %4297 = vmatprep.subr.bf16.mxu0 0
    %4298 = vmatpush2.bf16.msra.mxu0 %v4179
    %4299 = vmatprep.mubr.bf16.mxu0 %v3397
    %4300 = vmatmul.mubr.bf16.gmra.mxu0 %v3396
    %v4301 = vpop.f32.mrf.mxu0
    %v4302 = vadd.f32 %v4262, %v4301
    %v4303 = vpop.f32.mrf.mxu0
    %v4304 = vpop.f32.mrf.mxu0
    %v4305 = vpop.f32.mrf.mxu0
    %4306 = vdwg.mxu0
    %4307 = vmatprep.subr.bf16.mxu0 0
    %4308 = vmatpush1.bf16.msra.mxu0 %v4194
    %4309 = vmatprep.subr.bf16.mxu0 0
    %4310 = vmatpush1.bf16.msra.mxu0 %v4193
    %4311 = vmatprep.subr.bf16.mxu0 0
    %4312 = vmatpush1.bf16.msra.mxu0 %v4192
    %4313 = vmatprep.subr.bf16.mxu0 0
    %4314 = vmatpush1.bf16.msra.mxu0 %v4191
    %4315 = vmatprep.subr.bf16.mxu0 0
    %4316 = vmatpush1.bf16.msra.mxu0 %v4190
    %4317 = vmatprep.subr.bf16.mxu0 0
    %4318 = vmatpush1.bf16.msra.mxu0 %v4189
    %4319 = vmatprep.subr.bf16.mxu0 0
    %4320 = vmatpush1.bf16.msra.mxu0 %v4188
    %4321 = vmatprep.subr.bf16.mxu0 0
    %4322 = vmatpush1.bf16.msra.mxu0 %v4187
    %4323 = vmatprep.subr.bf16.mxu0 0
    %4324 = vmatpush2.bf16.msra.mxu0 %v4202
    %4325 = vmatprep.subr.bf16.mxu0 0
    %4326 = vmatpush2.bf16.msra.mxu0 %v4201
    %4327 = vmatprep.subr.bf16.mxu0 0
    %4328 = vmatpush2.bf16.msra.mxu0 %v4200
    %4329 = vmatprep.subr.bf16.mxu0 0
    %4330 = vmatpush2.bf16.msra.mxu0 %v4199
    %4331 = vmatprep.subr.bf16.mxu0 0
    %4332 = vmatpush2.bf16.msra.mxu0 %v4198
    %4333 = vmatprep.subr.bf16.mxu0 0
    %4334 = vmatpush2.bf16.msra.mxu0 %v4197
    %4335 = vmatprep.subr.bf16.mxu0 0
    %4336 = vmatpush2.bf16.msra.mxu0 %v4196
    %4337 = vmatprep.subr.bf16.mxu0 0
    %4338 = vmatpush2.bf16.msra.mxu0 %v4195
    %4339 = vmatprep.mubr.bf16.mxu0 %v3399
    %4340 = vmatmul.mubr.bf16.gmra.mxu0 %v3398
    %v4341 = vpop.f32.mrf.mxu0
    %v4342 = vadd.f32 %v4302, %v4341
    %v4343 = vpop.f32.mrf.mxu0
    %v4344 = vpop.f32.mrf.mxu0
    %v4345 = vpop.f32.mrf.mxu0
    %4346 = vdwg.mxu0
    %4347 = vmatprep.subr.bf16.mxu0 0
    %4348 = vmatpush1.bf16.msra.mxu0 %v4210
    %4349 = vmatprep.subr.bf16.mxu0 0
    %4350 = vmatpush1.bf16.msra.mxu0 %v4209
    %4351 = vmatprep.subr.bf16.mxu0 0
    %4352 = vmatpush1.bf16.msra.mxu0 %v4208
    %4353 = vmatprep.subr.bf16.mxu0 0
    %4354 = vmatpush1.bf16.msra.mxu0 %v4207
    %4355 = vmatprep.subr.bf16.mxu0 0
    %4356 = vmatpush1.bf16.msra.mxu0 %v4206
    %4357 = vmatprep.subr.bf16.mxu0 0
    %4358 = vmatpush1.bf16.msra.mxu0 %v4205
    %4359 = vmatprep.subr.bf16.mxu0 0
    %4360 = vmatpush1.bf16.msra.mxu0 %v4204
    %4361 = vmatprep.subr.bf16.mxu0 0
    %4362 = vmatpush1.bf16.msra.mxu0 %v4203
    %4363 = vmatprep.subr.bf16.mxu0 0
    %4364 = vmatpush2.bf16.msra.mxu0 0
    %4365 = vmatprep.subr.bf16.mxu0 0
    %4366 = vmatpush2.bf16.msra.mxu0 %v4225
    %4367 = vmatprep.subr.bf16.mxu0 0
    %4368 = vmatpush2.bf16.msra.mxu0 %v4216
    %4369 = vmatprep.subr.bf16.mxu0 0
    %4370 = vmatpush2.bf16.msra.mxu0 %v4215
    %4371 = vmatprep.subr.bf16.mxu0 0
    %4372 = vmatpush2.bf16.msra.mxu0 %v4214
    %4373 = vmatprep.subr.bf16.mxu0 0
    %4374 = vmatpush2.bf16.msra.mxu0 %v4213
    %4375 = vmatprep.subr.bf16.mxu0 0
    %4376 = vmatpush2.bf16.msra.mxu0 %v4212
    %4377 = vmatprep.subr.bf16.mxu0 0
    %4378 = vmatpush2.bf16.msra.mxu0 %v4211
    %4379 = vmatprep.mubr.bf16.mxu0 %v4221
    %4380 = vmatmul.mubr.bf16.gmra.mxu0 %v3400
    %v4381 = vpop.f32.mrf.mxu0
    %v4382 = vadd.f32 %v4342, %v4381
    %v4383 = vpop.f32.mrf.mxu0
    %v4384 = vpop.f32.mrf.mxu0
    %v4385 = vpop.f32.mrf.mxu0
    %4386 = vdwg.mxu0
    %v4387 = vadd.f32 %v4218, %v4382
    %vm4388 = vcmask 15360
    %4389 = vst.msk [vmem:[%s7] sm:$0xff] %vm4388, %v4387
    // Predicated region
    $region38: #{tpu_custom_call.1} parent=1 // pred_check
      _
    $region39: #{tpu_custom_call.1} parent=1 // pred_check_branch
      %4391 = sbr.rel (0) target = $region41
    $region40: #{tpu_custom_call.1} parent=1 // pred_region
      _
    $region41: #{tpu_custom_call.1} parent=1 // pred_fallthru
      _
    // Predicated region
    $region42: #{tpu_custom_call.1} parent=1 // pred_check
      _
    $region43: #{tpu_custom_call.1} parent=1 // pred_check_branch
      %4393 = sbr.rel (0) target = $region45
    $region44: #{tpu_custom_call.1} parent=1 // pred_region
      _
    $region45: #{tpu_custom_call.1} parent=1 // pred_fallthru
      _
    %4394 = vsyncpa [#allocation3], 1

</llo_original>
